<compile_context>
chip_gen: v5e
topology: v5e:2x2
jax: 0.10.0
libtpu: 0.0.40
codegen_flags: <defaults>
</compile_context>

<pallas_src>
import functools

import jax
import jax.numpy as jnp
from jax.experimental import pallas as pl
from jax.experimental.pallas import tpu as pltpu


# -----------------------------------------------------------------------------
# Pallas kernel: conv2 (GEMM over patches) + BN + ReLU + MaxPool(2,2) + flatten
#                + collapsed fc1->fc2->fc3, all resident in VMEM.
# -----------------------------------------------------------------------------
def _layer2_fc_kernel(x_ref, w2_ref, b2_ref, wfc_ref, bfc_ref, o_ref, *, tb):
    # x_ref  : (1, 4, 36*tb, 288) bf16 conv2 patches; dim1 = 2x2 pool-window position,
    #          rows ordered (s = p*6+q, image-in-tile), features ordered (di, dj, cin).
    # w2_ref : (288, 128) bf16  conv2 weight, BN folded; columns 64.. are zero padding.
    # b2_ref : (1, 128)  f32    conv2 bias, BN folded; columns 64.. are zero.
    # wfc_ref: (36, 128, 128) bf16 collapsed fc1@fc2@fc3 weight, layout [s, c, n].
    # bfc_ref: (1, 128)  f32    collapsed fc bias; columns 10.. are zero.
    # o_ref  : (1, tb, 128) f32 logits (columns 10.. are zero / ignored).
    w2 = w2_ref[...]
    b2 = b2_ref[...]

    # conv2 + BN + ReLU for each of the 4 positions of the 2x2 pool window; the pool is
    # then an elementwise max, so the un-pooled (12,12,64) activation never hits HBM.
    pooled = None
    for a in range(4):
        h = jnp.dot(x_ref[0, a], w2, preferred_element_type=jnp.float32)
        h = jnp.maximum(h + b2, 0.0)
        pooled = h if pooled is None else jnp.maximum(pooled, h)
    # pooled: (36*tb, 128) f32; lanes 64.. are exactly zero (zero-padded w2/b2 + ReLU).

    # Collapsed fc1 -> (Dropout2d: identity at eval) -> fc2 -> fc3: a single linear map
    # applied as 36 per-spatial-position dots, which sidesteps any in-kernel reshape of
    # the NHWC activation into the flattened (2304,) layout.
    acc = jnp.zeros((tb, 128), jnp.float32)
    for s in range(36):
        lhs = pooled[s * tb:(s + 1) * tb, :].astype(jnp.bfloat16)      # (tb, 128)
        acc = acc + jnp.dot(lhs, wfc_ref[s], preferred_element_type=jnp.float32)
    o_ref[0] = acc + bfc_ref[...]


def layer2_fc(patches, w2, b2, wfc, bfc, *, tb):
    """patches: (G, 4, 36*tb, 288) bf16 -> logits (G*tb, 128) f32 (cols 10.. padded)."""
    G = patches.shape[0]
    rows = 36 * tb

    flops = G * (4 * rows * 288 * 128 * 2 + 36 * tb * 128 * 128 * 2)
    bytes_accessed = (patches.size * 2 + w2.size * 2 + wfc.size * 2
                      + b2.size * 4 + bfc.size * 4 + G * tb * 128 * 4)

    # Size the scoped-VMEM limit from the actual footprint (double-buffered input/output
    # blocks + resident weights + intermediates), with generous margin (review item 8).
    x_block_bytes = 4 * rows * 288 * 2
    const_bytes = w2.size * 2 + wfc.size * 2 + (b2.size + bfc.size) * 4
    interm_bytes = 6 * rows * 128 * 4
    vmem_est = 2 * (x_block_bytes + tb * 128 * 4) + 2 * const_bytes + interm_bytes
    vmem_limit = int(min(32 * 1024 * 1024, max(4 * 1024 * 1024, 3 * vmem_est)))

    out = pl.pallas_call(
        functools.partial(_layer2_fc_kernel, tb=tb),
        out_shape=jax.ShapeDtypeStruct((G, tb, 128), jnp.float32),
        grid=(G,),
        in_specs=[
            pl.BlockSpec((1, 4, rows, 288), lambda g: (g, 0, 0, 0)),
            pl.BlockSpec((288, 128), lambda g: (0, 0)),
            pl.BlockSpec((1, 128), lambda g: (0, 0)),
            pl.BlockSpec((36, 128, 128), lambda g: (0, 0, 0)),
            pl.BlockSpec((1, 128), lambda g: (0, 0)),
        ],
        out_specs=pl.BlockSpec((1, tb, 128), lambda g: (g, 0, 0)),
        compiler_params=pltpu.CompilerParams(
            dimension_semantics=("parallel",),
            vmem_limit_bytes=vmem_limit),
        cost_estimate=pl.CostEstimate(flops=flops, transcendentals=0,
                                      bytes_accessed=bytes_accessed),
    )(patches, w2, b2, wfc, bfc)
    return out.reshape(G * tb, 128)


# -----------------------------------------------------------------------------
# XLA glue: conv1 as a VPU stencil (review item 1), pool1, and pool-ordered patches.
# -----------------------------------------------------------------------------
def conv1_bn_relu_pool(x_nchw, w1s, b1s):
    """Conv2d(1->32,k3,pad=1)+BN+ReLU+MaxPool(2,2) as a 9-tap shift-and-add stencil.

    K=9 cannot feed the MXU usefully, so this stays on the VPU via XLA fusion; no
    channel padding, so nothing has to be sliced off before/after the pool.
    """
    x = jnp.transpose(x_nchw, (0, 2, 3, 1))                       # (B,28,28,1) NHWC
    xp = jnp.pad(x, ((0, 0), (1, 1), (1, 1), (0, 0)))             # (B,30,30,1)
    acc = jnp.zeros(x.shape[:1] + (28, 28, 32), jnp.float32) + b1s
    for di in range(3):
        for dj in range(3):
            acc = acc + xp[:, di:di + 28, dj:dj + 28, :] * w1s[di, dj]
    y = jnp.maximum(acc, 0.0)
    y = jnp.maximum(jnp.maximum(y[:, 0::2, 0::2, :], y[:, 1::2, 0::2, :]),
                    jnp.maximum(y[:, 0::2, 1::2, :], y[:, 1::2, 1::2, :]))
    return y.astype(jnp.bfloat16)                                  # (B,14,14,32)


def build_pool_ordered_patches(y1, tb):
    """(B,14,14,32) -> (G, 4, 36*tb, 288) conv2 patches arranged so that the kernel's
    2x2 maxpool is an elementwise max over dim 1 and the flattened FC uses contiguous
    row slices.  Feature order is (di, dj, cin); rows are ordered (s=p*6+q, image)."""
    B = y1.shape[0]
    G = -(-B // tb)
    Bp = G * tb
    if Bp != B:
        y1 = jnp.pad(y1, ((0, Bp - B), (0, 0), (0, 0), (0, 0)))
    cols = [y1[:, di:di + 12, dj:dj + 12, :] for di in range(3) for dj in range(3)]
    p = jnp.concatenate(cols, axis=-1)                             # (Bp,12,12,288)
    p = p.reshape(G, tb, 6, 2, 6, 2, 288)                          # (g,bi,p,ri,q,rj,f)
    p = jnp.transpose(p, (0, 3, 5, 2, 4, 1, 6))                    # (g,ri,rj,p,q,bi,f)
    return p.reshape(G, 4, 36 * tb, 288), G


# -----------------------------------------------------------------------------
# One-time weight preparation: BN folding, FC collapse, layout permutes, padding.
# -----------------------------------------------------------------------------
def prepare_params(params):
    prep = {}

    # conv1 + BN1: stencil weights (3,3,32) and bias (32,), BN scale/shift folded.
    g, be, mu, var, eps = params["bn1"]
    s1 = g / jnp.sqrt(var + eps)
    w1 = jnp.transpose(params["conv1_w"][:, 0], (1, 2, 0))         # (3,3,32)
    prep["w1s"] = (w1 * s1).astype(jnp.float32)
    prep["b1s"] = ((params["conv1_b"] - mu) * s1 + be).astype(jnp.float32)

    # conv2 + BN2: GEMM weight (288,64) -> pad N to 128 (lane dense); rows = (di,dj,cin).
    g, be, mu, var, eps = params["bn2"]
    s2 = g / jnp.sqrt(var + eps)
    w2 = jnp.transpose(params["conv2_w"], (2, 3, 1, 0)).reshape(288, 64) * s2[None, :]
    b2 = (params["conv2_b"] - mu) * s2 + be
    prep["w2"] = jnp.pad(w2, ((0, 0), (0, 64))).astype(jnp.bfloat16)          # (288,128)
    prep["b2"] = jnp.pad(b2, (0, 64)).reshape(1, 128).astype(jnp.float32)

    # fc1 -> fc2 -> fc3: no nonlinearity between them in the reference module, and
    # Dropout2d is identity at eval, so collapse to a single linear map in f32.
    w1f, w2f, w3f = params["fc1_w"], params["fc2_w"], params["fc3_w"]
    b1f, b2f, b3f = params["fc1_b"], params["fc2_b"], params["fc3_b"]
    wc = w1f.T @ w2f.T @ w3f.T                                     # (2304, 10)
    bc = (b1f @ w2f.T) @ w3f.T + b2f @ w3f.T + b3f                 # (10,)
    # PyTorch flatten order is (c*36 + p*6 + q); rearrange to the kernel's [s, c, n]
    # layout and zero-pad c 64->128 and n 10->128 so every dot is 128-lane aligned.
    wc = jnp.transpose(wc.reshape(64, 36, 10), (1, 0, 2))          # (36, 64, 10)
    prep["wfc"] = jnp.pad(wc, ((0, 0), (0, 64), (0, 118))).astype(jnp.bfloat16)
    prep["bfc"] = jnp.pad(bc, (0, 118)).reshape(1, 128).astype(jnp.float32)
    return prep


# -----------------------------------------------------------------------------
# Parameters (PyTorch-shaped), deterministic init.
# -----------------------------------------------------------------------------
def init_params(key):
    ks = jax.random.split(key, 12)
    n = lambda k, s, sc=0.05: sc * jax.random.normal(k, s, dtype=jnp.float32)

    def bn(k, c):
        k1, k2, k3, k4 = jax.random.split(k, 4)
        gamma = 1.0 + 0.1 * jax.random.normal(k1, (c,), dtype=jnp.float32)
        beta = 0.1 * jax.random.normal(k2, (c,), dtype=jnp.float32)
        mean = 0.1 * jax.random.normal(k3, (c,), dtype=jnp.float32)
        var = 0.5 + jax.random.uniform(k4, (c,), dtype=jnp.float32)
        return (gamma, beta, mean, var, jnp.float32(1e-5))

    p = {}
    p["conv1_w"] = n(ks[0], (32, 1, 3, 3))
    p["conv1_b"] = n(ks[1], (32,))
    p["bn1"] = bn(ks[2], 32)
    p["conv2_w"] = n(ks[3], (64, 32, 3, 3))
    p["conv2_b"] = n(ks[4], (64,))
    p["bn2"] = bn(ks[5], 64)
    p["fc1_w"] = n(ks[6], (600, 64 * 6 * 6), 0.02)
    p["fc1_b"] = n(ks[7], (600,))
    p["fc2_w"] = n(ks[8], (120, 600), 0.02)
    p["fc2_b"] = n(ks[9], (120,))
    p["fc3_w"] = n(ks[10], (10, 120), 0.02)
    p["fc3_b"] = n(ks[11], (10,))
    return p


# -----------------------------------------------------------------------------
# Forward pass.
# -----------------------------------------------------------------------------
def mlleaks_cnn_forward(x_nchw, prep):
    B = x_nchw.shape[0]
    # layer1: conv1 + BN + ReLU + pool, fused on the VPU by XLA.
    y1 = conv1_bn_relu_pool(x_nchw, prep["w1s"], prep["b1s"])      # (B,14,14,32) bf16

    # Images per grid step: 1 at tiny batch (so both v7x TCs get a step), growing with
    # batch (more patch rows per GEMM, fewer per-step overheads) while keeping grid>=2.
    tb = 1 if B < 8 else max(1, min(32, B // 4))
    patches, G = build_pool_ordered_patches(y1, tb)                # (G,4,36*tb,288)

    # layer2 + flatten + collapsed FCs, all in one Pallas kernel.
    logits = layer2_fc(patches, prep["w2"], prep["b2"],
                       prep["wfc"], prep["bfc"], tb=tb)            # (G*tb, 128) f32
    return logits[:B, :10]


# -----------------------------------------------------------------------------
if __name__ == "__main__":
    key = jax.random.PRNGKey(0)
    params = init_params(key)
    prep = prepare_params(params)    # BN folding / FC collapse / padding done once

    # MNIST-shaped input (fc1 in_features = 64*6*6 implies 1x28x28 spatial).
    x = jax.random.normal(jax.random.fold_in(key, 123), (2, 1, 28, 28), dtype=jnp.float32)

    fwd = jax.jit(mlleaks_cnn_forward)
    out = jax.block_until_ready(fwd(x, prep))
    assert out.shape == (2, 10), out.shape
    assert bool(jnp.all(jnp.isfinite(out)))
    print("KERNEL_OK")
</pallas_src>

<mosaic_0001>
module attributes {stable_mosaic.version = 11 : i64} {
  func.func @_layer2_fc_kernel(%arg0: i32, %arg1: memref<1x4x36x288xbf16, #tpu.memory_space<vmem>>, %arg2: memref<288x128xbf16, #tpu.memory_space<vmem>>, %arg3: memref<1x128xf32, #tpu.memory_space<vmem>>, %arg4: memref<36x128x128xbf16, #tpu.memory_space<vmem>>, %arg5: memref<1x128xf32, #tpu.memory_space<vmem>>, %arg6: memref<1x1x128xf32, #tpu.memory_space<vmem>>) attributes {dimension_semantics = [#tpu.dimension_semantics<parallel>], iteration_bounds = array<i64: 2>, scalar_prefetch = 0 : i64, scratch_operands = 0 : i64, tpu.core_type = #tpu.core_type<tc>, window_params = [{transform_indices = @transform_0, window_bounds = array<i64: 1, 4, 36, 288>}, {pipeline_mode = #tpu.pipeline_mode<synchronous>, transform_indices = @transform_1, window_bounds = array<i64: 288, 128>}, {pipeline_mode = #tpu.pipeline_mode<synchronous>, transform_indices = @transform_2, window_bounds = array<i64: 1, 128>}, {pipeline_mode = #tpu.pipeline_mode<synchronous>, transform_indices = @transform_3, window_bounds = array<i64: 36, 128, 128>}, {pipeline_mode = #tpu.pipeline_mode<synchronous>, transform_indices = @transform_4, window_bounds = array<i64: 1, 128>}, {transform_indices = @transform_5, window_bounds = array<i64: 1, 1, 128>}]} {
    %c0 = arith.constant 0 : index
    %c0_0 = arith.constant 0 : index
    %0 = vector.load %arg2[%c0, %c0_0] : memref<288x128xbf16, #tpu.memory_space<vmem>>, vector<288x128xbf16>
    %c0_1 = arith.constant 0 : index
    %c0_2 = arith.constant 0 : index
    %1 = vector.load %arg3[%c0_1, %c0_2] : memref<1x128xf32, #tpu.memory_space<vmem>>, vector<1x128xf32>
    %c0_3 = arith.constant 0 : index
    %c0_4 = arith.constant 0 : index
    %c0_5 = arith.constant 0 : index
    %c0_6 = arith.constant 0 : index
    %2 = vector.load %arg1[%c0_3, %c0_4, %c0_5, %c0_6] : memref<1x4x36x288xbf16, #tpu.memory_space<vmem>>, vector<1x1x36x288xbf16>
    %3 = vector.shape_cast %2 : vector<1x1x36x288xbf16> to vector<36x288xbf16>
    %cst = arith.constant dense<0.000000e+00> : vector<36x128xf32>
    %4 = tpu.matmul %3, %0, %cst {dimension_numbers = #tpu.dot_dimension_numbers<[1], [0], [0], [1], [0, 0, 1, 1], [], []>} : vector<36x288xbf16>, vector<288x128xbf16>, vector<36x128xf32> -> vector<36x128xf32>
    %5 = vector.broadcast %1 : vector<1x128xf32> to vector<36x128xf32>
    %6 = arith.addf %4, %5 : vector<36x128xf32>
    %cst_7 = arith.constant 0.000000e+00 : f32
    %7 = vector.broadcast %cst_7 : f32 to vector<36x128xf32>
    %8 = arith.maximumf %6, %7 : vector<36x128xf32>
    %c0_8 = arith.constant 0 : index
    %c1 = arith.constant 1 : index
    %c0_9 = arith.constant 0 : index
    %c0_10 = arith.constant 0 : index
    %9 = vector.load %arg1[%c0_8, %c1, %c0_9, %c0_10] : memref<1x4x36x288xbf16, #tpu.memory_space<vmem>>, vector<1x1x36x288xbf16>
    %10 = vector.shape_cast %9 : vector<1x1x36x288xbf16> to vector<36x288xbf16>
    %cst_11 = arith.constant dense<0.000000e+00> : vector<36x128xf32>
    %11 = tpu.matmul %10, %0, %cst_11 {dimension_numbers = #tpu.dot_dimension_numbers<[1], [0], [0], [1], [0, 0, 1, 1], [], []>} : vector<36x288xbf16>, vector<288x128xbf16>, vector<36x128xf32> -> vector<36x128xf32>
    %12 = vector.broadcast %1 : vector<1x128xf32> to vector<36x128xf32>
    %13 = arith.addf %11, %12 : vector<36x128xf32>
    %cst_12 = arith.constant 0.000000e+00 : f32
    %14 = vector.broadcast %cst_12 : f32 to vector<36x128xf32>
    %15 = arith.maximumf %13, %14 : vector<36x128xf32>
    %16 = arith.maximumf %8, %15 : vector<36x128xf32>
    %c0_13 = arith.constant 0 : index
    %c2 = arith.constant 2 : index
    %c0_14 = arith.constant 0 : index
    %c0_15 = arith.constant 0 : index
    %17 = vector.load %arg1[%c0_13, %c2, %c0_14, %c0_15] : memref<1x4x36x288xbf16, #tpu.memory_space<vmem>>, vector<1x1x36x288xbf16>
    %18 = vector.shape_cast %17 : vector<1x1x36x288xbf16> to vector<36x288xbf16>
    %cst_16 = arith.constant dense<0.000000e+00> : vector<36x128xf32>
    %19 = tpu.matmul %18, %0, %cst_16 {dimension_numbers = #tpu.dot_dimension_numbers<[1], [0], [0], [1], [0, 0, 1, 1], [], []>} : vector<36x288xbf16>, vector<288x128xbf16>, vector<36x128xf32> -> vector<36x128xf32>
    %20 = vector.broadcast %1 : vector<1x128xf32> to vector<36x128xf32>
    %21 = arith.addf %19, %20 : vector<36x128xf32>
    %cst_17 = arith.constant 0.000000e+00 : f32
    %22 = vector.broadcast %cst_17 : f32 to vector<36x128xf32>
    %23 = arith.maximumf %21, %22 : vector<36x128xf32>
    %24 = arith.maximumf %16, %23 : vector<36x128xf32>
    %c0_18 = arith.constant 0 : index
    %c3 = arith.constant 3 : index
    %c0_19 = arith.constant 0 : index
    %c0_20 = arith.constant 0 : index
    %25 = vector.load %arg1[%c0_18, %c3, %c0_19, %c0_20] : memref<1x4x36x288xbf16, #tpu.memory_space<vmem>>, vector<1x1x36x288xbf16>
    %26 = vector.shape_cast %25 : vector<1x1x36x288xbf16> to vector<36x288xbf16>
    %cst_21 = arith.constant dense<0.000000e+00> : vector<36x128xf32>
    %27 = tpu.matmul %26, %0, %cst_21 {dimension_numbers = #tpu.dot_dimension_numbers<[1], [0], [0], [1], [0, 0, 1, 1], [], []>} : vector<36x288xbf16>, vector<288x128xbf16>, vector<36x128xf32> -> vector<36x128xf32>
    %28 = vector.broadcast %1 : vector<1x128xf32> to vector<36x128xf32>
    %29 = arith.addf %27, %28 : vector<36x128xf32>
    %cst_22 = arith.constant 0.000000e+00 : f32
    %30 = vector.broadcast %cst_22 : f32 to vector<36x128xf32>
    %31 = arith.maximumf %29, %30 : vector<36x128xf32>
    %32 = arith.maximumf %24, %31 : vector<36x128xf32>
    %cst_23 = arith.constant 0.000000e+00 : f32
    %33 = vector.broadcast %cst_23 : f32 to vector<1x128xf32>
    %34 = vector.extract_strided_slice %32 {offsets = [0, 0], sizes = [1, 128], strides = [1, 1]} : vector<36x128xf32> to vector<1x128xf32>
    %35 = arith.truncf %34 : vector<1x128xf32> to vector<1x128xbf16>
    %c0_24 = arith.constant 0 : index
    %c0_25 = arith.constant 0 : index
    %c0_26 = arith.constant 0 : index
    %36 = vector.load %arg4[%c0_24, %c0_25, %c0_26] : memref<36x128x128xbf16, #tpu.memory_space<vmem>>, vector<1x128x128xbf16>
    %37 = vector.shape_cast %36 : vector<1x128x128xbf16> to vector<128x128xbf16>
    %cst_27 = arith.constant dense<0.000000e+00> : vector<1x128xf32>
    %38 = tpu.matmul %35, %37, %cst_27 {dimension_numbers = #tpu.dot_dimension_numbers<[1], [0], [0], [1], [0, 0, 1, 1], [], []>} : vector<1x128xbf16>, vector<128x128xbf16>, vector<1x128xf32> -> vector<1x128xf32>
    %39 = arith.addf %33, %38 : vector<1x128xf32>
    %40 = vector.extract_strided_slice %32 {offsets = [1, 0], sizes = [1, 128], strides = [1, 1]} : vector<36x128xf32> to vector<1x128xf32>
    %41 = arith.truncf %40 : vector<1x128xf32> to vector<1x128xbf16>
    %c1_28 = arith.constant 1 : index
    %c0_29 = arith.constant 0 : index
    %c0_30 = arith.constant 0 : index
    %42 = vector.load %arg4[%c1_28, %c0_29, %c0_30] : memref<36x128x128xbf16, #tpu.memory_space<vmem>>, vector<1x128x128xbf16>
    %43 = vector.shape_cast %42 : vector<1x128x128xbf16> to vector<128x128xbf16>
    %cst_31 = arith.constant dense<0.000000e+00> : vector<1x128xf32>
    %44 = tpu.matmul %41, %43, %cst_31 {dimension_numbers = #tpu.dot_dimension_numbers<[1], [0], [0], [1], [0, 0, 1, 1], [], []>} : vector<1x128xbf16>, vector<128x128xbf16>, vector<1x128xf32> -> vector<1x128xf32>
    %45 = arith.addf %39, %44 : vector<1x128xf32>
    %46 = vector.extract_strided_slice %32 {offsets = [2, 0], sizes = [1, 128], strides = [1, 1]} : vector<36x128xf32> to vector<1x128xf32>
    %47 = arith.truncf %46 : vector<1x128xf32> to vector<1x128xbf16>
    %c2_32 = arith.constant 2 : index
    %c0_33 = arith.constant 0 : index
    %c0_34 = arith.constant 0 : index
    %48 = vector.load %arg4[%c2_32, %c0_33, %c0_34] : memref<36x128x128xbf16, #tpu.memory_space<vmem>>, vector<1x128x128xbf16>
    %49 = vector.shape_cast %48 : vector<1x128x128xbf16> to vector<128x128xbf16>
    %cst_35 = arith.constant dense<0.000000e+00> : vector<1x128xf32>
    %50 = tpu.matmul %47, %49, %cst_35 {dimension_numbers = #tpu.dot_dimension_numbers<[1], [0], [0], [1], [0, 0, 1, 1], [], []>} : vector<1x128xbf16>, vector<128x128xbf16>, vector<1x128xf32> -> vector<1x128xf32>
    %51 = arith.addf %45, %50 : vector<1x128xf32>
    %52 = vector.extract_strided_slice %32 {offsets = [3, 0], sizes = [1, 128], strides = [1, 1]} : vector<36x128xf32> to vector<1x128xf32>
    %53 = arith.truncf %52 : vector<1x128xf32> to vector<1x128xbf16>
    %c3_36 = arith.constant 3 : index
    %c0_37 = arith.constant 0 : index
    %c0_38 = arith.constant 0 : index
    %54 = vector.load %arg4[%c3_36, %c0_37, %c0_38] : memref<36x128x128xbf16, #tpu.memory_space<vmem>>, vector<1x128x128xbf16>
    %55 = vector.shape_cast %54 : vector<1x128x128xbf16> to vector<128x128xbf16>
    %cst_39 = arith.constant dense<0.000000e+00> : vector<1x128xf32>
    %56 = tpu.matmul %53, %55, %cst_39 {dimension_numbers = #tpu.dot_dimension_numbers<[1], [0], [0], [1], [0, 0, 1, 1], [], []>} : vector<1x128xbf16>, vector<128x128xbf16>, vector<1x128xf32> -> vector<1x128xf32>
    %57 = arith.addf %51, %56 : vector<1x128xf32>
    %58 = vector.extract_strided_slice %32 {offsets = [4, 0], sizes = [1, 128], strides = [1, 1]} : vector<36x128xf32> to vector<1x128xf32>
    %59 = arith.truncf %58 : vector<1x128xf32> to vector<1x128xbf16>
    %c4 = arith.constant 4 : index
    %c0_40 = arith.constant 0 : index
    %c0_41 = arith.constant 0 : index
    %60 = vector.load %arg4[%c4, %c0_40, %c0_41] : memref<36x128x128xbf16, #tpu.memory_space<vmem>>, vector<1x128x128xbf16>
    %61 = vector.shape_cast %60 : vector<1x128x128xbf16> to vector<128x128xbf16>
    %cst_42 = arith.constant dense<0.000000e+00> : vector<1x128xf32>
    %62 = tpu.matmul %59, %61, %cst_42 {dimension_numbers = #tpu.dot_dimension_numbers<[1], [0], [0], [1], [0, 0, 1, 1], [], []>} : vector<1x128xbf16>, vector<128x128xbf16>, vector<1x128xf32> -> vector<1x128xf32>
    %63 = arith.addf %57, %62 : vector<1x128xf32>
    %64 = vector.extract_strided_slice %32 {offsets = [5, 0], sizes = [1, 128], strides = [1, 1]} : vector<36x128xf32> to vector<1x128xf32>
    %65 = arith.truncf %64 : vector<1x128xf32> to vector<1x128xbf16>
    %c5 = arith.constant 5 : index
    %c0_43 = arith.constant 0 : index
    %c0_44 = arith.constant 0 : index
    %66 = vector.load %arg4[%c5, %c0_43, %c0_44] : memref<36x128x128xbf16, #tpu.memory_space<vmem>>, vector<1x128x128xbf16>
    %67 = vector.shape_cast %66 : vector<1x128x128xbf16> to vector<128x128xbf16>
    %cst_45 = arith.constant dense<0.000000e+00> : vector<1x128xf32>
    %68 = tpu.matmul %65, %67, %cst_45 {dimension_numbers = #tpu.dot_dimension_numbers<[1], [0], [0], [1], [0, 0, 1, 1], [], []>} : vector<1x128xbf16>, vector<128x128xbf16>, vector<1x128xf32> -> vector<1x128xf32>
    %69 = arith.addf %63, %68 : vector<1x128xf32>
    %70 = vector.extract_strided_slice %32 {offsets = [6, 0], sizes = [1, 128], strides = [1, 1]} : vector<36x128xf32> to vector<1x128xf32>
    %71 = arith.truncf %70 : vector<1x128xf32> to vector<1x128xbf16>
    %c6 = arith.constant 6 : index
    %c0_46 = arith.constant 0 : index
    %c0_47 = arith.constant 0 : index
    %72 = vector.load %arg4[%c6, %c0_46, %c0_47] : memref<36x128x128xbf16, #tpu.memory_space<vmem>>, vector<1x128x128xbf16>
    %73 = vector.shape_cast %72 : vector<1x128x128xbf16> to vector<128x128xbf16>
    %cst_48 = arith.constant dense<0.000000e+00> : vector<1x128xf32>
    %74 = tpu.matmul %71, %73, %cst_48 {dimension_numbers = #tpu.dot_dimension_numbers<[1], [0], [0], [1], [0, 0, 1, 1], [], []>} : vector<1x128xbf16>, vector<128x128xbf16>, vector<1x128xf32> -> vector<1x128xf32>
    %75 = arith.addf %69, %74 : vector<1x128xf32>
    %76 = vector.extract_strided_slice %32 {offsets = [7, 0], sizes = [1, 128], strides = [1, 1]} : vector<36x128xf32> to vector<1x128xf32>
    %77 = arith.truncf %76 : vector<1x128xf32> to vector<1x128xbf16>
    %c7 = arith.constant 7 : index
    %c0_49 = arith.constant 0 : index
    %c0_50 = arith.constant 0 : index
    %78 = vector.load %arg4[%c7, %c0_49, %c0_50] : memref<36x128x128xbf16, #tpu.memory_space<vmem>>, vector<1x128x128xbf16>
    %79 = vector.shape_cast %78 : vector<1x128x128xbf16> to vector<128x128xbf16>
    %cst_51 = arith.constant dense<0.000000e+00> : vector<1x128xf32>
    %80 = tpu.matmul %77, %79, %cst_51 {dimension_numbers = #tpu.dot_dimension_numbers<[1], [0], [0], [1], [0, 0, 1, 1], [], []>} : vector<1x128xbf16>, vector<128x128xbf16>, vector<1x128xf32> -> vector<1x128xf32>
    %81 = arith.addf %75, %80 : vector<1x128xf32>
    %82 = vector.extract_strided_slice %32 {offsets = [8, 0], sizes = [1, 128], strides = [1, 1]} : vector<36x128xf32> to vector<1x128xf32>
    %83 = arith.truncf %82 : vector<1x128xf32> to vector<1x128xbf16>
    %c8 = arith.constant 8 : index
    %c0_52 = arith.constant 0 : index
    %c0_53 = arith.constant 0 : index
    %84 = vector.load %arg4[%c8, %c0_52, %c0_53] : memref<36x128x128xbf16, #tpu.memory_space<vmem>>, vector<1x128x128xbf16>
    %85 = vector.shape_cast %84 : vector<1x128x128xbf16> to vector<128x128xbf16>
    %cst_54 = arith.constant dense<0.000000e+00> : vector<1x128xf32>
    %86 = tpu.matmul %83, %85, %cst_54 {dimension_numbers = #tpu.dot_dimension_numbers<[1], [0], [0], [1], [0, 0, 1, 1], [], []>} : vector<1x128xbf16>, vector<128x128xbf16>, vector<1x128xf32> -> vector<1x128xf32>
    %87 = arith.addf %81, %86 : vector<1x128xf32>
    %88 = vector.extract_strided_slice %32 {offsets = [9, 0], sizes = [1, 128], strides = [1, 1]} : vector<36x128xf32> to vector<1x128xf32>
    %89 = arith.truncf %88 : vector<1x128xf32> to vector<1x128xbf16>
    %c9 = arith.constant 9 : index
    %c0_55 = arith.constant 0 : index
    %c0_56 = arith.constant 0 : index
    %90 = vector.load %arg4[%c9, %c0_55, %c0_56] : memref<36x128x128xbf16, #tpu.memory_space<vmem>>, vector<1x128x128xbf16>
    %91 = vector.shape_cast %90 : vector<1x128x128xbf16> to vector<128x128xbf16>
    %cst_57 = arith.constant dense<0.000000e+00> : vector<1x128xf32>
    %92 = tpu.matmul %89, %91, %cst_57 {dimension_numbers = #tpu.dot_dimension_numbers<[1], [0], [0], [1], [0, 0, 1, 1], [], []>} : vector<1x128xbf16>, vector<128x128xbf16>, vector<1x128xf32> -> vector<1x128xf32>
    %93 = arith.addf %87, %92 : vector<1x128xf32>
    %94 = vector.extract_strided_slice %32 {offsets = [10, 0], sizes = [1, 128], strides = [1, 1]} : vector<36x128xf32> to vector<1x128xf32>
    %95 = arith.truncf %94 : vector<1x128xf32> to vector<1x128xbf16>
    %c10 = arith.constant 10 : index
    %c0_58 = arith.constant 0 : index
    %c0_59 = arith.constant 0 : index
    %96 = vector.load %arg4[%c10, %c0_58, %c0_59] : memref<36x128x128xbf16, #tpu.memory_space<vmem>>, vector<1x128x128xbf16>
    %97 = vector.shape_cast %96 : vector<1x128x128xbf16> to vector<128x128xbf16>
    %cst_60 = arith.constant dense<0.000000e+00> : vector<1x128xf32>
    %98 = tpu.matmul %95, %97, %cst_60 {dimension_numbers = #tpu.dot_dimension_numbers<[1], [0], [0], [1], [0, 0, 1, 1], [], []>} : vector<1x128xbf16>, vector<128x128xbf16>, vector<1x128xf32> -> vector<1x128xf32>
    %99 = arith.addf %93, %98 : vector<1x128xf32>
    %100 = vector.extract_strided_slice %32 {offsets = [11, 0], sizes = [1, 128], strides = [1, 1]} : vector<36x128xf32> to vector<1x128xf32>
    %101 = arith.truncf %100 : vector<1x128xf32> to vector<1x128xbf16>
    %c11 = arith.constant 11 : index
    %c0_61 = arith.constant 0 : index
    %c0_62 = arith.constant 0 : index
    %102 = vector.load %arg4[%c11, %c0_61, %c0_62] : memref<36x128x128xbf16, #tpu.memory_space<vmem>>, vector<1x128x128xbf16>
    %103 = vector.shape_cast %102 : vector<1x128x128xbf16> to vector<128x128xbf16>
    %cst_63 = arith.constant dense<0.000000e+00> : vector<1x128xf32>
    %104 = tpu.matmul %101, %103, %cst_63 {dimension_numbers = #tpu.dot_dimension_numbers<[1], [0], [0], [1], [0, 0, 1, 1], [], []>} : vector<1x128xbf16>, vector<128x128xbf16>, vector<1x128xf32> -> vector<1x128xf32>
    %105 = arith.addf %99, %104 : vector<1x128xf32>
    %106 = vector.extract_strided_slice %32 {offsets = [12, 0], sizes = [1, 128], strides = [1, 1]} : vector<36x128xf32> to vector<1x128xf32>
    %107 = arith.truncf %106 : vector<1x128xf32> to vector<1x128xbf16>
    %c12 = arith.constant 12 : index
    %c0_64 = arith.constant 0 : index
    %c0_65 = arith.constant 0 : index
    %108 = vector.load %arg4[%c12, %c0_64, %c0_65] : memref<36x128x128xbf16, #tpu.memory_space<vmem>>, vector<1x128x128xbf16>
    %109 = vector.shape_cast %108 : vector<1x128x128xbf16> to vector<128x128xbf16>
    %cst_66 = arith.constant dense<0.000000e+00> : vector<1x128xf32>
    %110 = tpu.matmul %107, %109, %cst_66 {dimension_numbers = #tpu.dot_dimension_numbers<[1], [0], [0], [1], [0, 0, 1, 1], [], []>} : vector<1x128xbf16>, vector<128x128xbf16>, vector<1x128xf32> -> vector<1x128xf32>
    %111 = arith.addf %105, %110 : vector<1x128xf32>
    %112 = vector.extract_strided_slice %32 {offsets = [13, 0], sizes = [1, 128], strides = [1, 1]} : vector<36x128xf32> to vector<1x128xf32>
    %113 = arith.truncf %112 : vector<1x128xf32> to vector<1x128xbf16>
    %c13 = arith.constant 13 : index
    %c0_67 = arith.constant 0 : index
    %c0_68 = arith.constant 0 : index
    %114 = vector.load %arg4[%c13, %c0_67, %c0_68] : memref<36x128x128xbf16, #tpu.memory_space<vmem>>, vector<1x128x128xbf16>
    %115 = vector.shape_cast %114 : vector<1x128x128xbf16> to vector<128x128xbf16>
    %cst_69 = arith.constant dense<0.000000e+00> : vector<1x128xf32>
    %116 = tpu.matmul %113, %115, %cst_69 {dimension_numbers = #tpu.dot_dimension_numbers<[1], [0], [0], [1], [0, 0, 1, 1], [], []>} : vector<1x128xbf16>, vector<128x128xbf16>, vector<1x128xf32> -> vector<1x128xf32>
    %117 = arith.addf %111, %116 : vector<1x128xf32>
    %118 = vector.extract_strided_slice %32 {offsets = [14, 0], sizes = [1, 128], strides = [1, 1]} : vector<36x128xf32> to vector<1x128xf32>
    %119 = arith.truncf %118 : vector<1x128xf32> to vector<1x128xbf16>
    %c14 = arith.constant 14 : index
    %c0_70 = arith.constant 0 : index
    %c0_71 = arith.constant 0 : index
    %120 = vector.load %arg4[%c14, %c0_70, %c0_71] : memref<36x128x128xbf16, #tpu.memory_space<vmem>>, vector<1x128x128xbf16>
    %121 = vector.shape_cast %120 : vector<1x128x128xbf16> to vector<128x128xbf16>
    %cst_72 = arith.constant dense<0.000000e+00> : vector<1x128xf32>
    %122 = tpu.matmul %119, %121, %cst_72 {dimension_numbers = #tpu.dot_dimension_numbers<[1], [0], [0], [1], [0, 0, 1, 1], [], []>} : vector<1x128xbf16>, vector<128x128xbf16>, vector<1x128xf32> -> vector<1x128xf32>
    %123 = arith.addf %117, %122 : vector<1x128xf32>
    %124 = vector.extract_strided_slice %32 {offsets = [15, 0], sizes = [1, 128], strides = [1, 1]} : vector<36x128xf32> to vector<1x128xf32>
    %125 = arith.truncf %124 : vector<1x128xf32> to vector<1x128xbf16>
    %c15 = arith.constant 15 : index
    %c0_73 = arith.constant 0 : index
    %c0_74 = arith.constant 0 : index
    %126 = vector.load %arg4[%c15, %c0_73, %c0_74] : memref<36x128x128xbf16, #tpu.memory_space<vmem>>, vector<1x128x128xbf16>
    %127 = vector.shape_cast %126 : vector<1x128x128xbf16> to vector<128x128xbf16>
    %cst_75 = arith.constant dense<0.000000e+00> : vector<1x128xf32>
    %128 = tpu.matmul %125, %127, %cst_75 {dimension_numbers = #tpu.dot_dimension_numbers<[1], [0], [0], [1], [0, 0, 1, 1], [], []>} : vector<1x128xbf16>, vector<128x128xbf16>, vector<1x128xf32> -> vector<1x128xf32>
    %129 = arith.addf %123, %128 : vector<1x128xf32>
    %130 = vector.extract_strided_slice %32 {offsets = [16, 0], sizes = [1, 128], strides = [1, 1]} : vector<36x128xf32> to vector<1x128xf32>
    %131 = arith.truncf %130 : vector<1x128xf32> to vector<1x128xbf16>
    %c16 = arith.constant 16 : index
    %c0_76 = arith.constant 0 : index
    %c0_77 = arith.constant 0 : index
    %132 = vector.load %arg4[%c16, %c0_76, %c0_77] : memref<36x128x128xbf16, #tpu.memory_space<vmem>>, vector<1x128x128xbf16>
    %133 = vector.shape_cast %132 : vector<1x128x128xbf16> to vector<128x128xbf16>
    %cst_78 = arith.constant dense<0.000000e+00> : vector<1x128xf32>
    %134 = tpu.matmul %131, %133, %cst_78 {dimension_numbers = #tpu.dot_dimension_numbers<[1], [0], [0], [1], [0, 0, 1, 1], [], []>} : vector<1x128xbf16>, vector<128x128xbf16>, vector<1x128xf32> -> vector<1x128xf32>
    %135 = arith.addf %129, %134 : vector<1x128xf32>
    %136 = vector.extract_strided_slice %32 {offsets = [17, 0], sizes = [1, 128], strides = [1, 1]} : vector<36x128xf32> to vector<1x128xf32>
    %137 = arith.truncf %136 : vector<1x128xf32> to vector<1x128xbf16>
    %c17 = arith.constant 17 : index
    %c0_79 = arith.constant 0 : index
    %c0_80 = arith.constant 0 : index
    %138 = vector.load %arg4[%c17, %c0_79, %c0_80] : memref<36x128x128xbf16, #tpu.memory_space<vmem>>, vector<1x128x128xbf16>
    %139 = vector.shape_cast %138 : vector<1x128x128xbf16> to vector<128x128xbf16>
    %cst_81 = arith.constant dense<0.000000e+00> : vector<1x128xf32>
    %140 = tpu.matmul %137, %139, %cst_81 {dimension_numbers = #tpu.dot_dimension_numbers<[1], [0], [0], [1], [0, 0, 1, 1], [], []>} : vector<1x128xbf16>, vector<128x128xbf16>, vector<1x128xf32> -> vector<1x128xf32>
    %141 = arith.addf %135, %140 : vector<1x128xf32>
    %142 = vector.extract_strided_slice %32 {offsets = [18, 0], sizes = [1, 128], strides = [1, 1]} : vector<36x128xf32> to vector<1x128xf32>
    %143 = arith.truncf %142 : vector<1x128xf32> to vector<1x128xbf16>
    %c18 = arith.constant 18 : index
    %c0_82 = arith.constant 0 : index
    %c0_83 = arith.constant 0 : index
    %144 = vector.load %arg4[%c18, %c0_82, %c0_83] : memref<36x128x128xbf16, #tpu.memory_space<vmem>>, vector<1x128x128xbf16>
    %145 = vector.shape_cast %144 : vector<1x128x128xbf16> to vector<128x128xbf16>
    %cst_84 = arith.constant dense<0.000000e+00> : vector<1x128xf32>
    %146 = tpu.matmul %143, %145, %cst_84 {dimension_numbers = #tpu.dot_dimension_numbers<[1], [0], [0], [1], [0, 0, 1, 1], [], []>} : vector<1x128xbf16>, vector<128x128xbf16>, vector<1x128xf32> -> vector<1x128xf32>
    %147 = arith.addf %141, %146 : vector<1x128xf32>
    %148 = vector.extract_strided_slice %32 {offsets = [19, 0], sizes = [1, 128], strides = [1, 1]} : vector<36x128xf32> to vector<1x128xf32>
    %149 = arith.truncf %148 : vector<1x128xf32> to vector<1x128xbf16>
    %c19 = arith.constant 19 : index
    %c0_85 = arith.constant 0 : index
    %c0_86 = arith.constant 0 : index
    %150 = vector.load %arg4[%c19, %c0_85, %c0_86] : memref<36x128x128xbf16, #tpu.memory_space<vmem>>, vector<1x128x128xbf16>
    %151 = vector.shape_cast %150 : vector<1x128x128xbf16> to vector<128x128xbf16>
    %cst_87 = arith.constant dense<0.000000e+00> : vector<1x128xf32>
    %152 = tpu.matmul %149, %151, %cst_87 {dimension_numbers = #tpu.dot_dimension_numbers<[1], [0], [0], [1], [0, 0, 1, 1], [], []>} : vector<1x128xbf16>, vector<128x128xbf16>, vector<1x128xf32> -> vector<1x128xf32>
    %153 = arith.addf %147, %152 : vector<1x128xf32>
    %154 = vector.extract_strided_slice %32 {offsets = [20, 0], sizes = [1, 128], strides = [1, 1]} : vector<36x128xf32> to vector<1x128xf32>
    %155 = arith.truncf %154 : vector<1x128xf32> to vector<1x128xbf16>
    %c20 = arith.constant 20 : index
    %c0_88 = arith.constant 0 : index
    %c0_89 = arith.constant 0 : index
    %156 = vector.load %arg4[%c20, %c0_88, %c0_89] : memref<36x128x128xbf16, #tpu.memory_space<vmem>>, vector<1x128x128xbf16>
    %157 = vector.shape_cast %156 : vector<1x128x128xbf16> to vector<128x128xbf16>
    %cst_90 = arith.constant dense<0.000000e+00> : vector<1x128xf32>
    %158 = tpu.matmul %155, %157, %cst_90 {dimension_numbers = #tpu.dot_dimension_numbers<[1], [0], [0], [1], [0, 0, 1, 1], [], []>} : vector<1x128xbf16>, vector<128x128xbf16>, vector<1x128xf32> -> vector<1x128xf32>
    %159 = arith.addf %153, %158 : vector<1x128xf32>
    %160 = vector.extract_strided_slice %32 {offsets = [21, 0], sizes = [1, 128], strides = [1, 1]} : vector<36x128xf32> to vector<1x128xf32>
    %161 = arith.truncf %160 : vector<1x128xf32> to vector<1x128xbf16>
    %c21 = arith.constant 21 : index
    %c0_91 = arith.constant 0 : index
    %c0_92 = arith.constant 0 : index
    %162 = vector.load %arg4[%c21, %c0_91, %c0_92] : memref<36x128x128xbf16, #tpu.memory_space<vmem>>, vector<1x128x128xbf16>
    %163 = vector.shape_cast %162 : vector<1x128x128xbf16> to vector<128x128xbf16>
    %cst_93 = arith.constant dense<0.000000e+00> : vector<1x128xf32>
    %164 = tpu.matmul %161, %163, %cst_93 {dimension_numbers = #tpu.dot_dimension_numbers<[1], [0], [0], [1], [0, 0, 1, 1], [], []>} : vector<1x128xbf16>, vector<128x128xbf16>, vector<1x128xf32> -> vector<1x128xf32>
    %165 = arith.addf %159, %164 : vector<1x128xf32>
    %166 = vector.extract_strided_slice %32 {offsets = [22, 0], sizes = [1, 128], strides = [1, 1]} : vector<36x128xf32> to vector<1x128xf32>
    %167 = arith.truncf %166 : vector<1x128xf32> to vector<1x128xbf16>
    %c22 = arith.constant 22 : index
    %c0_94 = arith.constant 0 : index
    %c0_95 = arith.constant 0 : index
    %168 = vector.load %arg4[%c22, %c0_94, %c0_95] : memref<36x128x128xbf16, #tpu.memory_space<vmem>>, vector<1x128x128xbf16>
    %169 = vector.shape_cast %168 : vector<1x128x128xbf16> to vector<128x128xbf16>
    %cst_96 = arith.constant dense<0.000000e+00> : vector<1x128xf32>
    %170 = tpu.matmul %167, %169, %cst_96 {dimension_numbers = #tpu.dot_dimension_numbers<[1], [0], [0], [1], [0, 0, 1, 1], [], []>} : vector<1x128xbf16>, vector<128x128xbf16>, vector<1x128xf32> -> vector<1x128xf32>
    %171 = arith.addf %165, %170 : vector<1x128xf32>
    %172 = vector.extract_strided_slice %32 {offsets = [23, 0], sizes = [1, 128], strides = [1, 1]} : vector<36x128xf32> to vector<1x128xf32>
    %173 = arith.truncf %172 : vector<1x128xf32> to vector<1x128xbf16>
    %c23 = arith.constant 23 : index
    %c0_97 = arith.constant 0 : index
    %c0_98 = arith.constant 0 : index
    %174 = vector.load %arg4[%c23, %c0_97, %c0_98] : memref<36x128x128xbf16, #tpu.memory_space<vmem>>, vector<1x128x128xbf16>
    %175 = vector.shape_cast %174 : vector<1x128x128xbf16> to vector<128x128xbf16>
    %cst_99 = arith.constant dense<0.000000e+00> : vector<1x128xf32>
    %176 = tpu.matmul %173, %175, %cst_99 {dimension_numbers = #tpu.dot_dimension_numbers<[1], [0], [0], [1], [0, 0, 1, 1], [], []>} : vector<1x128xbf16>, vector<128x128xbf16>, vector<1x128xf32> -> vector<1x128xf32>
    %177 = arith.addf %171, %176 : vector<1x128xf32>
    %178 = vector.extract_strided_slice %32 {offsets = [24, 0], sizes = [1, 128], strides = [1, 1]} : vector<36x128xf32> to vector<1x128xf32>
    %179 = arith.truncf %178 : vector<1x128xf32> to vector<1x128xbf16>
    %c24 = arith.constant 24 : index
    %c0_100 = arith.constant 0 : index
    %c0_101 = arith.constant 0 : index
    %180 = vector.load %arg4[%c24, %c0_100, %c0_101] : memref<36x128x128xbf16, #tpu.memory_space<vmem>>, vector<1x128x128xbf16>
    %181 = vector.shape_cast %180 : vector<1x128x128xbf16> to vector<128x128xbf16>
    %cst_102 = arith.constant dense<0.000000e+00> : vector<1x128xf32>
    %182 = tpu.matmul %179, %181, %cst_102 {dimension_numbers = #tpu.dot_dimension_numbers<[1], [0], [0], [1], [0, 0, 1, 1], [], []>} : vector<1x128xbf16>, vector<128x128xbf16>, vector<1x128xf32> -> vector<1x128xf32>
    %183 = arith.addf %177, %182 : vector<1x128xf32>
    %184 = vector.extract_strided_slice %32 {offsets = [25, 0], sizes = [1, 128], strides = [1, 1]} : vector<36x128xf32> to vector<1x128xf32>
    %185 = arith.truncf %184 : vector<1x128xf32> to vector<1x128xbf16>
    %c25 = arith.constant 25 : index
    %c0_103 = arith.constant 0 : index
    %c0_104 = arith.constant 0 : index
    %186 = vector.load %arg4[%c25, %c0_103, %c0_104] : memref<36x128x128xbf16, #tpu.memory_space<vmem>>, vector<1x128x128xbf16>
    %187 = vector.shape_cast %186 : vector<1x128x128xbf16> to vector<128x128xbf16>
    %cst_105 = arith.constant dense<0.000000e+00> : vector<1x128xf32>
    %188 = tpu.matmul %185, %187, %cst_105 {dimension_numbers = #tpu.dot_dimension_numbers<[1], [0], [0], [1], [0, 0, 1, 1], [], []>} : vector<1x128xbf16>, vector<128x128xbf16>, vector<1x128xf32> -> vector<1x128xf32>
    %189 = arith.addf %183, %188 : vector<1x128xf32>
    %190 = vector.extract_strided_slice %32 {offsets = [26, 0], sizes = [1, 128], strides = [1, 1]} : vector<36x128xf32> to vector<1x128xf32>
    %191 = arith.truncf %190 : vector<1x128xf32> to vector<1x128xbf16>
    %c26 = arith.constant 26 : index
    %c0_106 = arith.constant 0 : index
    %c0_107 = arith.constant 0 : index
    %192 = vector.load %arg4[%c26, %c0_106, %c0_107] : memref<36x128x128xbf16, #tpu.memory_space<vmem>>, vector<1x128x128xbf16>
    %193 = vector.shape_cast %192 : vector<1x128x128xbf16> to vector<128x128xbf16>
    %cst_108 = arith.constant dense<0.000000e+00> : vector<1x128xf32>
    %194 = tpu.matmul %191, %193, %cst_108 {dimension_numbers = #tpu.dot_dimension_numbers<[1], [0], [0], [1], [0, 0, 1, 1], [], []>} : vector<1x128xbf16>, vector<128x128xbf16>, vector<1x128xf32> -> vector<1x128xf32>
    %195 = arith.addf %189, %194 : vector<1x128xf32>
    %196 = vector.extract_strided_slice %32 {offsets = [27, 0], sizes = [1, 128], strides = [1, 1]} : vector<36x128xf32> to vector<1x128xf32>
    %197 = arith.truncf %196 : vector<1x128xf32> to vector<1x128xbf16>
    %c27 = arith.constant 27 : index
    %c0_109 = arith.constant 0 : index
    %c0_110 = arith.constant 0 : index
    %198 = vector.load %arg4[%c27, %c0_109, %c0_110] : memref<36x128x128xbf16, #tpu.memory_space<vmem>>, vector<1x128x128xbf16>
    %199 = vector.shape_cast %198 : vector<1x128x128xbf16> to vector<128x128xbf16>
    %cst_111 = arith.constant dense<0.000000e+00> : vector<1x128xf32>
    %200 = tpu.matmul %197, %199, %cst_111 {dimension_numbers = #tpu.dot_dimension_numbers<[1], [0], [0], [1], [0, 0, 1, 1], [], []>} : vector<1x128xbf16>, vector<128x128xbf16>, vector<1x128xf32> -> vector<1x128xf32>
    %201 = arith.addf %195, %200 : vector<1x128xf32>
    %202 = vector.extract_strided_slice %32 {offsets = [28, 0], sizes = [1, 128], strides = [1, 1]} : vector<36x128xf32> to vector<1x128xf32>
    %203 = arith.truncf %202 : vector<1x128xf32> to vector<1x128xbf16>
    %c28 = arith.constant 28 : index
    %c0_112 = arith.constant 0 : index
    %c0_113 = arith.constant 0 : index
    %204 = vector.load %arg4[%c28, %c0_112, %c0_113] : memref<36x128x128xbf16, #tpu.memory_space<vmem>>, vector<1x128x128xbf16>
    %205 = vector.shape_cast %204 : vector<1x128x128xbf16> to vector<128x128xbf16>
    %cst_114 = arith.constant dense<0.000000e+00> : vector<1x128xf32>
    %206 = tpu.matmul %203, %205, %cst_114 {dimension_numbers = #tpu.dot_dimension_numbers<[1], [0], [0], [1], [0, 0, 1, 1], [], []>} : vector<1x128xbf16>, vector<128x128xbf16>, vector<1x128xf32> -> vector<1x128xf32>
    %207 = arith.addf %201, %206 : vector<1x128xf32>
    %208 = vector.extract_strided_slice %32 {offsets = [29, 0], sizes = [1, 128], strides = [1, 1]} : vector<36x128xf32> to vector<1x128xf32>
    %209 = arith.truncf %208 : vector<1x128xf32> to vector<1x128xbf16>
    %c29 = arith.constant 29 : index
    %c0_115 = arith.constant 0 : index
    %c0_116 = arith.constant 0 : index
    %210 = vector.load %arg4[%c29, %c0_115, %c0_116] : memref<36x128x128xbf16, #tpu.memory_space<vmem>>, vector<1x128x128xbf16>
    %211 = vector.shape_cast %210 : vector<1x128x128xbf16> to vector<128x128xbf16>
    %cst_117 = arith.constant dense<0.000000e+00> : vector<1x128xf32>
    %212 = tpu.matmul %209, %211, %cst_117 {dimension_numbers = #tpu.dot_dimension_numbers<[1], [0], [0], [1], [0, 0, 1, 1], [], []>} : vector<1x128xbf16>, vector<128x128xbf16>, vector<1x128xf32> -> vector<1x128xf32>
    %213 = arith.addf %207, %212 : vector<1x128xf32>
    %214 = vector.extract_strided_slice %32 {offsets = [30, 0], sizes = [1, 128], strides = [1, 1]} : vector<36x128xf32> to vector<1x128xf32>
    %215 = arith.truncf %214 : vector<1x128xf32> to vector<1x128xbf16>
    %c30 = arith.constant 30 : index
    %c0_118 = arith.constant 0 : index
    %c0_119 = arith.constant 0 : index
    %216 = vector.load %arg4[%c30, %c0_118, %c0_119] : memref<36x128x128xbf16, #tpu.memory_space<vmem>>, vector<1x128x128xbf16>
    %217 = vector.shape_cast %216 : vector<1x128x128xbf16> to vector<128x128xbf16>
    %cst_120 = arith.constant dense<0.000000e+00> : vector<1x128xf32>
    %218 = tpu.matmul %215, %217, %cst_120 {dimension_numbers = #tpu.dot_dimension_numbers<[1], [0], [0], [1], [0, 0, 1, 1], [], []>} : vector<1x128xbf16>, vector<128x128xbf16>, vector<1x128xf32> -> vector<1x128xf32>
    %219 = arith.addf %213, %218 : vector<1x128xf32>
    %220 = vector.extract_strided_slice %32 {offsets = [31, 0], sizes = [1, 128], strides = [1, 1]} : vector<36x128xf32> to vector<1x128xf32>
    %221 = arith.truncf %220 : vector<1x128xf32> to vector<1x128xbf16>
    %c31 = arith.constant 31 : index
    %c0_121 = arith.constant 0 : index
    %c0_122 = arith.constant 0 : index
    %222 = vector.load %arg4[%c31, %c0_121, %c0_122] : memref<36x128x128xbf16, #tpu.memory_space<vmem>>, vector<1x128x128xbf16>
    %223 = vector.shape_cast %222 : vector<1x128x128xbf16> to vector<128x128xbf16>
    %cst_123 = arith.constant dense<0.000000e+00> : vector<1x128xf32>
    %224 = tpu.matmul %221, %223, %cst_123 {dimension_numbers = #tpu.dot_dimension_numbers<[1], [0], [0], [1], [0, 0, 1, 1], [], []>} : vector<1x128xbf16>, vector<128x128xbf16>, vector<1x128xf32> -> vector<1x128xf32>
    %225 = arith.addf %219, %224 : vector<1x128xf32>
    %226 = vector.extract_strided_slice %32 {offsets = [32, 0], sizes = [1, 128], strides = [1, 1]} : vector<36x128xf32> to vector<1x128xf32>
    %227 = arith.truncf %226 : vector<1x128xf32> to vector<1x128xbf16>
    %c32 = arith.constant 32 : index
    %c0_124 = arith.constant 0 : index
    %c0_125 = arith.constant 0 : index
    %228 = vector.load %arg4[%c32, %c0_124, %c0_125] : memref<36x128x128xbf16, #tpu.memory_space<vmem>>, vector<1x128x128xbf16>
    %229 = vector.shape_cast %228 : vector<1x128x128xbf16> to vector<128x128xbf16>
    %cst_126 = arith.constant dense<0.000000e+00> : vector<1x128xf32>
    %230 = tpu.matmul %227, %229, %cst_126 {dimension_numbers = #tpu.dot_dimension_numbers<[1], [0], [0], [1], [0, 0, 1, 1], [], []>} : vector<1x128xbf16>, vector<128x128xbf16>, vector<1x128xf32> -> vector<1x128xf32>
    %231 = arith.addf %225, %230 : vector<1x128xf32>
    %232 = vector.extract_strided_slice %32 {offsets = [33, 0], sizes = [1, 128], strides = [1, 1]} : vector<36x128xf32> to vector<1x128xf32>
    %233 = arith.truncf %232 : vector<1x128xf32> to vector<1x128xbf16>
    %c33 = arith.constant 33 : index
    %c0_127 = arith.constant 0 : index
    %c0_128 = arith.constant 0 : index
    %234 = vector.load %arg4[%c33, %c0_127, %c0_128] : memref<36x128x128xbf16, #tpu.memory_space<vmem>>, vector<1x128x128xbf16>
    %235 = vector.shape_cast %234 : vector<1x128x128xbf16> to vector<128x128xbf16>
    %cst_129 = arith.constant dense<0.000000e+00> : vector<1x128xf32>
    %236 = tpu.matmul %233, %235, %cst_129 {dimension_numbers = #tpu.dot_dimension_numbers<[1], [0], [0], [1], [0, 0, 1, 1], [], []>} : vector<1x128xbf16>, vector<128x128xbf16>, vector<1x128xf32> -> vector<1x128xf32>
    %237 = arith.addf %231, %236 : vector<1x128xf32>
    %238 = vector.extract_strided_slice %32 {offsets = [34, 0], sizes = [1, 128], strides = [1, 1]} : vector<36x128xf32> to vector<1x128xf32>
    %239 = arith.truncf %238 : vector<1x128xf32> to vector<1x128xbf16>
    %c34 = arith.constant 34 : index
    %c0_130 = arith.constant 0 : index
    %c0_131 = arith.constant 0 : index
    %240 = vector.load %arg4[%c34, %c0_130, %c0_131] : memref<36x128x128xbf16, #tpu.memory_space<vmem>>, vector<1x128x128xbf16>
    %241 = vector.shape_cast %240 : vector<1x128x128xbf16> to vector<128x128xbf16>
    %cst_132 = arith.constant dense<0.000000e+00> : vector<1x128xf32>
    %242 = tpu.matmul %239, %241, %cst_132 {dimension_numbers = #tpu.dot_dimension_numbers<[1], [0], [0], [1], [0, 0, 1, 1], [], []>} : vector<1x128xbf16>, vector<128x128xbf16>, vector<1x128xf32> -> vector<1x128xf32>
    %243 = arith.addf %237, %242 : vector<1x128xf32>
    %244 = vector.extract_strided_slice %32 {offsets = [35, 0], sizes = [1, 128], strides = [1, 1]} : vector<36x128xf32> to vector<1x128xf32>
    %245 = arith.truncf %244 : vector<1x128xf32> to vector<1x128xbf16>
    %c35 = arith.constant 35 : index
    %c0_133 = arith.constant 0 : index
    %c0_134 = arith.constant 0 : index
    %246 = vector.load %arg4[%c35, %c0_133, %c0_134] : memref<36x128x128xbf16, #tpu.memory_space<vmem>>, vector<1x128x128xbf16>
    %247 = vector.shape_cast %246 : vector<1x128x128xbf16> to vector<128x128xbf16>
    %cst_135 = arith.constant dense<0.000000e+00> : vector<1x128xf32>
    %248 = tpu.matmul %245, %247, %cst_135 {dimension_numbers = #tpu.dot_dimension_numbers<[1], [0], [0], [1], [0, 0, 1, 1], [], []>} : vector<1x128xbf16>, vector<128x128xbf16>, vector<1x128xf32> -> vector<1x128xf32>
    %249 = arith.addf %243, %248 : vector<1x128xf32>
    %c0_136 = arith.constant 0 : index
    %c0_137 = arith.constant 0 : index
    %250 = vector.load %arg5[%c0_136, %c0_137] : memref<1x128xf32, #tpu.memory_space<vmem>>, vector<1x128xf32>
    %251 = arith.addf %249, %250 : vector<1x128xf32>
    %c0_138 = arith.constant 0 : index
    %c0_139 = arith.constant 0 : index
    %c0_140 = arith.constant 0 : index
    %252 = vector.load %arg6[%c0_138, %c0_139, %c0_140] : memref<1x1x128xf32, #tpu.memory_space<vmem>>, vector<1x1x128xf32>
    %253 = vector.shape_cast %252 : vector<1x1x128xf32> to vector<1x128xf32>
    %254 = vector.shape_cast %251 : vector<1x128xf32> to vector<1x1x128xf32>
    tpu.vector_store %arg6[%c0_138, %c0_139, %c0_140], %254 {strides = array<i32>} : memref<1x1x128xf32, #tpu.memory_space<vmem>>, vector<1x1x128xf32>,
    return
  }
  func.func @transform_0(%arg0: i32) -> (i32, i32, i32, i32) {
    %c0_i32 = arith.constant 0 : i32
    %c0_i32_0 = arith.constant 0 : i32
    %c0_i32_1 = arith.constant 0 : i32
    %c0_i32_2 = arith.constant 0 : i32
    return %arg0, %c0_i32, %c0_i32_0, %c0_i32_1 : i32, i32, i32, i32
  }
  func.func @transform_1(%arg0: i32) -> (i32, i32) {
    %c0_i32 = arith.constant 0 : i32
    %c0_i32_0 = arith.constant 0 : i32
    %c0_i32_1 = arith.constant 0 : i32
    return %c0_i32, %c0_i32_0 : i32, i32
  }
  func.func @transform_2(%arg0: i32) -> (i32, i32) {
    %c0_i32 = arith.constant 0 : i32
    %c0_i32_0 = arith.constant 0 : i32
    %c0_i32_1 = arith.constant 0 : i32
    return %c0_i32, %c0_i32_0 : i32, i32
  }
  func.func @transform_3(%arg0: i32) -> (i32, i32, i32) {
    %c0_i32 = arith.constant 0 : i32
    %c0_i32_0 = arith.constant 0 : i32
    %c0_i32_1 = arith.constant 0 : i32
    %c0_i32_2 = arith.constant 0 : i32
    return %c0_i32, %c0_i32_0, %c0_i32_1 : i32, i32, i32
  }
  func.func @transform_4(%arg0: i32) -> (i32, i32) {
    %c0_i32 = arith.constant 0 : i32
    %c0_i32_0 = arith.constant 0 : i32
    %c0_i32_1 = arith.constant 0 : i32
    return %c0_i32, %c0_i32_0 : i32, i32
  }
  func.func @transform_5(%arg0: i32) -> (i32, i32, i32) {
    %c0_i32 = arith.constant 0 : i32
    %c0_i32_0 = arith.constant 0 : i32
    %c0_i32_1 = arith.constant 0 : i32
    return %arg0, %c0_i32, %c0_i32_0 : i32, i32, i32
  }
}

</mosaic_0001>

<llo_original>
// kernel: mlleaks_cnn_forward.1
$region0: #{mlleaks_cnn_forward.1}
  #allocation0 [shape = 'u32[]', space=smem, size = 0x4, offset = 0x4, fixed_abs, tag = 'smem constant byte address 0x4 - core index']
  #allocation1 [shape = 'u32[72,128]{1,0:T(1,128)}', space=vmem, size = 0x9000, scoped, tag = 'internal scratch']
  %s0 = inlined_call_operand.vmem [shape: bf16[2,4,36,288], index: 0, kind: input, shape index: {}]
  %s1 = inlined_call_operand.vmem [shape: bf16[288,128], index: 1, kind: input, shape index: {}]
  %s2 = inlined_call_operand.vmem [shape: f32[1,128], index: 2, kind: input, shape index: {}]
  %s3 = inlined_call_operand.vmem [shape: bf16[36,128,128], index: 3, kind: input, shape index: {}]
  %s4 = inlined_call_operand.vmem [shape: f32[1,128], index: 4, kind: input, shape index: {}]
  %s5 = inlined_call_operand.hbm [shape: f32[2,1,128], index: 5, kind: output, shape index: {}]
  %s6 = sld [smem:[#allocation0]]
  $region53: #{mlleaks_cnn_forward.1} parent=0
    _
  %s8 = ssub.s32 1, %s6
  %s9 = scalar_select 0, %s8, %s6
  $region1: #{mlleaks_cnn_forward.1} parent=0
    #allocation2 [shape = 'u8[1024]{0}', space=vmem, size = 0x400, scoped, tag = 'output window, operand 0']
    #allocation3 [shape = 's32[2]{0}', space=sflag, size = 0x8, scoped, tag = 'scoped memory for mlleaks_cnn_forward.1']
    %10 = vsyncpa [#allocation3], 0
    %s11 = scalar_lea.sflag [#allocation3], 1
    %12 = vsyncpa %s11, 0
    loop: start=0, step=1, limit=4
    $region2: #{mlleaks_cnn_forward.1} parent=1 // loop_pre_header
      _
    $region3: #{mlleaks_cnn_forward.1} parent=1 // loop_header
      %s14 = sphi 0, %s18
      %p15 = scmp.ge.s32.totalorder %s14, 4
      %s24 = sphi 0, %s26
      %s27 = sphi 0, %s24
      %s28 = sphi 0, %s27
      %s44 = sphi 0, %s28
      %s48 = sphi 0, %s48
      %s50 = sphi 0, %s48
      %s51 = sphi 0, %s50
      %s65 = sphi 0, %s51
      %s69 = sphi 0, %s69
      %s71 = sphi 0, %s69
      %s72 = sphi 0, %s71
      %s86 = sphi 0, %s72
      %s90 = sphi 0, %s90
      %s92 = sphi 0, %s90
      %s93 = sphi 0, %s92
      %s107 = sphi 0, %s93
      %s111 = sphi 0, %s111
      %s113 = sphi 0, %s111
      %s114 = sphi 0, %s113
      %s128 = sphi 0, %s114
      %s134 = sphi 0, %s136
      %s137 = sphi 0, %s134
      %s138 = sphi 0, %s137
      %s154 = sphi 0, %s138
    $region4: #{mlleaks_cnn_forward.1} parent=1 // loop_header_branch
      %17 = sbr.rel (%p15) target = $region8
    $region5: #{mlleaks_cnn_forward.1} parent=1 // loop_body
      %s19 = ssub.s32 %s14, 1
      %s20 = ssub.s32 %s14, 2
      %s21 = sadd.s32 %s14, 1
      %s22 = ssub.s32 %s14, %s21
      %p23 = scmp.eq.s32.totalorder %s22, 0
      %s25 = sadd.s32 %s24, 1
      %s26 = scalar_select %p23, %s24, %s25
      %p29 = pneg %p23
      %p30 = scmp.eq.s32.totalorder %s14, 1
      %p31 = por %p29, %p30
      %p32 = scmp.ne.s32.totalorder %s24, %s27
      %p33 = scmp.eq.s32.totalorder %s14, 0
      %p34 = por %p32, %p33
      %p35 = scmp.ne.s32.totalorder %s24, %s27
      %p36 = scmp.eq.s32.totalorder %s19, 1
      %p37 = por %p35, %p36
      %p38 = scmp.ne.s32.totalorder %s27, %s28
      %p39 = scmp.eq.s32.totalorder %s19, 0
      %p40 = por %p38, %p39
      %p41 = scmp.ne.s32.totalorder %s27, %s28
      %p42 = scmp.eq.s32.totalorder %s20, 1
      %p43 = por %p41, %p42
      %p45 = scmp.ne.s32.totalorder %s28, %s44
      %p46 = scmp.eq.s32.totalorder %s20, 0
      %p47 = por %p45, %p46
      %s49 = sadd.s32 %s48, 1
      %p52 = scmp.eq.s32.totalorder %s14, 1
      %p53 = scmp.ne.s32.totalorder %s48, %s50
      %p54 = scmp.eq.s32.totalorder %s14, 0
      %p55 = por %p53, %p54
      %p56 = scmp.ne.s32.totalorder %s48, %s50
      %p57 = scmp.eq.s32.totalorder %s19, 1
      %p58 = por %p56, %p57
      %p59 = scmp.ne.s32.totalorder %s50, %s51
      %p60 = scmp.eq.s32.totalorder %s19, 0
      %p61 = por %p59, %p60
      %p62 = scmp.ne.s32.totalorder %s50, %s51
      %p63 = scmp.eq.s32.totalorder %s20, 1
      %p64 = por %p62, %p63
      %p66 = scmp.ne.s32.totalorder %s51, %s65
      %p67 = scmp.eq.s32.totalorder %s20, 0
      %p68 = por %p66, %p67
      %s70 = sadd.s32 %s69, 1
      %p73 = scmp.eq.s32.totalorder %s14, 1
      %p74 = scmp.ne.s32.totalorder %s69, %s71
      %p75 = scmp.eq.s32.totalorder %s14, 0
      %p76 = por %p74, %p75
      %p77 = scmp.ne.s32.totalorder %s69, %s71
      %p78 = scmp.eq.s32.totalorder %s19, 1
      %p79 = por %p77, %p78
      %p80 = scmp.ne.s32.totalorder %s71, %s72
      %p81 = scmp.eq.s32.totalorder %s19, 0
      %p82 = por %p80, %p81
      %p83 = scmp.ne.s32.totalorder %s71, %s72
      %p84 = scmp.eq.s32.totalorder %s20, 1
      %p85 = por %p83, %p84
      %p87 = scmp.ne.s32.totalorder %s72, %s86
      %p88 = scmp.eq.s32.totalorder %s20, 0
      %p89 = por %p87, %p88
      %s91 = sadd.s32 %s90, 1
      %p94 = scmp.eq.s32.totalorder %s14, 1
      %p95 = scmp.ne.s32.totalorder %s90, %s92
      %p96 = scmp.eq.s32.totalorder %s14, 0
      %p97 = por %p95, %p96
      %p98 = scmp.ne.s32.totalorder %s90, %s92
      %p99 = scmp.eq.s32.totalorder %s19, 1
      %p100 = por %p98, %p99
      %p101 = scmp.ne.s32.totalorder %s92, %s93
      %p102 = scmp.eq.s32.totalorder %s19, 0
      %p103 = por %p101, %p102
      %p104 = scmp.ne.s32.totalorder %s92, %s93
      %p105 = scmp.eq.s32.totalorder %s20, 1
      %p106 = por %p104, %p105
      %p108 = scmp.ne.s32.totalorder %s93, %s107
      %p109 = scmp.eq.s32.totalorder %s20, 0
      %p110 = por %p108, %p109
      %s112 = sadd.s32 %s111, 1
      %p115 = scmp.eq.s32.totalorder %s14, 1
      %p116 = scmp.ne.s32.totalorder %s111, %s113
      %p117 = scmp.eq.s32.totalorder %s14, 0
      %p118 = por %p116, %p117
      %p119 = scmp.ne.s32.totalorder %s111, %s113
      %p120 = scmp.eq.s32.totalorder %s19, 1
      %p121 = por %p119, %p120
      %p122 = scmp.ne.s32.totalorder %s113, %s114
      %p123 = scmp.eq.s32.totalorder %s19, 0
      %p124 = por %p122, %p123
      %p125 = scmp.ne.s32.totalorder %s113, %s114
      %p126 = scmp.eq.s32.totalorder %s20, 1
      %p127 = por %p125, %p126
      %p129 = scmp.ne.s32.totalorder %s114, %s128
      %p130 = scmp.eq.s32.totalorder %s20, 0
      %p131 = por %p129, %p130
      %s132 = ssub.s32 %s14, %s21
      %p133 = scmp.eq.s32.totalorder %s132, 0
      %s135 = sadd.s32 %s134, 1
      %s136 = scalar_select %p133, %s134, %s135
      %p139 = pneg %p133
      %p140 = scmp.eq.s32.totalorder %s14, 1
      %p141 = por %p139, %p140
      %p142 = scmp.ne.s32.totalorder %s134, %s137
      %p143 = scmp.eq.s32.totalorder %s14, 0
      %p144 = por %p142, %p143
      %p145 = scmp.ne.s32.totalorder %s134, %s137
      %p146 = scmp.eq.s32.totalorder %s19, 1
      %p147 = por %p145, %p146
      %p148 = scmp.ne.s32.totalorder %s137, %s138
      %p149 = scmp.eq.s32.totalorder %s19, 0
      %p150 = por %p148, %p149
      %p151 = scmp.ne.s32.totalorder %s137, %s138
      %p152 = scmp.eq.s32.totalorder %s20, 1
      %p153 = por %p151, %p152
      %p155 = scmp.ne.s32.totalorder %s138, %s154
      %p156 = scmp.eq.s32.totalorder %s20, 0
      %p157 = por %p155, %p156
      %p158 = scmp.le.s32.totalorder 1, %s14
      %p159 = scmp.lt.s32.totalorder %s14, 3
      %p160 = pnand %p158, %p159
      %p161 = pneg %p160
      // Predicated region
      $region9: #{mlleaks_cnn_forward.1} parent=5 // pred_check
        _
      $region10: #{mlleaks_cnn_forward.1} parent=5 // pred_check_branch
        %163 = sbr.rel (%p160) target = $region12
      $region11: #{mlleaks_cnn_forward.1} parent=5 // pred_region
        %s164 = ssub.s32 %s14, 1
        // Predicated region
        $region13: #{mlleaks_cnn_forward.1} parent=11 // pred_check
          %p165 = pneg %p61
        $region14: #{mlleaks_cnn_forward.1} parent=11 // pred_check_branch
          %167 = sbr.rel (%p165) target = $region16
        $region15: #{mlleaks_cnn_forward.1} parent=11 // pred_region
          _
        $region16: #{mlleaks_cnn_forward.1} parent=11 // pred_fallthru
          _
        // Predicated region
        $region17: #{mlleaks_cnn_forward.1} parent=11 // pred_check
          %p168 = pneg %p82
        $region18: #{mlleaks_cnn_forward.1} parent=11 // pred_check_branch
          %170 = sbr.rel (%p168) target = $region20
        $region19: #{mlleaks_cnn_forward.1} parent=11 // pred_region
          _
        $region20: #{mlleaks_cnn_forward.1} parent=11 // pred_fallthru
          _
        // Predicated region
        $region21: #{mlleaks_cnn_forward.1} parent=11 // pred_check
          %p171 = pneg %p103
        $region22: #{mlleaks_cnn_forward.1} parent=11 // pred_check_branch
          %173 = sbr.rel (%p171) target = $region24
        $region23: #{mlleaks_cnn_forward.1} parent=11 // pred_region
          _
        $region24: #{mlleaks_cnn_forward.1} parent=11 // pred_fallthru
          _
        // Predicated region
        $region25: #{mlleaks_cnn_forward.1} parent=11 // pred_check
          %p174 = pneg %p124
        $region26: #{mlleaks_cnn_forward.1} parent=11 // pred_check_branch
          %176 = sbr.rel (%p174) target = $region28
        $region27: #{mlleaks_cnn_forward.1} parent=11 // pred_region
          _
        $region28: #{mlleaks_cnn_forward.1} parent=11 // pred_fallthru
          _
      $region12: #{mlleaks_cnn_forward.1} parent=5 // pred_fallthru
        _
      %p177 = scmp.lt.s32.totalorder %s14, 2
      // Predicated region
      $region29: #{mlleaks_cnn_forward.1} parent=5 // pred_check
        %p178 = pneg %p177
      $region30: #{mlleaks_cnn_forward.1} parent=5 // pred_check_branch
        %180 = sbr.rel (%p178) target = $region32
      $region31: #{mlleaks_cnn_forward.1} parent=5 // pred_region
        // Predicated region
        $region33: #{mlleaks_cnn_forward.1} parent=31 // pred_check
          %p181 = pneg %p34
        $region34: #{mlleaks_cnn_forward.1} parent=31 // pred_check_branch
          %183 = sbr.rel (%p181) target = $region36
        $region35: #{mlleaks_cnn_forward.1} parent=31 // pred_region
          %p184 = scmp.lt.s32.totalorder %s14, 1
          %s185 = scalar_select %p184, %s14, 1
          %s186 = smul.addr %s185, 60
          %s187 = smul.addr %s186, 4
          %s188 = scalar_lea.vmem %s0, %s187
        $region36: #{mlleaks_cnn_forward.1} parent=31 // pred_fallthru
          _
      $region32: #{mlleaks_cnn_forward.1} parent=5 // pred_fallthru
        _
      %p189 = scmp.le.s32.totalorder 1, %s14
      %p190 = scmp.lt.s32.totalorder %s14, 3
      %p191 = pnand %p189, %p190
      %p192 = pneg %p191
      // Predicated region
      $region37: #{mlleaks_cnn_forward.1} parent=5 // pred_check
        _
      $region38: #{mlleaks_cnn_forward.1} parent=5 // pred_check_branch
        %194 = sbr.rel (%p191) target = $region40
      $region39: #{mlleaks_cnn_forward.1} parent=5 // pred_region
        %s195 = ssub.s32 %s14, 1
        %p196 = scmp.lt.s32.totalorder %s19, 1
        %s197 = scalar_select %p196, %s19, 1
        %s198 = smul.addr %s197, 60
        %s199 = smul.addr %s198, 4
        %s200 = scalar_lea.vmem %s0, %s199
        %p201 = pneg %p40
        %p202 = pneg %p37
        %p203 = pneg %p61
        %p204 = pneg %p58
        %p205 = pneg %p82
        %p206 = pneg %p79
        %p207 = pneg %p103
        %p208 = pneg %p100
        %p209 = pneg %p124
        %p210 = pneg %p121
        %p211 = pneg %p150
        %p212 = pneg %p147
        %s213 = sand.u32 %s137, 1
        %s214 = scalar_lea.sflag [#allocation3], %s213
        %s215 = sand.u32 %s137, 1
        %s216 = scalar_lea.vmem [#allocation2], %s215
        %p217 = scmp.lt.s32.totalorder %s19, 1
        %s218 = scalar_select %p217, %s19, 1
        %s219 = smul.addr %s218, 60
        %s220 = smul.addr %s219, 4
        %s221 = scalar_lea.vmem %s0, %s220
        %v223 = vld [vmem:[%s1] sm:$0xf]
        %v224 = vld [vmem:[%s1 + $0x4] sm:$0xf]
        %v225 = vld [vmem:[%s1 + $0x8] sm:$0xf]
        %v226 = vld [vmem:[%s1 + $0xc] sm:$0xf]
        %v227 = vld [vmem:[%s1 + $0x10] sm:$0xf]
        %v228 = vld [vmem:[%s1 + $0x14] sm:$0xf]
        %v229 = vld [vmem:[%s1 + $0x18] sm:$0xf]
        %v230 = vld [vmem:[%s1 + $0x1c] sm:$0xf]
        %v231 = vld [vmem:[%s1 + $0x20] sm:$0xf]
        %v232 = vld [vmem:[%s1 + $0x24] sm:$0xf]
        %v233 = vld [vmem:[%s1 + $0x28] sm:$0xf]
        %v234 = vld [vmem:[%s1 + $0x2c] sm:$0xf]
        %v235 = vld [vmem:[%s1 + $0x30] sm:$0xf]
        %v236 = vld [vmem:[%s1 + $0x34] sm:$0xf]
        %v237 = vld [vmem:[%s1 + $0x38] sm:$0xf]
        %v238 = vld [vmem:[%s1 + $0x3c] sm:$0xf]
        %v239 = vld [vmem:[%s1 + $0x40] sm:$0xf]
        %v240 = vld [vmem:[%s1 + $0x44] sm:$0xf]
        %v241 = vld [vmem:[%s1 + $0x48] sm:$0xf]
        %v242 = vld [vmem:[%s1 + $0x4c] sm:$0xf]
        %v243 = vld [vmem:[%s1 + $0x50] sm:$0xf]
        %v244 = vld [vmem:[%s1 + $0x54] sm:$0xf]
        %v245 = vld [vmem:[%s1 + $0x58] sm:$0xf]
        %v246 = vld [vmem:[%s1 + $0x5c] sm:$0xf]
        %v247 = vld [vmem:[%s1 + $0x60] sm:$0xf]
        %v248 = vld [vmem:[%s1 + $0x64] sm:$0xf]
        %v249 = vld [vmem:[%s1 + $0x68] sm:$0xf]
        %v250 = vld [vmem:[%s1 + $0x6c] sm:$0xf]
        %v251 = vld [vmem:[%s1 + $0x70] sm:$0xf]
        %v252 = vld [vmem:[%s1 + $0x74] sm:$0xf]
        %v253 = vld [vmem:[%s1 + $0x78] sm:$0xf]
        %v254 = vld [vmem:[%s1 + $0x7c] sm:$0xf]
        %v255 = vld [vmem:[%s1 + $0x80] sm:$0xf]
        %v256 = vld [vmem:[%s1 + $0x84] sm:$0xf]
        %v257 = vld [vmem:[%s1 + $0x88] sm:$0xf]
        %v258 = vld [vmem:[%s1 + $0x8c] sm:$0xf]
        %v259 = vld [vmem:[%s2] sm:$0x1]
        %v260 = vld [vmem:[%s221] sm:$0xff]
        %v261 = vld [vmem:[%s221 + $0x8] sm:$0xf]
        %v262 = vld [vmem:[%s221 + $0xc] sm:$0xff]
        %v263 = vld [vmem:[%s221 + $0x14] sm:$0xf]
        %v264 = vld [vmem:[%s221 + $0x18] sm:$0xff]
        %v265 = vld [vmem:[%s221 + $0x20] sm:$0xf]
        %v266 = vld [vmem:[%s221 + $0x24] sm:$0xff]
        %v267 = vld [vmem:[%s221 + $0x2c] sm:$0xf]
        %v268 = vld [vmem:[%s221 + $0x30] sm:$0x33]
        %v269 = vld [vmem:[%s221 + $0x38] sm:$0x3]
        %v271 = vperm.slane %v259, 0
        %v283 = vunpack.c.l.b16 %v260
        %v284 = vunpack.c.h.b16 %v260
        %v285 = vunpack.c.l.b16 %v261
        %v286 = vunpack.c.l.b16 %v262
        %v287 = vunpack.c.h.b16 %v262
        %v288 = vunpack.c.l.b16 %v263
        %v289 = vunpack.c.l.b16 %v264
        %v290 = vunpack.c.h.b16 %v264
        %v291 = vunpack.c.l.b16 %v265
        %v292 = vunpack.c.l.b16 %v266
        %v293 = vunpack.c.h.b16 %v266
        %v294 = vunpack.c.l.b16 %v267
        %v295 = vunpack.c.l.b16 %v268
        %v296 = vunpack.c.h.b16 %v268
        %v297 = vunpack.c.l.b16 %v269
        %v298 = vpack.c.b16 %v286, %v283
        %v299 = vpack.c.b16 %v287, %v284
        %v300 = vpack.c.b16 %v288, %v285
        %v301 = vpack.c.b16 %v292, %v289
        %v302 = vpack.c.b16 %v293, %v290
        %v303 = vpack.c.b16 %v294, %v291
        %v304 = vpack.c.b16 %v295, %v295
        %v305 = vpack.c.b16 %v296, %v296
        %v306 = vpack.c.b16 %v297, %v297
        %v349 = vunpack.c.l.b16 %v223
        %v350 = vunpack.c.l.b16 %v224
        %v351 = vunpack.c.l.b16 %v225
        %v352 = vunpack.c.l.b16 %v226
        %v353 = vunpack.c.l.b16 %v227
        %v354 = vunpack.c.l.b16 %v228
        %v355 = vunpack.c.l.b16 %v229
        %v356 = vunpack.c.l.b16 %v230
        %v357 = vunpack.c.l.b16 %v231
        %v358 = vunpack.c.l.b16 %v232
        %v359 = vunpack.c.l.b16 %v233
        %v360 = vunpack.c.l.b16 %v234
        %v361 = vunpack.c.l.b16 %v235
        %v362 = vunpack.c.l.b16 %v236
        %v363 = vunpack.c.l.b16 %v237
        %v364 = vunpack.c.l.b16 %v238
        %v365 = vunpack.c.l.b16 %v239
        %v366 = vunpack.c.l.b16 %v240
        %v367 = vunpack.c.l.b16 %v241
        %v368 = vunpack.c.l.b16 %v242
        %v369 = vunpack.c.l.b16 %v243
        %v370 = vunpack.c.l.b16 %v244
        %v371 = vunpack.c.l.b16 %v245
        %v372 = vunpack.c.l.b16 %v246
        %v373 = vunpack.c.l.b16 %v247
        %v374 = vunpack.c.l.b16 %v248
        %v375 = vunpack.c.l.b16 %v249
        %v376 = vunpack.c.l.b16 %v250
        %v377 = vunpack.c.l.b16 %v251
        %v378 = vunpack.c.l.b16 %v252
        %v379 = vunpack.c.l.b16 %v253
        %v380 = vunpack.c.l.b16 %v254
        %v381 = vunpack.c.l.b16 %v255
        %v382 = vunpack.c.l.b16 %v256
        %v383 = vunpack.c.l.b16 %v257
        %v384 = vunpack.c.l.b16 %v258
        %v385 = vpack.c.b16 %v350, %v349
        %v386 = vpack.c.b16 %v352, %v351
        %v387 = vpack.c.b16 %v354, %v353
        %v388 = vpack.c.b16 %v356, %v355
        %v389 = vpack.c.b16 %v358, %v357
        %v390 = vpack.c.b16 %v360, %v359
        %v391 = vpack.c.b16 %v362, %v361
        %v392 = vpack.c.b16 %v364, %v363
        %v393 = vpack.c.b16 %v366, %v365
        %v394 = vpack.c.b16 %v368, %v367
        %v395 = vpack.c.b16 %v370, %v369
        %v396 = vpack.c.b16 %v372, %v371
        %v397 = vpack.c.b16 %v374, %v373
        %v398 = vpack.c.b16 %v376, %v375
        %v399 = vpack.c.b16 %v378, %v377
        %v400 = vpack.c.b16 %v380, %v379
        %v401 = vpack.c.b16 %v382, %v381
        %v402 = vpack.c.b16 %v384, %v383
        %vm421 = vcmask 261120
        %v423 = vsel %vm421, %v300, 0
        %v426 = vsel %vm421, %v303, 0
        %v429 = vsel %vm421, %v306, 0
        %431 = vmatpush.bf16.msra.mxu0 %v392
        %432 = vmatpush.bf16.msra.mxu0 %v391
        %433 = vmatpush.bf16.msra.mxu0 %v390
        %434 = vmatpush.bf16.msra.mxu0 %v389
        %435 = vmatpush.bf16.msra.mxu0 %v388
        %436 = vmatpush.bf16.msra.mxu0 %v387
        %437 = vmatpush.bf16.msra.mxu0 %v386
        %438 = vmatpush.bf16.msra.mxu0 %v385
        %439 = vmatmul.bf16.gmra.mxu0 %v298
        %v440 = vpop.f32.mrf.mxu0
        %v441 = vadd.f32 %v271, %v440
        %v442 = vpop.f32.mrf.mxu0
        %v443 = vadd.f32 %v271, %v442
        %444 = vmatmul.bf16.gmra.mxu0 %v301
        %v445 = vpop.f32.mrf.mxu0
        %v446 = vadd.f32 %v271, %v445
        %v447 = vpop.f32.mrf.mxu0
        %v448 = vadd.f32 %v271, %v447
        %449 = vmatmul.bf16.gmra.mxu0 %v304
        %v450 = vpop.f32.mrf.mxu0
        %v451 = vadd.f32 %v271, %v450
        %v452 = vpop.f32.mrf.mxu0
        %453 = vdwg.mxu0
        %454 = vmatpush.bf16.msra.mxu0 %v400
        %455 = vmatpush.bf16.msra.mxu0 %v399
        %456 = vmatpush.bf16.msra.mxu0 %v398
        %457 = vmatpush.bf16.msra.mxu0 %v397
        %458 = vmatpush.bf16.msra.mxu0 %v396
        %459 = vmatpush.bf16.msra.mxu0 %v395
        %460 = vmatpush.bf16.msra.mxu0 %v394
        %461 = vmatpush.bf16.msra.mxu0 %v393
        %462 = vmatmul.bf16.gmra.mxu0 %v299
        %v463 = vpop.f32.mrf.mxu0
        %v464 = vadd.f32 %v441, %v463
        %v465 = vpop.f32.mrf.mxu0
        %v466 = vadd.f32 %v443, %v465
        %467 = vmatmul.bf16.gmra.mxu0 %v302
        %v468 = vpop.f32.mrf.mxu0
        %v469 = vadd.f32 %v446, %v468
        %v470 = vpop.f32.mrf.mxu0
        %v471 = vadd.f32 %v448, %v470
        %472 = vmatmul.bf16.gmra.mxu0 %v305
        %v473 = vpop.f32.mrf.mxu0
        %v474 = vadd.f32 %v451, %v473
        %v475 = vpop.f32.mrf.mxu0
        %476 = vdwg.mxu0
        %477 = vmatpush.bf16.msra.mxu0 0
        %478 = vmatpush.bf16.msra.mxu0 0
        %479 = vmatpush.bf16.msra.mxu0 0
        %480 = vmatpush.bf16.msra.mxu0 0
        %481 = vmatpush.bf16.msra.mxu0 0
        %482 = vmatpush.bf16.msra.mxu0 0
        %483 = vmatpush.bf16.msra.mxu0 %v402
        %484 = vmatpush.bf16.msra.mxu0 %v401
        %485 = vmatmul.bf16.gmra.mxu0 %v423
        %v486 = vpop.f32.mrf.mxu0
        %v487 = vadd.f32 %v464, %v486
        %v488 = vpop.f32.mrf.mxu0
        %v489 = vadd.f32 %v466, %v488
        %490 = vmatmul.bf16.gmra.mxu0 %v426
        %v491 = vpop.f32.mrf.mxu0
        %v492 = vadd.f32 %v469, %v491
        %v493 = vpop.f32.mrf.mxu0
        %v494 = vadd.f32 %v471, %v493
        %495 = vmatmul.bf16.gmra.mxu0 %v429
        %v496 = vpop.f32.mrf.mxu0
        %v497 = vadd.f32 %v474, %v496
        %v498 = vpop.f32.mrf.mxu0
        %499 = vdwg.mxu0
        %v500 = vmax.f32 %v487, 0.0
        %v501 = vmax.f32 %v489, 0.0
        %v502 = vmax.f32 %v492, 0.0
        %v503 = vmax.f32 %v494, 0.0
        %v504 = vmax.f32 %v497, 0.0
        %s505 = scalar_lea.vmem %s221, 60
        %v506 = vld [vmem:[%s505] sm:$0xff]
        %v507 = vld [vmem:[%s505 + $0x8] sm:$0xf]
        %v508 = vld [vmem:[%s505 + $0xc] sm:$0xff]
        %v509 = vld [vmem:[%s505 + $0x14] sm:$0xf]
        %v510 = vld [vmem:[%s505 + $0x18] sm:$0xff]
        %v511 = vld [vmem:[%s505 + $0x20] sm:$0xf]
        %v512 = vld [vmem:[%s505 + $0x24] sm:$0xff]
        %v513 = vld [vmem:[%s505 + $0x2c] sm:$0xf]
        %v514 = vld [vmem:[%s505 + $0x30] sm:$0x33]
        %v515 = vld [vmem:[%s505 + $0x38] sm:$0x3]
        %v526 = vunpack.c.l.b16 %v506
        %v527 = vunpack.c.h.b16 %v506
        %v528 = vunpack.c.l.b16 %v507
        %v529 = vunpack.c.l.b16 %v508
        %v530 = vunpack.c.h.b16 %v508
        %v531 = vunpack.c.l.b16 %v509
        %v532 = vunpack.c.l.b16 %v510
        %v533 = vunpack.c.h.b16 %v510
        %v534 = vunpack.c.l.b16 %v511
        %v535 = vunpack.c.l.b16 %v512
        %v536 = vunpack.c.h.b16 %v512
        %v537 = vunpack.c.l.b16 %v513
        %v538 = vunpack.c.l.b16 %v514
        %v539 = vunpack.c.h.b16 %v514
        %v540 = vunpack.c.l.b16 %v515
        %v541 = vpack.c.b16 %v529, %v526
        %v542 = vpack.c.b16 %v530, %v527
        %v543 = vpack.c.b16 %v531, %v528
        %v544 = vpack.c.b16 %v535, %v532
        %v545 = vpack.c.b16 %v536, %v533
        %v546 = vpack.c.b16 %v537, %v534
        %v547 = vpack.c.b16 %v538, %v538
        %v548 = vpack.c.b16 %v539, %v539
        %v549 = vpack.c.b16 %v540, %v540
        %v557 = vsel %vm421, %v543, 0
        %v560 = vsel %vm421, %v546, 0
        %v563 = vsel %vm421, %v549, 0
        %565 = vmatpush.bf16.msra.mxu0 %v392
        %566 = vmatpush.bf16.msra.mxu0 %v391
        %567 = vmatpush.bf16.msra.mxu0 %v390
        %568 = vmatpush.bf16.msra.mxu0 %v389
        %569 = vmatpush.bf16.msra.mxu0 %v388
        %570 = vmatpush.bf16.msra.mxu0 %v387
        %571 = vmatpush.bf16.msra.mxu0 %v386
        %572 = vmatpush.bf16.msra.mxu0 %v385
        %573 = vmatmul.bf16.gmra.mxu0 %v541
        %v574 = vpop.f32.mrf.mxu0
        %v575 = vadd.f32 %v271, %v574
        %v576 = vpop.f32.mrf.mxu0
        %v577 = vadd.f32 %v271, %v576
        %578 = vmatmul.bf16.gmra.mxu0 %v544
        %v579 = vpop.f32.mrf.mxu0
        %v580 = vadd.f32 %v271, %v579
        %v581 = vpop.f32.mrf.mxu0
        %v582 = vadd.f32 %v271, %v581
        %583 = vmatmul.bf16.gmra.mxu0 %v547
        %v584 = vpop.f32.mrf.mxu0
        %v585 = vadd.f32 %v271, %v584
        %v586 = vpop.f32.mrf.mxu0
        %587 = vdwg.mxu0
        %588 = vmatpush.bf16.msra.mxu0 %v400
        %589 = vmatpush.bf16.msra.mxu0 %v399
        %590 = vmatpush.bf16.msra.mxu0 %v398
        %591 = vmatpush.bf16.msra.mxu0 %v397
        %592 = vmatpush.bf16.msra.mxu0 %v396
        %593 = vmatpush.bf16.msra.mxu0 %v395
        %594 = vmatpush.bf16.msra.mxu0 %v394
        %595 = vmatpush.bf16.msra.mxu0 %v393
        %596 = vmatmul.bf16.gmra.mxu0 %v542
        %v597 = vpop.f32.mrf.mxu0
        %v598 = vadd.f32 %v575, %v597
        %v599 = vpop.f32.mrf.mxu0
        %v600 = vadd.f32 %v577, %v599
        %601 = vmatmul.bf16.gmra.mxu0 %v545
        %v602 = vpop.f32.mrf.mxu0
        %v603 = vadd.f32 %v580, %v602
        %v604 = vpop.f32.mrf.mxu0
        %v605 = vadd.f32 %v582, %v604
        %606 = vmatmul.bf16.gmra.mxu0 %v548
        %v607 = vpop.f32.mrf.mxu0
        %v608 = vadd.f32 %v585, %v607
        %v609 = vpop.f32.mrf.mxu0
        %610 = vdwg.mxu0
        %611 = vmatpush.bf16.msra.mxu0 0
        %612 = vmatpush.bf16.msra.mxu0 0
        %613 = vmatpush.bf16.msra.mxu0 0
        %614 = vmatpush.bf16.msra.mxu0 0
        %615 = vmatpush.bf16.msra.mxu0 0
        %616 = vmatpush.bf16.msra.mxu0 0
        %617 = vmatpush.bf16.msra.mxu0 %v402
        %618 = vmatpush.bf16.msra.mxu0 %v401
        %619 = vmatmul.bf16.gmra.mxu0 %v557
        %v620 = vpop.f32.mrf.mxu0
        %v621 = vadd.f32 %v598, %v620
        %v622 = vpop.f32.mrf.mxu0
        %v623 = vadd.f32 %v600, %v622
        %624 = vmatmul.bf16.gmra.mxu0 %v560
        %v625 = vpop.f32.mrf.mxu0
        %v626 = vadd.f32 %v603, %v625
        %v627 = vpop.f32.mrf.mxu0
        %v628 = vadd.f32 %v605, %v627
        %629 = vmatmul.bf16.gmra.mxu0 %v563
        %v630 = vpop.f32.mrf.mxu0
        %v631 = vadd.f32 %v608, %v630
        %v632 = vpop.f32.mrf.mxu0
        %633 = vdwg.mxu0
        %v634 = vmax.f32 %v621, 0.0
        %v635 = vmax.f32 %v623, 0.0
        %v636 = vmax.f32 %v626, 0.0
        %v637 = vmax.f32 %v628, 0.0
        %v638 = vmax.f32 %v631, 0.0
        %v639 = vmax.f32 %v500, %v634
        %v640 = vmax.f32 %v501, %v635
        %v641 = vmax.f32 %v502, %v636
        %v642 = vmax.f32 %v503, %v637
        %v643 = vmax.f32 %v504, %v638
        %s644 = scalar_lea.vmem %s221, 120
        %v645 = vld [vmem:[%s644] sm:$0xff]
        %v646 = vld [vmem:[%s644 + $0x8] sm:$0xf]
        %v647 = vld [vmem:[%s644 + $0xc] sm:$0xff]
        %v648 = vld [vmem:[%s644 + $0x14] sm:$0xf]
        %v649 = vld [vmem:[%s644 + $0x18] sm:$0xff]
        %v650 = vld [vmem:[%s644 + $0x20] sm:$0xf]
        %v651 = vld [vmem:[%s644 + $0x24] sm:$0xff]
        %v652 = vld [vmem:[%s644 + $0x2c] sm:$0xf]
        %v653 = vld [vmem:[%s644 + $0x30] sm:$0x33]
        %v654 = vld [vmem:[%s644 + $0x38] sm:$0x3]
        %v665 = vunpack.c.l.b16 %v645
        %v666 = vunpack.c.h.b16 %v645
        %v667 = vunpack.c.l.b16 %v646
        %v668 = vunpack.c.l.b16 %v647
        %v669 = vunpack.c.h.b16 %v647
        %v670 = vunpack.c.l.b16 %v648
        %v671 = vunpack.c.l.b16 %v649
        %v672 = vunpack.c.h.b16 %v649
        %v673 = vunpack.c.l.b16 %v650
        %v674 = vunpack.c.l.b16 %v651
        %v675 = vunpack.c.h.b16 %v651
        %v676 = vunpack.c.l.b16 %v652
        %v677 = vunpack.c.l.b16 %v653
        %v678 = vunpack.c.h.b16 %v653
        %v679 = vunpack.c.l.b16 %v654
        %v680 = vpack.c.b16 %v668, %v665
        %v681 = vpack.c.b16 %v669, %v666
        %v682 = vpack.c.b16 %v670, %v667
        %v683 = vpack.c.b16 %v674, %v671
        %v684 = vpack.c.b16 %v675, %v672
        %v685 = vpack.c.b16 %v676, %v673
        %v686 = vpack.c.b16 %v677, %v677
        %v687 = vpack.c.b16 %v678, %v678
        %v688 = vpack.c.b16 %v679, %v679
        %v696 = vsel %vm421, %v682, 0
        %v699 = vsel %vm421, %v685, 0
        %v702 = vsel %vm421, %v688, 0
        %704 = vmatpush.bf16.msra.mxu0 %v392
        %705 = vmatpush.bf16.msra.mxu0 %v391
        %706 = vmatpush.bf16.msra.mxu0 %v390
        %707 = vmatpush.bf16.msra.mxu0 %v389
        %708 = vmatpush.bf16.msra.mxu0 %v388
        %709 = vmatpush.bf16.msra.mxu0 %v387
        %710 = vmatpush.bf16.msra.mxu0 %v386
        %711 = vmatpush.bf16.msra.mxu0 %v385
        %712 = vmatmul.bf16.gmra.mxu0 %v680
        %v713 = vpop.f32.mrf.mxu0
        %v714 = vadd.f32 %v271, %v713
        %v715 = vpop.f32.mrf.mxu0
        %v716 = vadd.f32 %v271, %v715
        %717 = vmatmul.bf16.gmra.mxu0 %v683
        %v718 = vpop.f32.mrf.mxu0
        %v719 = vadd.f32 %v271, %v718
        %v720 = vpop.f32.mrf.mxu0
        %v721 = vadd.f32 %v271, %v720
        %722 = vmatmul.bf16.gmra.mxu0 %v686
        %v723 = vpop.f32.mrf.mxu0
        %v724 = vadd.f32 %v271, %v723
        %v725 = vpop.f32.mrf.mxu0
        %726 = vdwg.mxu0
        %727 = vmatpush.bf16.msra.mxu0 %v400
        %728 = vmatpush.bf16.msra.mxu0 %v399
        %729 = vmatpush.bf16.msra.mxu0 %v398
        %730 = vmatpush.bf16.msra.mxu0 %v397
        %731 = vmatpush.bf16.msra.mxu0 %v396
        %732 = vmatpush.bf16.msra.mxu0 %v395
        %733 = vmatpush.bf16.msra.mxu0 %v394
        %734 = vmatpush.bf16.msra.mxu0 %v393
        %735 = vmatmul.bf16.gmra.mxu0 %v681
        %v736 = vpop.f32.mrf.mxu0
        %v737 = vadd.f32 %v714, %v736
        %v738 = vpop.f32.mrf.mxu0
        %v739 = vadd.f32 %v716, %v738
        %740 = vmatmul.bf16.gmra.mxu0 %v684
        %v741 = vpop.f32.mrf.mxu0
        %v742 = vadd.f32 %v719, %v741
        %v743 = vpop.f32.mrf.mxu0
        %v744 = vadd.f32 %v721, %v743
        %745 = vmatmul.bf16.gmra.mxu0 %v687
        %v746 = vpop.f32.mrf.mxu0
        %v747 = vadd.f32 %v724, %v746
        %v748 = vpop.f32.mrf.mxu0
        %749 = vdwg.mxu0
        %750 = vmatpush.bf16.msra.mxu0 0
        %751 = vmatpush.bf16.msra.mxu0 0
        %752 = vmatpush.bf16.msra.mxu0 0
        %753 = vmatpush.bf16.msra.mxu0 0
        %754 = vmatpush.bf16.msra.mxu0 0
        %755 = vmatpush.bf16.msra.mxu0 0
        %756 = vmatpush.bf16.msra.mxu0 %v402
        %757 = vmatpush.bf16.msra.mxu0 %v401
        %758 = vmatmul.bf16.gmra.mxu0 %v696
        %v759 = vpop.f32.mrf.mxu0
        %v760 = vadd.f32 %v737, %v759
        %v761 = vpop.f32.mrf.mxu0
        %v762 = vadd.f32 %v739, %v761
        %763 = vmatmul.bf16.gmra.mxu0 %v699
        %v764 = vpop.f32.mrf.mxu0
        %v765 = vadd.f32 %v742, %v764
        %v766 = vpop.f32.mrf.mxu0
        %v767 = vadd.f32 %v744, %v766
        %768 = vmatmul.bf16.gmra.mxu0 %v702
        %v769 = vpop.f32.mrf.mxu0
        %v770 = vadd.f32 %v747, %v769
        %v771 = vpop.f32.mrf.mxu0
        %772 = vdwg.mxu0
        %v773 = vmax.f32 %v760, 0.0
        %v774 = vmax.f32 %v762, 0.0
        %v775 = vmax.f32 %v765, 0.0
        %v776 = vmax.f32 %v767, 0.0
        %v777 = vmax.f32 %v770, 0.0
        %v778 = vmax.f32 %v639, %v773
        %v779 = vmax.f32 %v640, %v774
        %v780 = vmax.f32 %v641, %v775
        %v781 = vmax.f32 %v642, %v776
        %v782 = vmax.f32 %v643, %v777
        %s783 = scalar_lea.vmem %s221, 180
        %v784 = vld [vmem:[%s783] sm:$0xff]
        %v785 = vld [vmem:[%s783 + $0x8] sm:$0xf]
        %v786 = vld [vmem:[%s783 + $0xc] sm:$0xff]
        %v787 = vld [vmem:[%s783 + $0x14] sm:$0xf]
        %v788 = vld [vmem:[%s783 + $0x18] sm:$0xff]
        %v789 = vld [vmem:[%s783 + $0x20] sm:$0xf]
        %v790 = vld [vmem:[%s783 + $0x24] sm:$0xff]
        %v791 = vld [vmem:[%s783 + $0x2c] sm:$0xf]
        %v792 = vld [vmem:[%s783 + $0x30] sm:$0x33]
        %v793 = vld [vmem:[%s783 + $0x38] sm:$0x3]
        %v804 = vunpack.c.l.b16 %v784
        %v805 = vunpack.c.h.b16 %v784
        %v806 = vunpack.c.l.b16 %v785
        %v807 = vunpack.c.l.b16 %v786
        %v808 = vunpack.c.h.b16 %v786
        %v809 = vunpack.c.l.b16 %v787
        %v810 = vunpack.c.l.b16 %v788
        %v811 = vunpack.c.h.b16 %v788
        %v812 = vunpack.c.l.b16 %v789
        %v813 = vunpack.c.l.b16 %v790
        %v814 = vunpack.c.h.b16 %v790
        %v815 = vunpack.c.l.b16 %v791
        %v816 = vunpack.c.l.b16 %v792
        %v817 = vunpack.c.h.b16 %v792
        %v818 = vunpack.c.l.b16 %v793
        %v819 = vpack.c.b16 %v807, %v804
        %v820 = vpack.c.b16 %v808, %v805
        %v821 = vpack.c.b16 %v809, %v806
        %v822 = vpack.c.b16 %v813, %v810
        %v823 = vpack.c.b16 %v814, %v811
        %v824 = vpack.c.b16 %v815, %v812
        %v825 = vpack.c.b16 %v816, %v816
        %v826 = vpack.c.b16 %v817, %v817
        %v827 = vpack.c.b16 %v818, %v818
        %v835 = vsel %vm421, %v821, 0
        %v838 = vsel %vm421, %v824, 0
        %v841 = vsel %vm421, %v827, 0
        %843 = vmatpush.bf16.msra.mxu0 %v392
        %844 = vmatpush.bf16.msra.mxu0 %v391
        %845 = vmatpush.bf16.msra.mxu0 %v390
        %846 = vmatpush.bf16.msra.mxu0 %v389
        %847 = vmatpush.bf16.msra.mxu0 %v388
        %848 = vmatpush.bf16.msra.mxu0 %v387
        %849 = vmatpush.bf16.msra.mxu0 %v386
        %850 = vmatpush.bf16.msra.mxu0 %v385
        %851 = vmatmul.bf16.gmra.mxu0 %v819
        %v852 = vpop.f32.mrf.mxu0
        %v853 = vadd.f32 %v271, %v852
        %v854 = vpop.f32.mrf.mxu0
        %v855 = vadd.f32 %v271, %v854
        %856 = vmatmul.bf16.gmra.mxu0 %v822
        %v857 = vpop.f32.mrf.mxu0
        %v858 = vadd.f32 %v271, %v857
        %v859 = vpop.f32.mrf.mxu0
        %v860 = vadd.f32 %v271, %v859
        %861 = vmatmul.bf16.gmra.mxu0 %v825
        %v862 = vpop.f32.mrf.mxu0
        %v863 = vadd.f32 %v271, %v862
        %v864 = vpop.f32.mrf.mxu0
        %865 = vdwg.mxu0
        %866 = vmatpush.bf16.msra.mxu0 %v400
        %867 = vmatpush.bf16.msra.mxu0 %v399
        %868 = vmatpush.bf16.msra.mxu0 %v398
        %869 = vmatpush.bf16.msra.mxu0 %v397
        %870 = vmatpush.bf16.msra.mxu0 %v396
        %871 = vmatpush.bf16.msra.mxu0 %v395
        %872 = vmatpush.bf16.msra.mxu0 %v394
        %873 = vmatpush.bf16.msra.mxu0 %v393
        %874 = vmatmul.bf16.gmra.mxu0 %v820
        %v875 = vpop.f32.mrf.mxu0
        %v876 = vadd.f32 %v853, %v875
        %v877 = vpop.f32.mrf.mxu0
        %v878 = vadd.f32 %v855, %v877
        %879 = vmatmul.bf16.gmra.mxu0 %v823
        %v880 = vpop.f32.mrf.mxu0
        %v881 = vadd.f32 %v858, %v880
        %v882 = vpop.f32.mrf.mxu0
        %v883 = vadd.f32 %v860, %v882
        %884 = vmatmul.bf16.gmra.mxu0 %v826
        %v885 = vpop.f32.mrf.mxu0
        %v886 = vadd.f32 %v863, %v885
        %v887 = vpop.f32.mrf.mxu0
        %888 = vdwg.mxu0
        %889 = vmatpush.bf16.msra.mxu0 0
        %890 = vmatpush.bf16.msra.mxu0 0
        %891 = vmatpush.bf16.msra.mxu0 0
        %892 = vmatpush.bf16.msra.mxu0 0
        %893 = vmatpush.bf16.msra.mxu0 0
        %894 = vmatpush.bf16.msra.mxu0 0
        %895 = vmatpush.bf16.msra.mxu0 %v402
        %896 = vmatpush.bf16.msra.mxu0 %v401
        %897 = vmatmul.bf16.gmra.mxu0 %v835
        %v898 = vpop.f32.mrf.mxu0
        %v899 = vadd.f32 %v876, %v898
        %v900 = vpop.f32.mrf.mxu0
        %v901 = vadd.f32 %v878, %v900
        %902 = vmatmul.bf16.gmra.mxu0 %v838
        %v903 = vpop.f32.mrf.mxu0
        %v904 = vadd.f32 %v881, %v903
        %v905 = vpop.f32.mrf.mxu0
        %v906 = vadd.f32 %v883, %v905
        %907 = vmatmul.bf16.gmra.mxu0 %v841
        %v908 = vpop.f32.mrf.mxu0
        %v909 = vadd.f32 %v886, %v908
        %v910 = vpop.f32.mrf.mxu0
        %911 = vdwg.mxu0
        %v912 = vmax.f32 %v899, 0.0
        %v913 = vmax.f32 %v901, 0.0
        %v914 = vmax.f32 %v904, 0.0
        %v915 = vmax.f32 %v906, 0.0
        %v916 = vmax.f32 %v909, 0.0
        %v917 = vmax.f32 %v778, %v912
        %v918 = vmax.f32 %v779, %v913
        %v919 = vmax.f32 %v780, %v914
        %v920 = vmax.f32 %v781, %v915
        %v921 = vmax.f32 %v782, %v916
        %v922 = vpack.c.bf16 %v917, %v917
        %v923 = vld [vmem:[%s3] sm:$0xf]
        %v924 = vld [vmem:[%s3 + $0x4] sm:$0xf]
        %v925 = vld [vmem:[%s3 + $0x8] sm:$0xf]
        %v926 = vld [vmem:[%s3 + $0xc] sm:$0xf]
        %v927 = vld [vmem:[%s3 + $0x10] sm:$0xf]
        %v928 = vld [vmem:[%s3 + $0x14] sm:$0xf]
        %v929 = vld [vmem:[%s3 + $0x18] sm:$0xf]
        %v930 = vld [vmem:[%s3 + $0x1c] sm:$0xf]
        %v931 = vld [vmem:[%s3 + $0x20] sm:$0xf]
        %v932 = vld [vmem:[%s3 + $0x24] sm:$0xf]
        %v933 = vld [vmem:[%s3 + $0x28] sm:$0xf]
        %v934 = vld [vmem:[%s3 + $0x2c] sm:$0xf]
        %v935 = vld [vmem:[%s3 + $0x30] sm:$0xf]
        %v936 = vld [vmem:[%s3 + $0x34] sm:$0xf]
        %v937 = vld [vmem:[%s3 + $0x38] sm:$0xf]
        %v938 = vld [vmem:[%s3 + $0x3c] sm:$0xf]
        %s939 = scalar_lea.vmem %s3, 64
        %v940 = vld [vmem:[%s939] sm:$0xf]
        %v941 = vld [vmem:[%s939 + $0x4] sm:$0xf]
        %v942 = vld [vmem:[%s939 + $0x8] sm:$0xf]
        %v943 = vld [vmem:[%s939 + $0xc] sm:$0xf]
        %v944 = vld [vmem:[%s939 + $0x10] sm:$0xf]
        %v945 = vld [vmem:[%s939 + $0x14] sm:$0xf]
        %v946 = vld [vmem:[%s939 + $0x18] sm:$0xf]
        %v947 = vld [vmem:[%s939 + $0x1c] sm:$0xf]
        %v948 = vld [vmem:[%s939 + $0x20] sm:$0xf]
        %v949 = vld [vmem:[%s939 + $0x24] sm:$0xf]
        %v950 = vld [vmem:[%s939 + $0x28] sm:$0xf]
        %v951 = vld [vmem:[%s939 + $0x2c] sm:$0xf]
        %v952 = vld [vmem:[%s939 + $0x30] sm:$0xf]
        %v953 = vld [vmem:[%s939 + $0x34] sm:$0xf]
        %v954 = vld [vmem:[%s939 + $0x38] sm:$0xf]
        %v955 = vld [vmem:[%s939 + $0x3c] sm:$0xf]
        %v957 = vshrl.u32 %v922, 16
        %v976 = vunpack.c.l.b16 %v940
        %v977 = vunpack.c.l.b16 %v941
        %v978 = vunpack.c.l.b16 %v942
        %v979 = vunpack.c.l.b16 %v943
        %v980 = vunpack.c.l.b16 %v944
        %v981 = vunpack.c.l.b16 %v945
        %v982 = vunpack.c.l.b16 %v946
        %v983 = vunpack.c.l.b16 %v947
        %v984 = vunpack.c.l.b16 %v948
        %v985 = vunpack.c.l.b16 %v949
        %v986 = vunpack.c.l.b16 %v950
        %v987 = vunpack.c.l.b16 %v951
        %v988 = vunpack.c.l.b16 %v952
        %v989 = vunpack.c.l.b16 %v953
        %v990 = vunpack.c.l.b16 %v954
        %v991 = vunpack.c.l.b16 %v955
        %v992 = vpack.c.b16 %v977, %v976
        %v993 = vpack.c.b16 %v979, %v978
        %v994 = vpack.c.b16 %v981, %v980
        %v995 = vpack.c.b16 %v983, %v982
        %v996 = vpack.c.b16 %v985, %v984
        %v997 = vpack.c.b16 %v987, %v986
        %v998 = vpack.c.b16 %v989, %v988
        %v999 = vpack.c.b16 %v991, %v990
        %1008 = vmatpush.bf16.msra.mxu0 %v999
        %1009 = vmatpush.bf16.msra.mxu0 %v998
        %1010 = vmatpush.bf16.msra.mxu0 %v997
        %1011 = vmatpush.bf16.msra.mxu0 %v996
        %1012 = vmatpush.bf16.msra.mxu0 %v995
        %1013 = vmatpush.bf16.msra.mxu0 %v994
        %1014 = vmatpush.bf16.msra.mxu0 %v993
        %1015 = vmatpush.bf16.msra.mxu0 %v992
        %1016 = vmatmul.bf16.gmra.mxu0 %v957
        %v1017 = vpop.f32.mrf.mxu0
        %v1018 = vadd.f32 0.0, %v1017
        %v1019 = vpop.f32.mrf.mxu0
        %1020 = vdwg.mxu0
        %v1037 = vunpack.c.l.b16 %v923
        %v1038 = vunpack.c.l.b16 %v924
        %v1039 = vunpack.c.l.b16 %v925
        %v1040 = vunpack.c.l.b16 %v926
        %v1041 = vunpack.c.l.b16 %v927
        %v1042 = vunpack.c.l.b16 %v928
        %v1043 = vunpack.c.l.b16 %v929
        %v1044 = vunpack.c.l.b16 %v930
        %v1045 = vunpack.c.l.b16 %v931
        %v1046 = vunpack.c.l.b16 %v932
        %v1047 = vunpack.c.l.b16 %v933
        %v1048 = vunpack.c.l.b16 %v934
        %v1049 = vunpack.c.l.b16 %v935
        %v1050 = vunpack.c.l.b16 %v936
        %v1051 = vunpack.c.l.b16 %v937
        %v1052 = vunpack.c.l.b16 %v938
        %v1053 = vpack.c.b16 %v1038, %v1037
        %v1054 = vpack.c.b16 %v1040, %v1039
        %v1055 = vpack.c.b16 %v1042, %v1041
        %v1056 = vpack.c.b16 %v1044, %v1043
        %v1057 = vpack.c.b16 %v1046, %v1045
        %v1058 = vpack.c.b16 %v1048, %v1047
        %v1059 = vpack.c.b16 %v1050, %v1049
        %v1060 = vpack.c.b16 %v1052, %v1051
        %1069 = vmatpush.bf16.msra.mxu0 %v1060
        %1070 = vmatpush.bf16.msra.mxu0 %v1059
        %1071 = vmatpush.bf16.msra.mxu0 %v1058
        %1072 = vmatpush.bf16.msra.mxu0 %v1057
        %1073 = vmatpush.bf16.msra.mxu0 %v1056
        %1074 = vmatpush.bf16.msra.mxu0 %v1055
        %1075 = vmatpush.bf16.msra.mxu0 %v1054
        %1076 = vmatpush.bf16.msra.mxu0 %v1053
        %1077 = vmatmul.bf16.gmra.mxu0 %v922
        %v1078 = vpop.f32.mrf.mxu0
        %v1079 = vadd.f32 %v1018, %v1078
        %v1080 = vpop.f32.mrf.mxu0
        %1081 = vdwg.mxu0
        %s1082 = scalar_lea.vmem %s3, 128
        %v1083 = vld [vmem:[%s1082] sm:$0xf]
        %v1084 = vld [vmem:[%s1082 + $0x4] sm:$0xf]
        %v1085 = vld [vmem:[%s1082 + $0x8] sm:$0xf]
        %v1086 = vld [vmem:[%s1082 + $0xc] sm:$0xf]
        %v1087 = vld [vmem:[%s1082 + $0x10] sm:$0xf]
        %v1088 = vld [vmem:[%s1082 + $0x14] sm:$0xf]
        %v1089 = vld [vmem:[%s1082 + $0x18] sm:$0xf]
        %v1090 = vld [vmem:[%s1082 + $0x1c] sm:$0xf]
        %v1091 = vld [vmem:[%s1082 + $0x20] sm:$0xf]
        %v1092 = vld [vmem:[%s1082 + $0x24] sm:$0xf]
        %v1093 = vld [vmem:[%s1082 + $0x28] sm:$0xf]
        %v1094 = vld [vmem:[%s1082 + $0x2c] sm:$0xf]
        %v1095 = vld [vmem:[%s1082 + $0x30] sm:$0xf]
        %v1096 = vld [vmem:[%s1082 + $0x34] sm:$0xf]
        %v1097 = vld [vmem:[%s1082 + $0x38] sm:$0xf]
        %v1098 = vld [vmem:[%s1082 + $0x3c] sm:$0xf]
        %v1100 = vrot.slane %v922, 1
        %v1118 = vunpack.c.l.b16 %v1083
        %v1119 = vunpack.c.l.b16 %v1084
        %v1120 = vunpack.c.l.b16 %v1085
        %v1121 = vunpack.c.l.b16 %v1086
        %v1122 = vunpack.c.l.b16 %v1087
        %v1123 = vunpack.c.l.b16 %v1088
        %v1124 = vunpack.c.l.b16 %v1089
        %v1125 = vunpack.c.l.b16 %v1090
        %v1126 = vunpack.c.l.b16 %v1091
        %v1127 = vunpack.c.l.b16 %v1092
        %v1128 = vunpack.c.l.b16 %v1093
        %v1129 = vunpack.c.l.b16 %v1094
        %v1130 = vunpack.c.l.b16 %v1095
        %v1131 = vunpack.c.l.b16 %v1096
        %v1132 = vunpack.c.l.b16 %v1097
        %v1133 = vunpack.c.l.b16 %v1098
        %v1134 = vpack.c.b16 %v1119, %v1118
        %v1135 = vpack.c.b16 %v1121, %v1120
        %v1136 = vpack.c.b16 %v1123, %v1122
        %v1137 = vpack.c.b16 %v1125, %v1124
        %v1138 = vpack.c.b16 %v1127, %v1126
        %v1139 = vpack.c.b16 %v1129, %v1128
        %v1140 = vpack.c.b16 %v1131, %v1130
        %v1141 = vpack.c.b16 %v1133, %v1132
        %1150 = vmatpush.bf16.msra.mxu0 %v1141
        %1151 = vmatpush.bf16.msra.mxu0 %v1140
        %1152 = vmatpush.bf16.msra.mxu0 %v1139
        %1153 = vmatpush.bf16.msra.mxu0 %v1138
        %1154 = vmatpush.bf16.msra.mxu0 %v1137
        %1155 = vmatpush.bf16.msra.mxu0 %v1136
        %1156 = vmatpush.bf16.msra.mxu0 %v1135
        %1157 = vmatpush.bf16.msra.mxu0 %v1134
        %1158 = vmatmul.bf16.gmra.mxu0 %v1100
        %v1159 = vpop.f32.mrf.mxu0
        %v1160 = vadd.f32 0.0, %v1159
        %v1161 = vpop.f32.mrf.mxu0
        %1162 = vdwg.mxu0
        %v1163 = vadd.f32 %v1079, %v1160
        %s1164 = scalar_lea.vmem %s3, 192
        %v1165 = vld [vmem:[%s1164] sm:$0xf]
        %v1166 = vld [vmem:[%s1164 + $0x4] sm:$0xf]
        %v1167 = vld [vmem:[%s1164 + $0x8] sm:$0xf]
        %v1168 = vld [vmem:[%s1164 + $0xc] sm:$0xf]
        %v1169 = vld [vmem:[%s1164 + $0x10] sm:$0xf]
        %v1170 = vld [vmem:[%s1164 + $0x14] sm:$0xf]
        %v1171 = vld [vmem:[%s1164 + $0x18] sm:$0xf]
        %v1172 = vld [vmem:[%s1164 + $0x1c] sm:$0xf]
        %v1173 = vld [vmem:[%s1164 + $0x20] sm:$0xf]
        %v1174 = vld [vmem:[%s1164 + $0x24] sm:$0xf]
        %v1175 = vld [vmem:[%s1164 + $0x28] sm:$0xf]
        %v1176 = vld [vmem:[%s1164 + $0x2c] sm:$0xf]
        %v1177 = vld [vmem:[%s1164 + $0x30] sm:$0xf]
        %v1178 = vld [vmem:[%s1164 + $0x34] sm:$0xf]
        %v1179 = vld [vmem:[%s1164 + $0x38] sm:$0xf]
        %v1180 = vld [vmem:[%s1164 + $0x3c] sm:$0xf]
        %v1181 = vrot.slane %v957, 1
        %v1199 = vunpack.c.l.b16 %v1165
        %v1200 = vunpack.c.l.b16 %v1166
        %v1201 = vunpack.c.l.b16 %v1167
        %v1202 = vunpack.c.l.b16 %v1168
        %v1203 = vunpack.c.l.b16 %v1169
        %v1204 = vunpack.c.l.b16 %v1170
        %v1205 = vunpack.c.l.b16 %v1171
        %v1206 = vunpack.c.l.b16 %v1172
        %v1207 = vunpack.c.l.b16 %v1173
        %v1208 = vunpack.c.l.b16 %v1174
        %v1209 = vunpack.c.l.b16 %v1175
        %v1210 = vunpack.c.l.b16 %v1176
        %v1211 = vunpack.c.l.b16 %v1177
        %v1212 = vunpack.c.l.b16 %v1178
        %v1213 = vunpack.c.l.b16 %v1179
        %v1214 = vunpack.c.l.b16 %v1180
        %v1215 = vpack.c.b16 %v1200, %v1199
        %v1216 = vpack.c.b16 %v1202, %v1201
        %v1217 = vpack.c.b16 %v1204, %v1203
        %v1218 = vpack.c.b16 %v1206, %v1205
        %v1219 = vpack.c.b16 %v1208, %v1207
        %v1220 = vpack.c.b16 %v1210, %v1209
        %v1221 = vpack.c.b16 %v1212, %v1211
        %v1222 = vpack.c.b16 %v1214, %v1213
        %1231 = vmatpush.bf16.msra.mxu0 %v1222
        %1232 = vmatpush.bf16.msra.mxu0 %v1221
        %1233 = vmatpush.bf16.msra.mxu0 %v1220
        %1234 = vmatpush.bf16.msra.mxu0 %v1219
        %1235 = vmatpush.bf16.msra.mxu0 %v1218
        %1236 = vmatpush.bf16.msra.mxu0 %v1217
        %1237 = vmatpush.bf16.msra.mxu0 %v1216
        %1238 = vmatpush.bf16.msra.mxu0 %v1215
        %1239 = vmatmul.bf16.gmra.mxu0 %v1181
        %v1240 = vpop.f32.mrf.mxu0
        %v1241 = vadd.f32 0.0, %v1240
        %v1242 = vpop.f32.mrf.mxu0
        %1243 = vdwg.mxu0
        %v1244 = vadd.f32 %v1163, %v1241
        %s1245 = scalar_lea.vmem %s3, 256
        %v1246 = vld [vmem:[%s1245] sm:$0xf]
        %v1247 = vld [vmem:[%s1245 + $0x4] sm:$0xf]
        %v1248 = vld [vmem:[%s1245 + $0x8] sm:$0xf]
        %v1249 = vld [vmem:[%s1245 + $0xc] sm:$0xf]
        %v1250 = vld [vmem:[%s1245 + $0x10] sm:$0xf]
        %v1251 = vld [vmem:[%s1245 + $0x14] sm:$0xf]
        %v1252 = vld [vmem:[%s1245 + $0x18] sm:$0xf]
        %v1253 = vld [vmem:[%s1245 + $0x1c] sm:$0xf]
        %v1254 = vld [vmem:[%s1245 + $0x20] sm:$0xf]
        %v1255 = vld [vmem:[%s1245 + $0x24] sm:$0xf]
        %v1256 = vld [vmem:[%s1245 + $0x28] sm:$0xf]
        %v1257 = vld [vmem:[%s1245 + $0x2c] sm:$0xf]
        %v1258 = vld [vmem:[%s1245 + $0x30] sm:$0xf]
        %v1259 = vld [vmem:[%s1245 + $0x34] sm:$0xf]
        %v1260 = vld [vmem:[%s1245 + $0x38] sm:$0xf]
        %v1261 = vld [vmem:[%s1245 + $0x3c] sm:$0xf]
        %v1262 = vrot.slane %v922, 2
        %v1280 = vunpack.c.l.b16 %v1246
        %v1281 = vunpack.c.l.b16 %v1247
        %v1282 = vunpack.c.l.b16 %v1248
        %v1283 = vunpack.c.l.b16 %v1249
        %v1284 = vunpack.c.l.b16 %v1250
        %v1285 = vunpack.c.l.b16 %v1251
        %v1286 = vunpack.c.l.b16 %v1252
        %v1287 = vunpack.c.l.b16 %v1253
        %v1288 = vunpack.c.l.b16 %v1254
        %v1289 = vunpack.c.l.b16 %v1255
        %v1290 = vunpack.c.l.b16 %v1256
        %v1291 = vunpack.c.l.b16 %v1257
        %v1292 = vunpack.c.l.b16 %v1258
        %v1293 = vunpack.c.l.b16 %v1259
        %v1294 = vunpack.c.l.b16 %v1260
        %v1295 = vunpack.c.l.b16 %v1261
        %v1296 = vpack.c.b16 %v1281, %v1280
        %v1297 = vpack.c.b16 %v1283, %v1282
        %v1298 = vpack.c.b16 %v1285, %v1284
        %v1299 = vpack.c.b16 %v1287, %v1286
        %v1300 = vpack.c.b16 %v1289, %v1288
        %v1301 = vpack.c.b16 %v1291, %v1290
        %v1302 = vpack.c.b16 %v1293, %v1292
        %v1303 = vpack.c.b16 %v1295, %v1294
        %1312 = vmatpush.bf16.msra.mxu0 %v1303
        %1313 = vmatpush.bf16.msra.mxu0 %v1302
        %1314 = vmatpush.bf16.msra.mxu0 %v1301
        %1315 = vmatpush.bf16.msra.mxu0 %v1300
        %1316 = vmatpush.bf16.msra.mxu0 %v1299
        %1317 = vmatpush.bf16.msra.mxu0 %v1298
        %1318 = vmatpush.bf16.msra.mxu0 %v1297
        %1319 = vmatpush.bf16.msra.mxu0 %v1296
        %1320 = vmatmul.bf16.gmra.mxu0 %v1262
        %v1321 = vpop.f32.mrf.mxu0
        %v1322 = vadd.f32 0.0, %v1321
        %v1323 = vpop.f32.mrf.mxu0
        %1324 = vdwg.mxu0
        %v1325 = vadd.f32 %v1244, %v1322
        %s1326 = scalar_lea.vmem %s3, 320
        %v1327 = vld [vmem:[%s1326] sm:$0xf]
        %v1328 = vld [vmem:[%s1326 + $0x4] sm:$0xf]
        %v1329 = vld [vmem:[%s1326 + $0x8] sm:$0xf]
        %v1330 = vld [vmem:[%s1326 + $0xc] sm:$0xf]
        %v1331 = vld [vmem:[%s1326 + $0x10] sm:$0xf]
        %v1332 = vld [vmem:[%s1326 + $0x14] sm:$0xf]
        %v1333 = vld [vmem:[%s1326 + $0x18] sm:$0xf]
        %v1334 = vld [vmem:[%s1326 + $0x1c] sm:$0xf]
        %v1335 = vld [vmem:[%s1326 + $0x20] sm:$0xf]
        %v1336 = vld [vmem:[%s1326 + $0x24] sm:$0xf]
        %v1337 = vld [vmem:[%s1326 + $0x28] sm:$0xf]
        %v1338 = vld [vmem:[%s1326 + $0x2c] sm:$0xf]
        %v1339 = vld [vmem:[%s1326 + $0x30] sm:$0xf]
        %v1340 = vld [vmem:[%s1326 + $0x34] sm:$0xf]
        %v1341 = vld [vmem:[%s1326 + $0x38] sm:$0xf]
        %v1342 = vld [vmem:[%s1326 + $0x3c] sm:$0xf]
        %v1343 = vrot.slane %v957, 2
        %v1361 = vunpack.c.l.b16 %v1327
        %v1362 = vunpack.c.l.b16 %v1328
        %v1363 = vunpack.c.l.b16 %v1329
        %v1364 = vunpack.c.l.b16 %v1330
        %v1365 = vunpack.c.l.b16 %v1331
        %v1366 = vunpack.c.l.b16 %v1332
        %v1367 = vunpack.c.l.b16 %v1333
        %v1368 = vunpack.c.l.b16 %v1334
        %v1369 = vunpack.c.l.b16 %v1335
        %v1370 = vunpack.c.l.b16 %v1336
        %v1371 = vunpack.c.l.b16 %v1337
        %v1372 = vunpack.c.l.b16 %v1338
        %v1373 = vunpack.c.l.b16 %v1339
        %v1374 = vunpack.c.l.b16 %v1340
        %v1375 = vunpack.c.l.b16 %v1341
        %v1376 = vunpack.c.l.b16 %v1342
        %v1377 = vpack.c.b16 %v1362, %v1361
        %v1378 = vpack.c.b16 %v1364, %v1363
        %v1379 = vpack.c.b16 %v1366, %v1365
        %v1380 = vpack.c.b16 %v1368, %v1367
        %v1381 = vpack.c.b16 %v1370, %v1369
        %v1382 = vpack.c.b16 %v1372, %v1371
        %v1383 = vpack.c.b16 %v1374, %v1373
        %v1384 = vpack.c.b16 %v1376, %v1375
        %1393 = vmatpush.bf16.msra.mxu0 %v1384
        %1394 = vmatpush.bf16.msra.mxu0 %v1383
        %1395 = vmatpush.bf16.msra.mxu0 %v1382
        %1396 = vmatpush.bf16.msra.mxu0 %v1381
        %1397 = vmatpush.bf16.msra.mxu0 %v1380
        %1398 = vmatpush.bf16.msra.mxu0 %v1379
        %1399 = vmatpush.bf16.msra.mxu0 %v1378
        %1400 = vmatpush.bf16.msra.mxu0 %v1377
        %1401 = vmatmul.bf16.gmra.mxu0 %v1343
        %v1402 = vpop.f32.mrf.mxu0
        %v1403 = vadd.f32 0.0, %v1402
        %v1404 = vpop.f32.mrf.mxu0
        %1405 = vdwg.mxu0
        %v1406 = vadd.f32 %v1325, %v1403
        %s1407 = scalar_lea.vmem %s3, 384
        %v1408 = vld [vmem:[%s1407] sm:$0xf]
        %v1409 = vld [vmem:[%s1407 + $0x4] sm:$0xf]
        %v1410 = vld [vmem:[%s1407 + $0x8] sm:$0xf]
        %v1411 = vld [vmem:[%s1407 + $0xc] sm:$0xf]
        %v1412 = vld [vmem:[%s1407 + $0x10] sm:$0xf]
        %v1413 = vld [vmem:[%s1407 + $0x14] sm:$0xf]
        %v1414 = vld [vmem:[%s1407 + $0x18] sm:$0xf]
        %v1415 = vld [vmem:[%s1407 + $0x1c] sm:$0xf]
        %v1416 = vld [vmem:[%s1407 + $0x20] sm:$0xf]
        %v1417 = vld [vmem:[%s1407 + $0x24] sm:$0xf]
        %v1418 = vld [vmem:[%s1407 + $0x28] sm:$0xf]
        %v1419 = vld [vmem:[%s1407 + $0x2c] sm:$0xf]
        %v1420 = vld [vmem:[%s1407 + $0x30] sm:$0xf]
        %v1421 = vld [vmem:[%s1407 + $0x34] sm:$0xf]
        %v1422 = vld [vmem:[%s1407 + $0x38] sm:$0xf]
        %v1423 = vld [vmem:[%s1407 + $0x3c] sm:$0xf]
        %v1424 = vrot.slane %v922, 3
        %v1442 = vunpack.c.l.b16 %v1408
        %v1443 = vunpack.c.l.b16 %v1409
        %v1444 = vunpack.c.l.b16 %v1410
        %v1445 = vunpack.c.l.b16 %v1411
        %v1446 = vunpack.c.l.b16 %v1412
        %v1447 = vunpack.c.l.b16 %v1413
        %v1448 = vunpack.c.l.b16 %v1414
        %v1449 = vunpack.c.l.b16 %v1415
        %v1450 = vunpack.c.l.b16 %v1416
        %v1451 = vunpack.c.l.b16 %v1417
        %v1452 = vunpack.c.l.b16 %v1418
        %v1453 = vunpack.c.l.b16 %v1419
        %v1454 = vunpack.c.l.b16 %v1420
        %v1455 = vunpack.c.l.b16 %v1421
        %v1456 = vunpack.c.l.b16 %v1422
        %v1457 = vunpack.c.l.b16 %v1423
        %v1458 = vpack.c.b16 %v1443, %v1442
        %v1459 = vpack.c.b16 %v1445, %v1444
        %v1460 = vpack.c.b16 %v1447, %v1446
        %v1461 = vpack.c.b16 %v1449, %v1448
        %v1462 = vpack.c.b16 %v1451, %v1450
        %v1463 = vpack.c.b16 %v1453, %v1452
        %v1464 = vpack.c.b16 %v1455, %v1454
        %v1465 = vpack.c.b16 %v1457, %v1456
        %1474 = vmatpush.bf16.msra.mxu0 %v1465
        %1475 = vmatpush.bf16.msra.mxu0 %v1464
        %1476 = vmatpush.bf16.msra.mxu0 %v1463
        %1477 = vmatpush.bf16.msra.mxu0 %v1462
        %1478 = vmatpush.bf16.msra.mxu0 %v1461
        %1479 = vmatpush.bf16.msra.mxu0 %v1460
        %1480 = vmatpush.bf16.msra.mxu0 %v1459
        %1481 = vmatpush.bf16.msra.mxu0 %v1458
        %1482 = vmatmul.bf16.gmra.mxu0 %v1424
        %v1483 = vpop.f32.mrf.mxu0
        %v1484 = vadd.f32 0.0, %v1483
        %v1485 = vpop.f32.mrf.mxu0
        %1486 = vdwg.mxu0
        %v1487 = vadd.f32 %v1406, %v1484
        %s1488 = scalar_lea.vmem %s3, 448
        %v1489 = vld [vmem:[%s1488] sm:$0xf]
        %v1490 = vld [vmem:[%s1488 + $0x4] sm:$0xf]
        %v1491 = vld [vmem:[%s1488 + $0x8] sm:$0xf]
        %v1492 = vld [vmem:[%s1488 + $0xc] sm:$0xf]
        %v1493 = vld [vmem:[%s1488 + $0x10] sm:$0xf]
        %v1494 = vld [vmem:[%s1488 + $0x14] sm:$0xf]
        %v1495 = vld [vmem:[%s1488 + $0x18] sm:$0xf]
        %v1496 = vld [vmem:[%s1488 + $0x1c] sm:$0xf]
        %v1497 = vld [vmem:[%s1488 + $0x20] sm:$0xf]
        %v1498 = vld [vmem:[%s1488 + $0x24] sm:$0xf]
        %v1499 = vld [vmem:[%s1488 + $0x28] sm:$0xf]
        %v1500 = vld [vmem:[%s1488 + $0x2c] sm:$0xf]
        %v1501 = vld [vmem:[%s1488 + $0x30] sm:$0xf]
        %v1502 = vld [vmem:[%s1488 + $0x34] sm:$0xf]
        %v1503 = vld [vmem:[%s1488 + $0x38] sm:$0xf]
        %v1504 = vld [vmem:[%s1488 + $0x3c] sm:$0xf]
        %v1505 = vrot.slane %v957, 3
        %v1523 = vunpack.c.l.b16 %v1489
        %v1524 = vunpack.c.l.b16 %v1490
        %v1525 = vunpack.c.l.b16 %v1491
        %v1526 = vunpack.c.l.b16 %v1492
        %v1527 = vunpack.c.l.b16 %v1493
        %v1528 = vunpack.c.l.b16 %v1494
        %v1529 = vunpack.c.l.b16 %v1495
        %v1530 = vunpack.c.l.b16 %v1496
        %v1531 = vunpack.c.l.b16 %v1497
        %v1532 = vunpack.c.l.b16 %v1498
        %v1533 = vunpack.c.l.b16 %v1499
        %v1534 = vunpack.c.l.b16 %v1500
        %v1535 = vunpack.c.l.b16 %v1501
        %v1536 = vunpack.c.l.b16 %v1502
        %v1537 = vunpack.c.l.b16 %v1503
        %v1538 = vunpack.c.l.b16 %v1504
        %v1539 = vpack.c.b16 %v1524, %v1523
        %v1540 = vpack.c.b16 %v1526, %v1525
        %v1541 = vpack.c.b16 %v1528, %v1527
        %v1542 = vpack.c.b16 %v1530, %v1529
        %v1543 = vpack.c.b16 %v1532, %v1531
        %v1544 = vpack.c.b16 %v1534, %v1533
        %v1545 = vpack.c.b16 %v1536, %v1535
        %v1546 = vpack.c.b16 %v1538, %v1537
        %1555 = vmatpush.bf16.msra.mxu0 %v1546
        %1556 = vmatpush.bf16.msra.mxu0 %v1545
        %1557 = vmatpush.bf16.msra.mxu0 %v1544
        %1558 = vmatpush.bf16.msra.mxu0 %v1543
        %1559 = vmatpush.bf16.msra.mxu0 %v1542
        %1560 = vmatpush.bf16.msra.mxu0 %v1541
        %1561 = vmatpush.bf16.msra.mxu0 %v1540
        %1562 = vmatpush.bf16.msra.mxu0 %v1539
        %1563 = vmatmul.bf16.gmra.mxu0 %v1505
        %v1564 = vpop.f32.mrf.mxu0
        %v1565 = vadd.f32 0.0, %v1564
        %v1566 = vpop.f32.mrf.mxu0
        %1567 = vdwg.mxu0
        %v1568 = vadd.f32 %v1487, %v1565
        %v1569 = vpack.c.bf16 %v918, %v918
        %s1570 = scalar_lea.vmem %s3, 512
        %v1571 = vld [vmem:[%s1570] sm:$0xf]
        %v1572 = vld [vmem:[%s1570 + $0x4] sm:$0xf]
        %v1573 = vld [vmem:[%s1570 + $0x8] sm:$0xf]
        %v1574 = vld [vmem:[%s1570 + $0xc] sm:$0xf]
        %v1575 = vld [vmem:[%s1570 + $0x10] sm:$0xf]
        %v1576 = vld [vmem:[%s1570 + $0x14] sm:$0xf]
        %v1577 = vld [vmem:[%s1570 + $0x18] sm:$0xf]
        %v1578 = vld [vmem:[%s1570 + $0x1c] sm:$0xf]
        %v1579 = vld [vmem:[%s1570 + $0x20] sm:$0xf]
        %v1580 = vld [vmem:[%s1570 + $0x24] sm:$0xf]
        %v1581 = vld [vmem:[%s1570 + $0x28] sm:$0xf]
        %v1582 = vld [vmem:[%s1570 + $0x2c] sm:$0xf]
        %v1583 = vld [vmem:[%s1570 + $0x30] sm:$0xf]
        %v1584 = vld [vmem:[%s1570 + $0x34] sm:$0xf]
        %v1585 = vld [vmem:[%s1570 + $0x38] sm:$0xf]
        %v1586 = vld [vmem:[%s1570 + $0x3c] sm:$0xf]
        %v1603 = vunpack.c.l.b16 %v1571
        %v1604 = vunpack.c.l.b16 %v1572
        %v1605 = vunpack.c.l.b16 %v1573
        %v1606 = vunpack.c.l.b16 %v1574
        %v1607 = vunpack.c.l.b16 %v1575
        %v1608 = vunpack.c.l.b16 %v1576
        %v1609 = vunpack.c.l.b16 %v1577
        %v1610 = vunpack.c.l.b16 %v1578
        %v1611 = vunpack.c.l.b16 %v1579
        %v1612 = vunpack.c.l.b16 %v1580
        %v1613 = vunpack.c.l.b16 %v1581
        %v1614 = vunpack.c.l.b16 %v1582
        %v1615 = vunpack.c.l.b16 %v1583
        %v1616 = vunpack.c.l.b16 %v1584
        %v1617 = vunpack.c.l.b16 %v1585
        %v1618 = vunpack.c.l.b16 %v1586
        %v1619 = vpack.c.b16 %v1604, %v1603
        %v1620 = vpack.c.b16 %v1606, %v1605
        %v1621 = vpack.c.b16 %v1608, %v1607
        %v1622 = vpack.c.b16 %v1610, %v1609
        %v1623 = vpack.c.b16 %v1612, %v1611
        %v1624 = vpack.c.b16 %v1614, %v1613
        %v1625 = vpack.c.b16 %v1616, %v1615
        %v1626 = vpack.c.b16 %v1618, %v1617
        %1635 = vmatpush.bf16.msra.mxu0 %v1626
        %1636 = vmatpush.bf16.msra.mxu0 %v1625
        %1637 = vmatpush.bf16.msra.mxu0 %v1624
        %1638 = vmatpush.bf16.msra.mxu0 %v1623
        %1639 = vmatpush.bf16.msra.mxu0 %v1622
        %1640 = vmatpush.bf16.msra.mxu0 %v1621
        %1641 = vmatpush.bf16.msra.mxu0 %v1620
        %1642 = vmatpush.bf16.msra.mxu0 %v1619
        %1643 = vmatmul.bf16.gmra.mxu0 %v1569
        %v1644 = vpop.f32.mrf.mxu0
        %v1645 = vadd.f32 0.0, %v1644
        %v1646 = vpop.f32.mrf.mxu0
        %1647 = vdwg.mxu0
        %v1648 = vadd.f32 %v1568, %v1645
        %s1649 = scalar_lea.vmem %s3, 576
        %v1650 = vld [vmem:[%s1649] sm:$0xf]
        %v1651 = vld [vmem:[%s1649 + $0x4] sm:$0xf]
        %v1652 = vld [vmem:[%s1649 + $0x8] sm:$0xf]
        %v1653 = vld [vmem:[%s1649 + $0xc] sm:$0xf]
        %v1654 = vld [vmem:[%s1649 + $0x10] sm:$0xf]
        %v1655 = vld [vmem:[%s1649 + $0x14] sm:$0xf]
        %v1656 = vld [vmem:[%s1649 + $0x18] sm:$0xf]
        %v1657 = vld [vmem:[%s1649 + $0x1c] sm:$0xf]
        %v1658 = vld [vmem:[%s1649 + $0x20] sm:$0xf]
        %v1659 = vld [vmem:[%s1649 + $0x24] sm:$0xf]
        %v1660 = vld [vmem:[%s1649 + $0x28] sm:$0xf]
        %v1661 = vld [vmem:[%s1649 + $0x2c] sm:$0xf]
        %v1662 = vld [vmem:[%s1649 + $0x30] sm:$0xf]
        %v1663 = vld [vmem:[%s1649 + $0x34] sm:$0xf]
        %v1664 = vld [vmem:[%s1649 + $0x38] sm:$0xf]
        %v1665 = vld [vmem:[%s1649 + $0x3c] sm:$0xf]
        %v1667 = vshrl.u32 %v1569, 16
        %v1686 = vunpack.c.l.b16 %v1650
        %v1687 = vunpack.c.l.b16 %v1651
        %v1688 = vunpack.c.l.b16 %v1652
        %v1689 = vunpack.c.l.b16 %v1653
        %v1690 = vunpack.c.l.b16 %v1654
        %v1691 = vunpack.c.l.b16 %v1655
        %v1692 = vunpack.c.l.b16 %v1656
        %v1693 = vunpack.c.l.b16 %v1657
        %v1694 = vunpack.c.l.b16 %v1658
        %v1695 = vunpack.c.l.b16 %v1659
        %v1696 = vunpack.c.l.b16 %v1660
        %v1697 = vunpack.c.l.b16 %v1661
        %v1698 = vunpack.c.l.b16 %v1662
        %v1699 = vunpack.c.l.b16 %v1663
        %v1700 = vunpack.c.l.b16 %v1664
        %v1701 = vunpack.c.l.b16 %v1665
        %v1702 = vpack.c.b16 %v1687, %v1686
        %v1703 = vpack.c.b16 %v1689, %v1688
        %v1704 = vpack.c.b16 %v1691, %v1690
        %v1705 = vpack.c.b16 %v1693, %v1692
        %v1706 = vpack.c.b16 %v1695, %v1694
        %v1707 = vpack.c.b16 %v1697, %v1696
        %v1708 = vpack.c.b16 %v1699, %v1698
        %v1709 = vpack.c.b16 %v1701, %v1700
        %1718 = vmatpush.bf16.msra.mxu0 %v1709
        %1719 = vmatpush.bf16.msra.mxu0 %v1708
        %1720 = vmatpush.bf16.msra.mxu0 %v1707
        %1721 = vmatpush.bf16.msra.mxu0 %v1706
        %1722 = vmatpush.bf16.msra.mxu0 %v1705
        %1723 = vmatpush.bf16.msra.mxu0 %v1704
        %1724 = vmatpush.bf16.msra.mxu0 %v1703
        %1725 = vmatpush.bf16.msra.mxu0 %v1702
        %1726 = vmatmul.bf16.gmra.mxu0 %v1667
        %v1727 = vpop.f32.mrf.mxu0
        %v1728 = vadd.f32 0.0, %v1727
        %v1729 = vpop.f32.mrf.mxu0
        %1730 = vdwg.mxu0
        %v1731 = vadd.f32 %v1648, %v1728
        %s1732 = scalar_lea.vmem %s3, 640
        %v1733 = vld [vmem:[%s1732] sm:$0xf]
        %v1734 = vld [vmem:[%s1732 + $0x4] sm:$0xf]
        %v1735 = vld [vmem:[%s1732 + $0x8] sm:$0xf]
        %v1736 = vld [vmem:[%s1732 + $0xc] sm:$0xf]
        %v1737 = vld [vmem:[%s1732 + $0x10] sm:$0xf]
        %v1738 = vld [vmem:[%s1732 + $0x14] sm:$0xf]
        %v1739 = vld [vmem:[%s1732 + $0x18] sm:$0xf]
        %v1740 = vld [vmem:[%s1732 + $0x1c] sm:$0xf]
        %v1741 = vld [vmem:[%s1732 + $0x20] sm:$0xf]
        %v1742 = vld [vmem:[%s1732 + $0x24] sm:$0xf]
        %v1743 = vld [vmem:[%s1732 + $0x28] sm:$0xf]
        %v1744 = vld [vmem:[%s1732 + $0x2c] sm:$0xf]
        %v1745 = vld [vmem:[%s1732 + $0x30] sm:$0xf]
        %v1746 = vld [vmem:[%s1732 + $0x34] sm:$0xf]
        %v1747 = vld [vmem:[%s1732 + $0x38] sm:$0xf]
        %v1748 = vld [vmem:[%s1732 + $0x3c] sm:$0xf]
        %v1750 = vrot.slane %v1569, 1
        %v1768 = vunpack.c.l.b16 %v1733
        %v1769 = vunpack.c.l.b16 %v1734
        %v1770 = vunpack.c.l.b16 %v1735
        %v1771 = vunpack.c.l.b16 %v1736
        %v1772 = vunpack.c.l.b16 %v1737
        %v1773 = vunpack.c.l.b16 %v1738
        %v1774 = vunpack.c.l.b16 %v1739
        %v1775 = vunpack.c.l.b16 %v1740
        %v1776 = vunpack.c.l.b16 %v1741
        %v1777 = vunpack.c.l.b16 %v1742
        %v1778 = vunpack.c.l.b16 %v1743
        %v1779 = vunpack.c.l.b16 %v1744
        %v1780 = vunpack.c.l.b16 %v1745
        %v1781 = vunpack.c.l.b16 %v1746
        %v1782 = vunpack.c.l.b16 %v1747
        %v1783 = vunpack.c.l.b16 %v1748
        %v1784 = vpack.c.b16 %v1769, %v1768
        %v1785 = vpack.c.b16 %v1771, %v1770
        %v1786 = vpack.c.b16 %v1773, %v1772
        %v1787 = vpack.c.b16 %v1775, %v1774
        %v1788 = vpack.c.b16 %v1777, %v1776
        %v1789 = vpack.c.b16 %v1779, %v1778
        %v1790 = vpack.c.b16 %v1781, %v1780
        %v1791 = vpack.c.b16 %v1783, %v1782
        %1800 = vmatpush.bf16.msra.mxu0 %v1791
        %1801 = vmatpush.bf16.msra.mxu0 %v1790
        %1802 = vmatpush.bf16.msra.mxu0 %v1789
        %1803 = vmatpush.bf16.msra.mxu0 %v1788
        %1804 = vmatpush.bf16.msra.mxu0 %v1787
        %1805 = vmatpush.bf16.msra.mxu0 %v1786
        %1806 = vmatpush.bf16.msra.mxu0 %v1785
        %1807 = vmatpush.bf16.msra.mxu0 %v1784
        %1808 = vmatmul.bf16.gmra.mxu0 %v1750
        %v1809 = vpop.f32.mrf.mxu0
        %v1810 = vadd.f32 0.0, %v1809
        %v1811 = vpop.f32.mrf.mxu0
        %1812 = vdwg.mxu0
        %v1813 = vadd.f32 %v1731, %v1810
        %s1814 = scalar_lea.vmem %s3, 704
        %v1815 = vld [vmem:[%s1814] sm:$0xf]
        %v1816 = vld [vmem:[%s1814 + $0x4] sm:$0xf]
        %v1817 = vld [vmem:[%s1814 + $0x8] sm:$0xf]
        %v1818 = vld [vmem:[%s1814 + $0xc] sm:$0xf]
        %v1819 = vld [vmem:[%s1814 + $0x10] sm:$0xf]
        %v1820 = vld [vmem:[%s1814 + $0x14] sm:$0xf]
        %v1821 = vld [vmem:[%s1814 + $0x18] sm:$0xf]
        %v1822 = vld [vmem:[%s1814 + $0x1c] sm:$0xf]
        %v1823 = vld [vmem:[%s1814 + $0x20] sm:$0xf]
        %v1824 = vld [vmem:[%s1814 + $0x24] sm:$0xf]
        %v1825 = vld [vmem:[%s1814 + $0x28] sm:$0xf]
        %v1826 = vld [vmem:[%s1814 + $0x2c] sm:$0xf]
        %v1827 = vld [vmem:[%s1814 + $0x30] sm:$0xf]
        %v1828 = vld [vmem:[%s1814 + $0x34] sm:$0xf]
        %v1829 = vld [vmem:[%s1814 + $0x38] sm:$0xf]
        %v1830 = vld [vmem:[%s1814 + $0x3c] sm:$0xf]
        %v1831 = vrot.slane %v1667, 1
        %v1849 = vunpack.c.l.b16 %v1815
        %v1850 = vunpack.c.l.b16 %v1816
        %v1851 = vunpack.c.l.b16 %v1817
        %v1852 = vunpack.c.l.b16 %v1818
        %v1853 = vunpack.c.l.b16 %v1819
        %v1854 = vunpack.c.l.b16 %v1820
        %v1855 = vunpack.c.l.b16 %v1821
        %v1856 = vunpack.c.l.b16 %v1822
        %v1857 = vunpack.c.l.b16 %v1823
        %v1858 = vunpack.c.l.b16 %v1824
        %v1859 = vunpack.c.l.b16 %v1825
        %v1860 = vunpack.c.l.b16 %v1826
        %v1861 = vunpack.c.l.b16 %v1827
        %v1862 = vunpack.c.l.b16 %v1828
        %v1863 = vunpack.c.l.b16 %v1829
        %v1864 = vunpack.c.l.b16 %v1830
        %v1865 = vpack.c.b16 %v1850, %v1849
        %v1866 = vpack.c.b16 %v1852, %v1851
        %v1867 = vpack.c.b16 %v1854, %v1853
        %v1868 = vpack.c.b16 %v1856, %v1855
        %v1869 = vpack.c.b16 %v1858, %v1857
        %v1870 = vpack.c.b16 %v1860, %v1859
        %v1871 = vpack.c.b16 %v1862, %v1861
        %v1872 = vpack.c.b16 %v1864, %v1863
        %1881 = vmatpush.bf16.msra.mxu0 %v1872
        %1882 = vmatpush.bf16.msra.mxu0 %v1871
        %1883 = vmatpush.bf16.msra.mxu0 %v1870
        %1884 = vmatpush.bf16.msra.mxu0 %v1869
        %1885 = vmatpush.bf16.msra.mxu0 %v1868
        %1886 = vmatpush.bf16.msra.mxu0 %v1867
        %1887 = vmatpush.bf16.msra.mxu0 %v1866
        %1888 = vmatpush.bf16.msra.mxu0 %v1865
        %1889 = vmatmul.bf16.gmra.mxu0 %v1831
        %v1890 = vpop.f32.mrf.mxu0
        %v1891 = vadd.f32 0.0, %v1890
        %v1892 = vpop.f32.mrf.mxu0
        %1893 = vdwg.mxu0
        %v1894 = vadd.f32 %v1813, %v1891
        %s1895 = scalar_lea.vmem %s3, 768
        %v1896 = vld [vmem:[%s1895] sm:$0xf]
        %v1897 = vld [vmem:[%s1895 + $0x4] sm:$0xf]
        %v1898 = vld [vmem:[%s1895 + $0x8] sm:$0xf]
        %v1899 = vld [vmem:[%s1895 + $0xc] sm:$0xf]
        %v1900 = vld [vmem:[%s1895 + $0x10] sm:$0xf]
        %v1901 = vld [vmem:[%s1895 + $0x14] sm:$0xf]
        %v1902 = vld [vmem:[%s1895 + $0x18] sm:$0xf]
        %v1903 = vld [vmem:[%s1895 + $0x1c] sm:$0xf]
        %v1904 = vld [vmem:[%s1895 + $0x20] sm:$0xf]
        %v1905 = vld [vmem:[%s1895 + $0x24] sm:$0xf]
        %v1906 = vld [vmem:[%s1895 + $0x28] sm:$0xf]
        %v1907 = vld [vmem:[%s1895 + $0x2c] sm:$0xf]
        %v1908 = vld [vmem:[%s1895 + $0x30] sm:$0xf]
        %v1909 = vld [vmem:[%s1895 + $0x34] sm:$0xf]
        %v1910 = vld [vmem:[%s1895 + $0x38] sm:$0xf]
        %v1911 = vld [vmem:[%s1895 + $0x3c] sm:$0xf]
        %v1912 = vrot.slane %v1569, 2
        %v1930 = vunpack.c.l.b16 %v1896
        %v1931 = vunpack.c.l.b16 %v1897
        %v1932 = vunpack.c.l.b16 %v1898
        %v1933 = vunpack.c.l.b16 %v1899
        %v1934 = vunpack.c.l.b16 %v1900
        %v1935 = vunpack.c.l.b16 %v1901
        %v1936 = vunpack.c.l.b16 %v1902
        %v1937 = vunpack.c.l.b16 %v1903
        %v1938 = vunpack.c.l.b16 %v1904
        %v1939 = vunpack.c.l.b16 %v1905
        %v1940 = vunpack.c.l.b16 %v1906
        %v1941 = vunpack.c.l.b16 %v1907
        %v1942 = vunpack.c.l.b16 %v1908
        %v1943 = vunpack.c.l.b16 %v1909
        %v1944 = vunpack.c.l.b16 %v1910
        %v1945 = vunpack.c.l.b16 %v1911
        %v1946 = vpack.c.b16 %v1931, %v1930
        %v1947 = vpack.c.b16 %v1933, %v1932
        %v1948 = vpack.c.b16 %v1935, %v1934
        %v1949 = vpack.c.b16 %v1937, %v1936
        %v1950 = vpack.c.b16 %v1939, %v1938
        %v1951 = vpack.c.b16 %v1941, %v1940
        %v1952 = vpack.c.b16 %v1943, %v1942
        %v1953 = vpack.c.b16 %v1945, %v1944
        %1962 = vmatpush.bf16.msra.mxu0 %v1953
        %1963 = vmatpush.bf16.msra.mxu0 %v1952
        %1964 = vmatpush.bf16.msra.mxu0 %v1951
        %1965 = vmatpush.bf16.msra.mxu0 %v1950
        %1966 = vmatpush.bf16.msra.mxu0 %v1949
        %1967 = vmatpush.bf16.msra.mxu0 %v1948
        %1968 = vmatpush.bf16.msra.mxu0 %v1947
        %1969 = vmatpush.bf16.msra.mxu0 %v1946
        %1970 = vmatmul.bf16.gmra.mxu0 %v1912
        %v1971 = vpop.f32.mrf.mxu0
        %v1972 = vadd.f32 0.0, %v1971
        %v1973 = vpop.f32.mrf.mxu0
        %1974 = vdwg.mxu0
        %v1975 = vadd.f32 %v1894, %v1972
        %s1976 = scalar_lea.vmem %s3, 832
        %v1977 = vld [vmem:[%s1976] sm:$0xf]
        %v1978 = vld [vmem:[%s1976 + $0x4] sm:$0xf]
        %v1979 = vld [vmem:[%s1976 + $0x8] sm:$0xf]
        %v1980 = vld [vmem:[%s1976 + $0xc] sm:$0xf]
        %v1981 = vld [vmem:[%s1976 + $0x10] sm:$0xf]
        %v1982 = vld [vmem:[%s1976 + $0x14] sm:$0xf]
        %v1983 = vld [vmem:[%s1976 + $0x18] sm:$0xf]
        %v1984 = vld [vmem:[%s1976 + $0x1c] sm:$0xf]
        %v1985 = vld [vmem:[%s1976 + $0x20] sm:$0xf]
        %v1986 = vld [vmem:[%s1976 + $0x24] sm:$0xf]
        %v1987 = vld [vmem:[%s1976 + $0x28] sm:$0xf]
        %v1988 = vld [vmem:[%s1976 + $0x2c] sm:$0xf]
        %v1989 = vld [vmem:[%s1976 + $0x30] sm:$0xf]
        %v1990 = vld [vmem:[%s1976 + $0x34] sm:$0xf]
        %v1991 = vld [vmem:[%s1976 + $0x38] sm:$0xf]
        %v1992 = vld [vmem:[%s1976 + $0x3c] sm:$0xf]
        %v1993 = vrot.slane %v1667, 2
        %v2011 = vunpack.c.l.b16 %v1977
        %v2012 = vunpack.c.l.b16 %v1978
        %v2013 = vunpack.c.l.b16 %v1979
        %v2014 = vunpack.c.l.b16 %v1980
        %v2015 = vunpack.c.l.b16 %v1981
        %v2016 = vunpack.c.l.b16 %v1982
        %v2017 = vunpack.c.l.b16 %v1983
        %v2018 = vunpack.c.l.b16 %v1984
        %v2019 = vunpack.c.l.b16 %v1985
        %v2020 = vunpack.c.l.b16 %v1986
        %v2021 = vunpack.c.l.b16 %v1987
        %v2022 = vunpack.c.l.b16 %v1988
        %v2023 = vunpack.c.l.b16 %v1989
        %v2024 = vunpack.c.l.b16 %v1990
        %v2025 = vunpack.c.l.b16 %v1991
        %v2026 = vunpack.c.l.b16 %v1992
        %v2027 = vpack.c.b16 %v2012, %v2011
        %v2028 = vpack.c.b16 %v2014, %v2013
        %v2029 = vpack.c.b16 %v2016, %v2015
        %v2030 = vpack.c.b16 %v2018, %v2017
        %v2031 = vpack.c.b16 %v2020, %v2019
        %v2032 = vpack.c.b16 %v2022, %v2021
        %v2033 = vpack.c.b16 %v2024, %v2023
        %v2034 = vpack.c.b16 %v2026, %v2025
        %2043 = vmatpush.bf16.msra.mxu0 %v2034
        %2044 = vmatpush.bf16.msra.mxu0 %v2033
        %2045 = vmatpush.bf16.msra.mxu0 %v2032
        %2046 = vmatpush.bf16.msra.mxu0 %v2031
        %2047 = vmatpush.bf16.msra.mxu0 %v2030
        %2048 = vmatpush.bf16.msra.mxu0 %v2029
        %2049 = vmatpush.bf16.msra.mxu0 %v2028
        %2050 = vmatpush.bf16.msra.mxu0 %v2027
        %2051 = vmatmul.bf16.gmra.mxu0 %v1993
        %v2052 = vpop.f32.mrf.mxu0
        %v2053 = vadd.f32 0.0, %v2052
        %v2054 = vpop.f32.mrf.mxu0
        %2055 = vdwg.mxu0
        %v2056 = vadd.f32 %v1975, %v2053
        %s2057 = scalar_lea.vmem %s3, 896
        %v2058 = vld [vmem:[%s2057] sm:$0xf]
        %v2059 = vld [vmem:[%s2057 + $0x4] sm:$0xf]
        %v2060 = vld [vmem:[%s2057 + $0x8] sm:$0xf]
        %v2061 = vld [vmem:[%s2057 + $0xc] sm:$0xf]
        %v2062 = vld [vmem:[%s2057 + $0x10] sm:$0xf]
        %v2063 = vld [vmem:[%s2057 + $0x14] sm:$0xf]
        %v2064 = vld [vmem:[%s2057 + $0x18] sm:$0xf]
        %v2065 = vld [vmem:[%s2057 + $0x1c] sm:$0xf]
        %v2066 = vld [vmem:[%s2057 + $0x20] sm:$0xf]
        %v2067 = vld [vmem:[%s2057 + $0x24] sm:$0xf]
        %v2068 = vld [vmem:[%s2057 + $0x28] sm:$0xf]
        %v2069 = vld [vmem:[%s2057 + $0x2c] sm:$0xf]
        %v2070 = vld [vmem:[%s2057 + $0x30] sm:$0xf]
        %v2071 = vld [vmem:[%s2057 + $0x34] sm:$0xf]
        %v2072 = vld [vmem:[%s2057 + $0x38] sm:$0xf]
        %v2073 = vld [vmem:[%s2057 + $0x3c] sm:$0xf]
        %v2074 = vrot.slane %v1569, 3
        %v2092 = vunpack.c.l.b16 %v2058
        %v2093 = vunpack.c.l.b16 %v2059
        %v2094 = vunpack.c.l.b16 %v2060
        %v2095 = vunpack.c.l.b16 %v2061
        %v2096 = vunpack.c.l.b16 %v2062
        %v2097 = vunpack.c.l.b16 %v2063
        %v2098 = vunpack.c.l.b16 %v2064
        %v2099 = vunpack.c.l.b16 %v2065
        %v2100 = vunpack.c.l.b16 %v2066
        %v2101 = vunpack.c.l.b16 %v2067
        %v2102 = vunpack.c.l.b16 %v2068
        %v2103 = vunpack.c.l.b16 %v2069
        %v2104 = vunpack.c.l.b16 %v2070
        %v2105 = vunpack.c.l.b16 %v2071
        %v2106 = vunpack.c.l.b16 %v2072
        %v2107 = vunpack.c.l.b16 %v2073
        %v2108 = vpack.c.b16 %v2093, %v2092
        %v2109 = vpack.c.b16 %v2095, %v2094
        %v2110 = vpack.c.b16 %v2097, %v2096
        %v2111 = vpack.c.b16 %v2099, %v2098
        %v2112 = vpack.c.b16 %v2101, %v2100
        %v2113 = vpack.c.b16 %v2103, %v2102
        %v2114 = vpack.c.b16 %v2105, %v2104
        %v2115 = vpack.c.b16 %v2107, %v2106
        %2124 = vmatpush.bf16.msra.mxu0 %v2115
        %2125 = vmatpush.bf16.msra.mxu0 %v2114
        %2126 = vmatpush.bf16.msra.mxu0 %v2113
        %2127 = vmatpush.bf16.msra.mxu0 %v2112
        %2128 = vmatpush.bf16.msra.mxu0 %v2111
        %2129 = vmatpush.bf16.msra.mxu0 %v2110
        %2130 = vmatpush.bf16.msra.mxu0 %v2109
        %2131 = vmatpush.bf16.msra.mxu0 %v2108
        %2132 = vmatmul.bf16.gmra.mxu0 %v2074
        %v2133 = vpop.f32.mrf.mxu0
        %v2134 = vadd.f32 0.0, %v2133
        %v2135 = vpop.f32.mrf.mxu0
        %2136 = vdwg.mxu0
        %v2137 = vadd.f32 %v2056, %v2134
        %s2138 = scalar_lea.vmem %s3, 960
        %v2139 = vld [vmem:[%s2138] sm:$0xf]
        %v2140 = vld [vmem:[%s2138 + $0x4] sm:$0xf]
        %v2141 = vld [vmem:[%s2138 + $0x8] sm:$0xf]
        %v2142 = vld [vmem:[%s2138 + $0xc] sm:$0xf]
        %v2143 = vld [vmem:[%s2138 + $0x10] sm:$0xf]
        %v2144 = vld [vmem:[%s2138 + $0x14] sm:$0xf]
        %v2145 = vld [vmem:[%s2138 + $0x18] sm:$0xf]
        %v2146 = vld [vmem:[%s2138 + $0x1c] sm:$0xf]
        %v2147 = vld [vmem:[%s2138 + $0x20] sm:$0xf]
        %v2148 = vld [vmem:[%s2138 + $0x24] sm:$0xf]
        %v2149 = vld [vmem:[%s2138 + $0x28] sm:$0xf]
        %v2150 = vld [vmem:[%s2138 + $0x2c] sm:$0xf]
        %v2151 = vld [vmem:[%s2138 + $0x30] sm:$0xf]
        %v2152 = vld [vmem:[%s2138 + $0x34] sm:$0xf]
        %v2153 = vld [vmem:[%s2138 + $0x38] sm:$0xf]
        %v2154 = vld [vmem:[%s2138 + $0x3c] sm:$0xf]
        %v2155 = vrot.slane %v1667, 3
        %v2173 = vunpack.c.l.b16 %v2139
        %v2174 = vunpack.c.l.b16 %v2140
        %v2175 = vunpack.c.l.b16 %v2141
        %v2176 = vunpack.c.l.b16 %v2142
        %v2177 = vunpack.c.l.b16 %v2143
        %v2178 = vunpack.c.l.b16 %v2144
        %v2179 = vunpack.c.l.b16 %v2145
        %v2180 = vunpack.c.l.b16 %v2146
        %v2181 = vunpack.c.l.b16 %v2147
        %v2182 = vunpack.c.l.b16 %v2148
        %v2183 = vunpack.c.l.b16 %v2149
        %v2184 = vunpack.c.l.b16 %v2150
        %v2185 = vunpack.c.l.b16 %v2151
        %v2186 = vunpack.c.l.b16 %v2152
        %v2187 = vunpack.c.l.b16 %v2153
        %v2188 = vunpack.c.l.b16 %v2154
        %v2189 = vpack.c.b16 %v2174, %v2173
        %v2190 = vpack.c.b16 %v2176, %v2175
        %v2191 = vpack.c.b16 %v2178, %v2177
        %v2192 = vpack.c.b16 %v2180, %v2179
        %v2193 = vpack.c.b16 %v2182, %v2181
        %v2194 = vpack.c.b16 %v2184, %v2183
        %v2195 = vpack.c.b16 %v2186, %v2185
        %v2196 = vpack.c.b16 %v2188, %v2187
        %2205 = vmatpush.bf16.msra.mxu0 %v2196
        %2206 = vmatpush.bf16.msra.mxu0 %v2195
        %2207 = vmatpush.bf16.msra.mxu0 %v2194
        %2208 = vmatpush.bf16.msra.mxu0 %v2193
        %2209 = vmatpush.bf16.msra.mxu0 %v2192
        %2210 = vmatpush.bf16.msra.mxu0 %v2191
        %2211 = vmatpush.bf16.msra.mxu0 %v2190
        %2212 = vmatpush.bf16.msra.mxu0 %v2189
        %2213 = vmatmul.bf16.gmra.mxu0 %v2155
        %v2214 = vpop.f32.mrf.mxu0
        %v2215 = vadd.f32 0.0, %v2214
        %v2216 = vpop.f32.mrf.mxu0
        %2217 = vdwg.mxu0
        %v2218 = vadd.f32 %v2137, %v2215
        %v2219 = vpack.c.bf16 %v919, %v919
        %s2220 = scalar_lea.vmem %s3, 1024
        %v2221 = vld [vmem:[%s2220] sm:$0xf]
        %v2222 = vld [vmem:[%s2220 + $0x4] sm:$0xf]
        %v2223 = vld [vmem:[%s2220 + $0x8] sm:$0xf]
        %v2224 = vld [vmem:[%s2220 + $0xc] sm:$0xf]
        %v2225 = vld [vmem:[%s2220 + $0x10] sm:$0xf]
        %v2226 = vld [vmem:[%s2220 + $0x14] sm:$0xf]
        %v2227 = vld [vmem:[%s2220 + $0x18] sm:$0xf]
        %v2228 = vld [vmem:[%s2220 + $0x1c] sm:$0xf]
        %v2229 = vld [vmem:[%s2220 + $0x20] sm:$0xf]
        %v2230 = vld [vmem:[%s2220 + $0x24] sm:$0xf]
        %v2231 = vld [vmem:[%s2220 + $0x28] sm:$0xf]
        %v2232 = vld [vmem:[%s2220 + $0x2c] sm:$0xf]
        %v2233 = vld [vmem:[%s2220 + $0x30] sm:$0xf]
        %v2234 = vld [vmem:[%s2220 + $0x34] sm:$0xf]
        %v2235 = vld [vmem:[%s2220 + $0x38] sm:$0xf]
        %v2236 = vld [vmem:[%s2220 + $0x3c] sm:$0xf]
        %v2253 = vunpack.c.l.b16 %v2221
        %v2254 = vunpack.c.l.b16 %v2222
        %v2255 = vunpack.c.l.b16 %v2223
        %v2256 = vunpack.c.l.b16 %v2224
        %v2257 = vunpack.c.l.b16 %v2225
        %v2258 = vunpack.c.l.b16 %v2226
        %v2259 = vunpack.c.l.b16 %v2227
        %v2260 = vunpack.c.l.b16 %v2228
        %v2261 = vunpack.c.l.b16 %v2229
        %v2262 = vunpack.c.l.b16 %v2230
        %v2263 = vunpack.c.l.b16 %v2231
        %v2264 = vunpack.c.l.b16 %v2232
        %v2265 = vunpack.c.l.b16 %v2233
        %v2266 = vunpack.c.l.b16 %v2234
        %v2267 = vunpack.c.l.b16 %v2235
        %v2268 = vunpack.c.l.b16 %v2236
        %v2269 = vpack.c.b16 %v2254, %v2253
        %v2270 = vpack.c.b16 %v2256, %v2255
        %v2271 = vpack.c.b16 %v2258, %v2257
        %v2272 = vpack.c.b16 %v2260, %v2259
        %v2273 = vpack.c.b16 %v2262, %v2261
        %v2274 = vpack.c.b16 %v2264, %v2263
        %v2275 = vpack.c.b16 %v2266, %v2265
        %v2276 = vpack.c.b16 %v2268, %v2267
        %2285 = vmatpush.bf16.msra.mxu0 %v2276
        %2286 = vmatpush.bf16.msra.mxu0 %v2275
        %2287 = vmatpush.bf16.msra.mxu0 %v2274
        %2288 = vmatpush.bf16.msra.mxu0 %v2273
        %2289 = vmatpush.bf16.msra.mxu0 %v2272
        %2290 = vmatpush.bf16.msra.mxu0 %v2271
        %2291 = vmatpush.bf16.msra.mxu0 %v2270
        %2292 = vmatpush.bf16.msra.mxu0 %v2269
        %2293 = vmatmul.bf16.gmra.mxu0 %v2219
        %v2294 = vpop.f32.mrf.mxu0
        %v2295 = vadd.f32 0.0, %v2294
        %v2296 = vpop.f32.mrf.mxu0
        %2297 = vdwg.mxu0
        %v2298 = vadd.f32 %v2218, %v2295
        %s2299 = scalar_lea.vmem %s3, 1088
        %v2300 = vld [vmem:[%s2299] sm:$0xf]
        %v2301 = vld [vmem:[%s2299 + $0x4] sm:$0xf]
        %v2302 = vld [vmem:[%s2299 + $0x8] sm:$0xf]
        %v2303 = vld [vmem:[%s2299 + $0xc] sm:$0xf]
        %v2304 = vld [vmem:[%s2299 + $0x10] sm:$0xf]
        %v2305 = vld [vmem:[%s2299 + $0x14] sm:$0xf]
        %v2306 = vld [vmem:[%s2299 + $0x18] sm:$0xf]
        %v2307 = vld [vmem:[%s2299 + $0x1c] sm:$0xf]
        %v2308 = vld [vmem:[%s2299 + $0x20] sm:$0xf]
        %v2309 = vld [vmem:[%s2299 + $0x24] sm:$0xf]
        %v2310 = vld [vmem:[%s2299 + $0x28] sm:$0xf]
        %v2311 = vld [vmem:[%s2299 + $0x2c] sm:$0xf]
        %v2312 = vld [vmem:[%s2299 + $0x30] sm:$0xf]
        %v2313 = vld [vmem:[%s2299 + $0x34] sm:$0xf]
        %v2314 = vld [vmem:[%s2299 + $0x38] sm:$0xf]
        %v2315 = vld [vmem:[%s2299 + $0x3c] sm:$0xf]
        %v2317 = vshrl.u32 %v2219, 16
        %v2336 = vunpack.c.l.b16 %v2300
        %v2337 = vunpack.c.l.b16 %v2301
        %v2338 = vunpack.c.l.b16 %v2302
        %v2339 = vunpack.c.l.b16 %v2303
        %v2340 = vunpack.c.l.b16 %v2304
        %v2341 = vunpack.c.l.b16 %v2305
        %v2342 = vunpack.c.l.b16 %v2306
        %v2343 = vunpack.c.l.b16 %v2307
        %v2344 = vunpack.c.l.b16 %v2308
        %v2345 = vunpack.c.l.b16 %v2309
        %v2346 = vunpack.c.l.b16 %v2310
        %v2347 = vunpack.c.l.b16 %v2311
        %v2348 = vunpack.c.l.b16 %v2312
        %v2349 = vunpack.c.l.b16 %v2313
        %v2350 = vunpack.c.l.b16 %v2314
        %v2351 = vunpack.c.l.b16 %v2315
        %v2352 = vpack.c.b16 %v2337, %v2336
        %v2353 = vpack.c.b16 %v2339, %v2338
        %v2354 = vpack.c.b16 %v2341, %v2340
        %v2355 = vpack.c.b16 %v2343, %v2342
        %v2356 = vpack.c.b16 %v2345, %v2344
        %v2357 = vpack.c.b16 %v2347, %v2346
        %v2358 = vpack.c.b16 %v2349, %v2348
        %v2359 = vpack.c.b16 %v2351, %v2350
        %2368 = vmatpush.bf16.msra.mxu0 %v2359
        %2369 = vmatpush.bf16.msra.mxu0 %v2358
        %2370 = vmatpush.bf16.msra.mxu0 %v2357
        %2371 = vmatpush.bf16.msra.mxu0 %v2356
        %2372 = vmatpush.bf16.msra.mxu0 %v2355
        %2373 = vmatpush.bf16.msra.mxu0 %v2354
        %2374 = vmatpush.bf16.msra.mxu0 %v2353
        %2375 = vmatpush.bf16.msra.mxu0 %v2352
        %2376 = vmatmul.bf16.gmra.mxu0 %v2317
        %v2377 = vpop.f32.mrf.mxu0
        %v2378 = vadd.f32 0.0, %v2377
        %v2379 = vpop.f32.mrf.mxu0
        %2380 = vdwg.mxu0
        %v2381 = vadd.f32 %v2298, %v2378
        %s2382 = scalar_lea.vmem %s3, 1152
        %v2383 = vld [vmem:[%s2382] sm:$0xf]
        %v2384 = vld [vmem:[%s2382 + $0x4] sm:$0xf]
        %v2385 = vld [vmem:[%s2382 + $0x8] sm:$0xf]
        %v2386 = vld [vmem:[%s2382 + $0xc] sm:$0xf]
        %v2387 = vld [vmem:[%s2382 + $0x10] sm:$0xf]
        %v2388 = vld [vmem:[%s2382 + $0x14] sm:$0xf]
        %v2389 = vld [vmem:[%s2382 + $0x18] sm:$0xf]
        %v2390 = vld [vmem:[%s2382 + $0x1c] sm:$0xf]
        %v2391 = vld [vmem:[%s2382 + $0x20] sm:$0xf]
        %v2392 = vld [vmem:[%s2382 + $0x24] sm:$0xf]
        %v2393 = vld [vmem:[%s2382 + $0x28] sm:$0xf]
        %v2394 = vld [vmem:[%s2382 + $0x2c] sm:$0xf]
        %v2395 = vld [vmem:[%s2382 + $0x30] sm:$0xf]
        %v2396 = vld [vmem:[%s2382 + $0x34] sm:$0xf]
        %v2397 = vld [vmem:[%s2382 + $0x38] sm:$0xf]
        %v2398 = vld [vmem:[%s2382 + $0x3c] sm:$0xf]
        %v2400 = vrot.slane %v2219, 1
        %v2418 = vunpack.c.l.b16 %v2383
        %v2419 = vunpack.c.l.b16 %v2384
        %v2420 = vunpack.c.l.b16 %v2385
        %v2421 = vunpack.c.l.b16 %v2386
        %v2422 = vunpack.c.l.b16 %v2387
        %v2423 = vunpack.c.l.b16 %v2388
        %v2424 = vunpack.c.l.b16 %v2389
        %v2425 = vunpack.c.l.b16 %v2390
        %v2426 = vunpack.c.l.b16 %v2391
        %v2427 = vunpack.c.l.b16 %v2392
        %v2428 = vunpack.c.l.b16 %v2393
        %v2429 = vunpack.c.l.b16 %v2394
        %v2430 = vunpack.c.l.b16 %v2395
        %v2431 = vunpack.c.l.b16 %v2396
        %v2432 = vunpack.c.l.b16 %v2397
        %v2433 = vunpack.c.l.b16 %v2398
        %v2434 = vpack.c.b16 %v2419, %v2418
        %v2435 = vpack.c.b16 %v2421, %v2420
        %v2436 = vpack.c.b16 %v2423, %v2422
        %v2437 = vpack.c.b16 %v2425, %v2424
        %v2438 = vpack.c.b16 %v2427, %v2426
        %v2439 = vpack.c.b16 %v2429, %v2428
        %v2440 = vpack.c.b16 %v2431, %v2430
        %v2441 = vpack.c.b16 %v2433, %v2432
        %2450 = vmatpush.bf16.msra.mxu0 %v2441
        %2451 = vmatpush.bf16.msra.mxu0 %v2440
        %2452 = vmatpush.bf16.msra.mxu0 %v2439
        %2453 = vmatpush.bf16.msra.mxu0 %v2438
        %2454 = vmatpush.bf16.msra.mxu0 %v2437
        %2455 = vmatpush.bf16.msra.mxu0 %v2436
        %2456 = vmatpush.bf16.msra.mxu0 %v2435
        %2457 = vmatpush.bf16.msra.mxu0 %v2434
        %2458 = vmatmul.bf16.gmra.mxu0 %v2400
        %v2459 = vpop.f32.mrf.mxu0
        %v2460 = vadd.f32 0.0, %v2459
        %v2461 = vpop.f32.mrf.mxu0
        %2462 = vdwg.mxu0
        %v2463 = vadd.f32 %v2381, %v2460
        %s2464 = scalar_lea.vmem %s3, 1216
        %v2465 = vld [vmem:[%s2464] sm:$0xf]
        %v2466 = vld [vmem:[%s2464 + $0x4] sm:$0xf]
        %v2467 = vld [vmem:[%s2464 + $0x8] sm:$0xf]
        %v2468 = vld [vmem:[%s2464 + $0xc] sm:$0xf]
        %v2469 = vld [vmem:[%s2464 + $0x10] sm:$0xf]
        %v2470 = vld [vmem:[%s2464 + $0x14] sm:$0xf]
        %v2471 = vld [vmem:[%s2464 + $0x18] sm:$0xf]
        %v2472 = vld [vmem:[%s2464 + $0x1c] sm:$0xf]
        %v2473 = vld [vmem:[%s2464 + $0x20] sm:$0xf]
        %v2474 = vld [vmem:[%s2464 + $0x24] sm:$0xf]
        %v2475 = vld [vmem:[%s2464 + $0x28] sm:$0xf]
        %v2476 = vld [vmem:[%s2464 + $0x2c] sm:$0xf]
        %v2477 = vld [vmem:[%s2464 + $0x30] sm:$0xf]
        %v2478 = vld [vmem:[%s2464 + $0x34] sm:$0xf]
        %v2479 = vld [vmem:[%s2464 + $0x38] sm:$0xf]
        %v2480 = vld [vmem:[%s2464 + $0x3c] sm:$0xf]
        %v2481 = vrot.slane %v2317, 1
        %v2499 = vunpack.c.l.b16 %v2465
        %v2500 = vunpack.c.l.b16 %v2466
        %v2501 = vunpack.c.l.b16 %v2467
        %v2502 = vunpack.c.l.b16 %v2468
        %v2503 = vunpack.c.l.b16 %v2469
        %v2504 = vunpack.c.l.b16 %v2470
        %v2505 = vunpack.c.l.b16 %v2471
        %v2506 = vunpack.c.l.b16 %v2472
        %v2507 = vunpack.c.l.b16 %v2473
        %v2508 = vunpack.c.l.b16 %v2474
        %v2509 = vunpack.c.l.b16 %v2475
        %v2510 = vunpack.c.l.b16 %v2476
        %v2511 = vunpack.c.l.b16 %v2477
        %v2512 = vunpack.c.l.b16 %v2478
        %v2513 = vunpack.c.l.b16 %v2479
        %v2514 = vunpack.c.l.b16 %v2480
        %v2515 = vpack.c.b16 %v2500, %v2499
        %v2516 = vpack.c.b16 %v2502, %v2501
        %v2517 = vpack.c.b16 %v2504, %v2503
        %v2518 = vpack.c.b16 %v2506, %v2505
        %v2519 = vpack.c.b16 %v2508, %v2507
        %v2520 = vpack.c.b16 %v2510, %v2509
        %v2521 = vpack.c.b16 %v2512, %v2511
        %v2522 = vpack.c.b16 %v2514, %v2513
        %2531 = vmatpush.bf16.msra.mxu0 %v2522
        %2532 = vmatpush.bf16.msra.mxu0 %v2521
        %2533 = vmatpush.bf16.msra.mxu0 %v2520
        %2534 = vmatpush.bf16.msra.mxu0 %v2519
        %2535 = vmatpush.bf16.msra.mxu0 %v2518
        %2536 = vmatpush.bf16.msra.mxu0 %v2517
        %2537 = vmatpush.bf16.msra.mxu0 %v2516
        %2538 = vmatpush.bf16.msra.mxu0 %v2515
        %2539 = vmatmul.bf16.gmra.mxu0 %v2481
        %v2540 = vpop.f32.mrf.mxu0
        %v2541 = vadd.f32 0.0, %v2540
        %v2542 = vpop.f32.mrf.mxu0
        %2543 = vdwg.mxu0
        %v2544 = vadd.f32 %v2463, %v2541
        %s2545 = scalar_lea.vmem %s3, 1280
        %v2546 = vld [vmem:[%s2545] sm:$0xf]
        %v2547 = vld [vmem:[%s2545 + $0x4] sm:$0xf]
        %v2548 = vld [vmem:[%s2545 + $0x8] sm:$0xf]
        %v2549 = vld [vmem:[%s2545 + $0xc] sm:$0xf]
        %v2550 = vld [vmem:[%s2545 + $0x10] sm:$0xf]
        %v2551 = vld [vmem:[%s2545 + $0x14] sm:$0xf]
        %v2552 = vld [vmem:[%s2545 + $0x18] sm:$0xf]
        %v2553 = vld [vmem:[%s2545 + $0x1c] sm:$0xf]
        %v2554 = vld [vmem:[%s2545 + $0x20] sm:$0xf]
        %v2555 = vld [vmem:[%s2545 + $0x24] sm:$0xf]
        %v2556 = vld [vmem:[%s2545 + $0x28] sm:$0xf]
        %v2557 = vld [vmem:[%s2545 + $0x2c] sm:$0xf]
        %v2558 = vld [vmem:[%s2545 + $0x30] sm:$0xf]
        %v2559 = vld [vmem:[%s2545 + $0x34] sm:$0xf]
        %v2560 = vld [vmem:[%s2545 + $0x38] sm:$0xf]
        %v2561 = vld [vmem:[%s2545 + $0x3c] sm:$0xf]
        %v2562 = vrot.slane %v2219, 2
        %v2580 = vunpack.c.l.b16 %v2546
        %v2581 = vunpack.c.l.b16 %v2547
        %v2582 = vunpack.c.l.b16 %v2548
        %v2583 = vunpack.c.l.b16 %v2549
        %v2584 = vunpack.c.l.b16 %v2550
        %v2585 = vunpack.c.l.b16 %v2551
        %v2586 = vunpack.c.l.b16 %v2552
        %v2587 = vunpack.c.l.b16 %v2553
        %v2588 = vunpack.c.l.b16 %v2554
        %v2589 = vunpack.c.l.b16 %v2555
        %v2590 = vunpack.c.l.b16 %v2556
        %v2591 = vunpack.c.l.b16 %v2557
        %v2592 = vunpack.c.l.b16 %v2558
        %v2593 = vunpack.c.l.b16 %v2559
        %v2594 = vunpack.c.l.b16 %v2560
        %v2595 = vunpack.c.l.b16 %v2561
        %v2596 = vpack.c.b16 %v2581, %v2580
        %v2597 = vpack.c.b16 %v2583, %v2582
        %v2598 = vpack.c.b16 %v2585, %v2584
        %v2599 = vpack.c.b16 %v2587, %v2586
        %v2600 = vpack.c.b16 %v2589, %v2588
        %v2601 = vpack.c.b16 %v2591, %v2590
        %v2602 = vpack.c.b16 %v2593, %v2592
        %v2603 = vpack.c.b16 %v2595, %v2594
        %2612 = vmatpush.bf16.msra.mxu0 %v2603
        %2613 = vmatpush.bf16.msra.mxu0 %v2602
        %2614 = vmatpush.bf16.msra.mxu0 %v2601
        %2615 = vmatpush.bf16.msra.mxu0 %v2600
        %2616 = vmatpush.bf16.msra.mxu0 %v2599
        %2617 = vmatpush.bf16.msra.mxu0 %v2598
        %2618 = vmatpush.bf16.msra.mxu0 %v2597
        %2619 = vmatpush.bf16.msra.mxu0 %v2596
        %2620 = vmatmul.bf16.gmra.mxu0 %v2562
        %v2621 = vpop.f32.mrf.mxu0
        %v2622 = vadd.f32 0.0, %v2621
        %v2623 = vpop.f32.mrf.mxu0
        %2624 = vdwg.mxu0
        %v2625 = vadd.f32 %v2544, %v2622
        %s2626 = scalar_lea.vmem %s3, 1344
        %v2627 = vld [vmem:[%s2626] sm:$0xf]
        %v2628 = vld [vmem:[%s2626 + $0x4] sm:$0xf]
        %v2629 = vld [vmem:[%s2626 + $0x8] sm:$0xf]
        %v2630 = vld [vmem:[%s2626 + $0xc] sm:$0xf]
        %v2631 = vld [vmem:[%s2626 + $0x10] sm:$0xf]
        %v2632 = vld [vmem:[%s2626 + $0x14] sm:$0xf]
        %v2633 = vld [vmem:[%s2626 + $0x18] sm:$0xf]
        %v2634 = vld [vmem:[%s2626 + $0x1c] sm:$0xf]
        %v2635 = vld [vmem:[%s2626 + $0x20] sm:$0xf]
        %v2636 = vld [vmem:[%s2626 + $0x24] sm:$0xf]
        %v2637 = vld [vmem:[%s2626 + $0x28] sm:$0xf]
        %v2638 = vld [vmem:[%s2626 + $0x2c] sm:$0xf]
        %v2639 = vld [vmem:[%s2626 + $0x30] sm:$0xf]
        %v2640 = vld [vmem:[%s2626 + $0x34] sm:$0xf]
        %v2641 = vld [vmem:[%s2626 + $0x38] sm:$0xf]
        %v2642 = vld [vmem:[%s2626 + $0x3c] sm:$0xf]
        %v2643 = vrot.slane %v2317, 2
        %v2661 = vunpack.c.l.b16 %v2627
        %v2662 = vunpack.c.l.b16 %v2628
        %v2663 = vunpack.c.l.b16 %v2629
        %v2664 = vunpack.c.l.b16 %v2630
        %v2665 = vunpack.c.l.b16 %v2631
        %v2666 = vunpack.c.l.b16 %v2632
        %v2667 = vunpack.c.l.b16 %v2633
        %v2668 = vunpack.c.l.b16 %v2634
        %v2669 = vunpack.c.l.b16 %v2635
        %v2670 = vunpack.c.l.b16 %v2636
        %v2671 = vunpack.c.l.b16 %v2637
        %v2672 = vunpack.c.l.b16 %v2638
        %v2673 = vunpack.c.l.b16 %v2639
        %v2674 = vunpack.c.l.b16 %v2640
        %v2675 = vunpack.c.l.b16 %v2641
        %v2676 = vunpack.c.l.b16 %v2642
        %v2677 = vpack.c.b16 %v2662, %v2661
        %v2678 = vpack.c.b16 %v2664, %v2663
        %v2679 = vpack.c.b16 %v2666, %v2665
        %v2680 = vpack.c.b16 %v2668, %v2667
        %v2681 = vpack.c.b16 %v2670, %v2669
        %v2682 = vpack.c.b16 %v2672, %v2671
        %v2683 = vpack.c.b16 %v2674, %v2673
        %v2684 = vpack.c.b16 %v2676, %v2675
        %2693 = vmatpush.bf16.msra.mxu0 %v2684
        %2694 = vmatpush.bf16.msra.mxu0 %v2683
        %2695 = vmatpush.bf16.msra.mxu0 %v2682
        %2696 = vmatpush.bf16.msra.mxu0 %v2681
        %2697 = vmatpush.bf16.msra.mxu0 %v2680
        %2698 = vmatpush.bf16.msra.mxu0 %v2679
        %2699 = vmatpush.bf16.msra.mxu0 %v2678
        %2700 = vmatpush.bf16.msra.mxu0 %v2677
        %2701 = vmatmul.bf16.gmra.mxu0 %v2643
        %v2702 = vpop.f32.mrf.mxu0
        %v2703 = vadd.f32 0.0, %v2702
        %v2704 = vpop.f32.mrf.mxu0
        %2705 = vdwg.mxu0
        %v2706 = vadd.f32 %v2625, %v2703
        %s2707 = scalar_lea.vmem %s3, 1408
        %v2708 = vld [vmem:[%s2707] sm:$0xf]
        %v2709 = vld [vmem:[%s2707 + $0x4] sm:$0xf]
        %v2710 = vld [vmem:[%s2707 + $0x8] sm:$0xf]
        %v2711 = vld [vmem:[%s2707 + $0xc] sm:$0xf]
        %v2712 = vld [vmem:[%s2707 + $0x10] sm:$0xf]
        %v2713 = vld [vmem:[%s2707 + $0x14] sm:$0xf]
        %v2714 = vld [vmem:[%s2707 + $0x18] sm:$0xf]
        %v2715 = vld [vmem:[%s2707 + $0x1c] sm:$0xf]
        %v2716 = vld [vmem:[%s2707 + $0x20] sm:$0xf]
        %v2717 = vld [vmem:[%s2707 + $0x24] sm:$0xf]
        %v2718 = vld [vmem:[%s2707 + $0x28] sm:$0xf]
        %v2719 = vld [vmem:[%s2707 + $0x2c] sm:$0xf]
        %v2720 = vld [vmem:[%s2707 + $0x30] sm:$0xf]
        %v2721 = vld [vmem:[%s2707 + $0x34] sm:$0xf]
        %v2722 = vld [vmem:[%s2707 + $0x38] sm:$0xf]
        %v2723 = vld [vmem:[%s2707 + $0x3c] sm:$0xf]
        %v2724 = vrot.slane %v2219, 3
        %v2742 = vunpack.c.l.b16 %v2708
        %v2743 = vunpack.c.l.b16 %v2709
        %v2744 = vunpack.c.l.b16 %v2710
        %v2745 = vunpack.c.l.b16 %v2711
        %v2746 = vunpack.c.l.b16 %v2712
        %v2747 = vunpack.c.l.b16 %v2713
        %v2748 = vunpack.c.l.b16 %v2714
        %v2749 = vunpack.c.l.b16 %v2715
        %v2750 = vunpack.c.l.b16 %v2716
        %v2751 = vunpack.c.l.b16 %v2717
        %v2752 = vunpack.c.l.b16 %v2718
        %v2753 = vunpack.c.l.b16 %v2719
        %v2754 = vunpack.c.l.b16 %v2720
        %v2755 = vunpack.c.l.b16 %v2721
        %v2756 = vunpack.c.l.b16 %v2722
        %v2757 = vunpack.c.l.b16 %v2723
        %v2758 = vpack.c.b16 %v2743, %v2742
        %v2759 = vpack.c.b16 %v2745, %v2744
        %v2760 = vpack.c.b16 %v2747, %v2746
        %v2761 = vpack.c.b16 %v2749, %v2748
        %v2762 = vpack.c.b16 %v2751, %v2750
        %v2763 = vpack.c.b16 %v2753, %v2752
        %v2764 = vpack.c.b16 %v2755, %v2754
        %v2765 = vpack.c.b16 %v2757, %v2756
        %2774 = vmatpush.bf16.msra.mxu0 %v2765
        %2775 = vmatpush.bf16.msra.mxu0 %v2764
        %2776 = vmatpush.bf16.msra.mxu0 %v2763
        %2777 = vmatpush.bf16.msra.mxu0 %v2762
        %2778 = vmatpush.bf16.msra.mxu0 %v2761
        %2779 = vmatpush.bf16.msra.mxu0 %v2760
        %2780 = vmatpush.bf16.msra.mxu0 %v2759
        %2781 = vmatpush.bf16.msra.mxu0 %v2758
        %2782 = vmatmul.bf16.gmra.mxu0 %v2724
        %v2783 = vpop.f32.mrf.mxu0
        %v2784 = vadd.f32 0.0, %v2783
        %v2785 = vpop.f32.mrf.mxu0
        %2786 = vdwg.mxu0
        %v2787 = vadd.f32 %v2706, %v2784
        %s2788 = scalar_lea.vmem %s3, 1472
        %v2789 = vld [vmem:[%s2788] sm:$0xf]
        %v2790 = vld [vmem:[%s2788 + $0x4] sm:$0xf]
        %v2791 = vld [vmem:[%s2788 + $0x8] sm:$0xf]
        %v2792 = vld [vmem:[%s2788 + $0xc] sm:$0xf]
        %v2793 = vld [vmem:[%s2788 + $0x10] sm:$0xf]
        %v2794 = vld [vmem:[%s2788 + $0x14] sm:$0xf]
        %v2795 = vld [vmem:[%s2788 + $0x18] sm:$0xf]
        %v2796 = vld [vmem:[%s2788 + $0x1c] sm:$0xf]
        %v2797 = vld [vmem:[%s2788 + $0x20] sm:$0xf]
        %v2798 = vld [vmem:[%s2788 + $0x24] sm:$0xf]
        %v2799 = vld [vmem:[%s2788 + $0x28] sm:$0xf]
        %v2800 = vld [vmem:[%s2788 + $0x2c] sm:$0xf]
        %v2801 = vld [vmem:[%s2788 + $0x30] sm:$0xf]
        %v2802 = vld [vmem:[%s2788 + $0x34] sm:$0xf]
        %v2803 = vld [vmem:[%s2788 + $0x38] sm:$0xf]
        %v2804 = vld [vmem:[%s2788 + $0x3c] sm:$0xf]
        %v2805 = vrot.slane %v2317, 3
        %v2823 = vunpack.c.l.b16 %v2789
        %v2824 = vunpack.c.l.b16 %v2790
        %v2825 = vunpack.c.l.b16 %v2791
        %v2826 = vunpack.c.l.b16 %v2792
        %v2827 = vunpack.c.l.b16 %v2793
        %v2828 = vunpack.c.l.b16 %v2794
        %v2829 = vunpack.c.l.b16 %v2795
        %v2830 = vunpack.c.l.b16 %v2796
        %v2831 = vunpack.c.l.b16 %v2797
        %v2832 = vunpack.c.l.b16 %v2798
        %v2833 = vunpack.c.l.b16 %v2799
        %v2834 = vunpack.c.l.b16 %v2800
        %v2835 = vunpack.c.l.b16 %v2801
        %v2836 = vunpack.c.l.b16 %v2802
        %v2837 = vunpack.c.l.b16 %v2803
        %v2838 = vunpack.c.l.b16 %v2804
        %v2839 = vpack.c.b16 %v2824, %v2823
        %v2840 = vpack.c.b16 %v2826, %v2825
        %v2841 = vpack.c.b16 %v2828, %v2827
        %v2842 = vpack.c.b16 %v2830, %v2829
        %v2843 = vpack.c.b16 %v2832, %v2831
        %v2844 = vpack.c.b16 %v2834, %v2833
        %v2845 = vpack.c.b16 %v2836, %v2835
        %v2846 = vpack.c.b16 %v2838, %v2837
        %2855 = vmatpush.bf16.msra.mxu0 %v2846
        %2856 = vmatpush.bf16.msra.mxu0 %v2845
        %2857 = vmatpush.bf16.msra.mxu0 %v2844
        %2858 = vmatpush.bf16.msra.mxu0 %v2843
        %2859 = vmatpush.bf16.msra.mxu0 %v2842
        %2860 = vmatpush.bf16.msra.mxu0 %v2841
        %2861 = vmatpush.bf16.msra.mxu0 %v2840
        %2862 = vmatpush.bf16.msra.mxu0 %v2839
        %2863 = vmatmul.bf16.gmra.mxu0 %v2805
        %v2864 = vpop.f32.mrf.mxu0
        %v2865 = vadd.f32 0.0, %v2864
        %v2866 = vpop.f32.mrf.mxu0
        %2867 = vdwg.mxu0
        %v2868 = vadd.f32 %v2787, %v2865
        %v2869 = vpack.c.bf16 %v920, %v920
        %s2870 = scalar_lea.vmem %s3, 1536
        %v2871 = vld [vmem:[%s2870] sm:$0xf]
        %v2872 = vld [vmem:[%s2870 + $0x4] sm:$0xf]
        %v2873 = vld [vmem:[%s2870 + $0x8] sm:$0xf]
        %v2874 = vld [vmem:[%s2870 + $0xc] sm:$0xf]
        %v2875 = vld [vmem:[%s2870 + $0x10] sm:$0xf]
        %v2876 = vld [vmem:[%s2870 + $0x14] sm:$0xf]
        %v2877 = vld [vmem:[%s2870 + $0x18] sm:$0xf]
        %v2878 = vld [vmem:[%s2870 + $0x1c] sm:$0xf]
        %v2879 = vld [vmem:[%s2870 + $0x20] sm:$0xf]
        %v2880 = vld [vmem:[%s2870 + $0x24] sm:$0xf]
        %v2881 = vld [vmem:[%s2870 + $0x28] sm:$0xf]
        %v2882 = vld [vmem:[%s2870 + $0x2c] sm:$0xf]
        %v2883 = vld [vmem:[%s2870 + $0x30] sm:$0xf]
        %v2884 = vld [vmem:[%s2870 + $0x34] sm:$0xf]
        %v2885 = vld [vmem:[%s2870 + $0x38] sm:$0xf]
        %v2886 = vld [vmem:[%s2870 + $0x3c] sm:$0xf]
        %v2903 = vunpack.c.l.b16 %v2871
        %v2904 = vunpack.c.l.b16 %v2872
        %v2905 = vunpack.c.l.b16 %v2873
        %v2906 = vunpack.c.l.b16 %v2874
        %v2907 = vunpack.c.l.b16 %v2875
        %v2908 = vunpack.c.l.b16 %v2876
        %v2909 = vunpack.c.l.b16 %v2877
        %v2910 = vunpack.c.l.b16 %v2878
        %v2911 = vunpack.c.l.b16 %v2879
        %v2912 = vunpack.c.l.b16 %v2880
        %v2913 = vunpack.c.l.b16 %v2881
        %v2914 = vunpack.c.l.b16 %v2882
        %v2915 = vunpack.c.l.b16 %v2883
        %v2916 = vunpack.c.l.b16 %v2884
        %v2917 = vunpack.c.l.b16 %v2885
        %v2918 = vunpack.c.l.b16 %v2886
        %v2919 = vpack.c.b16 %v2904, %v2903
        %v2920 = vpack.c.b16 %v2906, %v2905
        %v2921 = vpack.c.b16 %v2908, %v2907
        %v2922 = vpack.c.b16 %v2910, %v2909
        %v2923 = vpack.c.b16 %v2912, %v2911
        %v2924 = vpack.c.b16 %v2914, %v2913
        %v2925 = vpack.c.b16 %v2916, %v2915
        %v2926 = vpack.c.b16 %v2918, %v2917
        %2935 = vmatpush.bf16.msra.mxu0 %v2926
        %2936 = vmatpush.bf16.msra.mxu0 %v2925
        %2937 = vmatpush.bf16.msra.mxu0 %v2924
        %2938 = vmatpush.bf16.msra.mxu0 %v2923
        %2939 = vmatpush.bf16.msra.mxu0 %v2922
        %2940 = vmatpush.bf16.msra.mxu0 %v2921
        %2941 = vmatpush.bf16.msra.mxu0 %v2920
        %2942 = vmatpush.bf16.msra.mxu0 %v2919
        %2943 = vmatmul.bf16.gmra.mxu0 %v2869
        %v2944 = vpop.f32.mrf.mxu0
        %v2945 = vadd.f32 0.0, %v2944
        %v2946 = vpop.f32.mrf.mxu0
        %2947 = vdwg.mxu0
        %v2948 = vadd.f32 %v2868, %v2945
        %s2949 = scalar_lea.vmem %s3, 1600
        %v2950 = vld [vmem:[%s2949] sm:$0xf]
        %v2951 = vld [vmem:[%s2949 + $0x4] sm:$0xf]
        %v2952 = vld [vmem:[%s2949 + $0x8] sm:$0xf]
        %v2953 = vld [vmem:[%s2949 + $0xc] sm:$0xf]
        %v2954 = vld [vmem:[%s2949 + $0x10] sm:$0xf]
        %v2955 = vld [vmem:[%s2949 + $0x14] sm:$0xf]
        %v2956 = vld [vmem:[%s2949 + $0x18] sm:$0xf]
        %v2957 = vld [vmem:[%s2949 + $0x1c] sm:$0xf]
        %v2958 = vld [vmem:[%s2949 + $0x20] sm:$0xf]
        %v2959 = vld [vmem:[%s2949 + $0x24] sm:$0xf]
        %v2960 = vld [vmem:[%s2949 + $0x28] sm:$0xf]
        %v2961 = vld [vmem:[%s2949 + $0x2c] sm:$0xf]
        %v2962 = vld [vmem:[%s2949 + $0x30] sm:$0xf]
        %v2963 = vld [vmem:[%s2949 + $0x34] sm:$0xf]
        %v2964 = vld [vmem:[%s2949 + $0x38] sm:$0xf]
        %v2965 = vld [vmem:[%s2949 + $0x3c] sm:$0xf]
        %v2967 = vshrl.u32 %v2869, 16
        %v2986 = vunpack.c.l.b16 %v2950
        %v2987 = vunpack.c.l.b16 %v2951
        %v2988 = vunpack.c.l.b16 %v2952
        %v2989 = vunpack.c.l.b16 %v2953
        %v2990 = vunpack.c.l.b16 %v2954
        %v2991 = vunpack.c.l.b16 %v2955
        %v2992 = vunpack.c.l.b16 %v2956
        %v2993 = vunpack.c.l.b16 %v2957
        %v2994 = vunpack.c.l.b16 %v2958
        %v2995 = vunpack.c.l.b16 %v2959
        %v2996 = vunpack.c.l.b16 %v2960
        %v2997 = vunpack.c.l.b16 %v2961
        %v2998 = vunpack.c.l.b16 %v2962
        %v2999 = vunpack.c.l.b16 %v2963
        %v3000 = vunpack.c.l.b16 %v2964
        %v3001 = vunpack.c.l.b16 %v2965
        %v3002 = vpack.c.b16 %v2987, %v2986
        %v3003 = vpack.c.b16 %v2989, %v2988
        %v3004 = vpack.c.b16 %v2991, %v2990
        %v3005 = vpack.c.b16 %v2993, %v2992
        %v3006 = vpack.c.b16 %v2995, %v2994
        %v3007 = vpack.c.b16 %v2997, %v2996
        %v3008 = vpack.c.b16 %v2999, %v2998
        %v3009 = vpack.c.b16 %v3001, %v3000
        %3018 = vmatpush.bf16.msra.mxu0 %v3009
        %3019 = vmatpush.bf16.msra.mxu0 %v3008
        %3020 = vmatpush.bf16.msra.mxu0 %v3007
        %3021 = vmatpush.bf16.msra.mxu0 %v3006
        %3022 = vmatpush.bf16.msra.mxu0 %v3005
        %3023 = vmatpush.bf16.msra.mxu0 %v3004
        %3024 = vmatpush.bf16.msra.mxu0 %v3003
        %3025 = vmatpush.bf16.msra.mxu0 %v3002
        %3026 = vmatmul.bf16.gmra.mxu0 %v2967
        %v3027 = vpop.f32.mrf.mxu0
        %v3028 = vadd.f32 0.0, %v3027
        %v3029 = vpop.f32.mrf.mxu0
        %3030 = vdwg.mxu0
        %v3031 = vadd.f32 %v2948, %v3028
        %s3032 = scalar_lea.vmem %s3, 1664
        %v3033 = vld [vmem:[%s3032] sm:$0xf]
        %v3034 = vld [vmem:[%s3032 + $0x4] sm:$0xf]
        %v3035 = vld [vmem:[%s3032 + $0x8] sm:$0xf]
        %v3036 = vld [vmem:[%s3032 + $0xc] sm:$0xf]
        %v3037 = vld [vmem:[%s3032 + $0x10] sm:$0xf]
        %v3038 = vld [vmem:[%s3032 + $0x14] sm:$0xf]
        %v3039 = vld [vmem:[%s3032 + $0x18] sm:$0xf]
        %v3040 = vld [vmem:[%s3032 + $0x1c] sm:$0xf]
        %v3041 = vld [vmem:[%s3032 + $0x20] sm:$0xf]
        %v3042 = vld [vmem:[%s3032 + $0x24] sm:$0xf]
        %v3043 = vld [vmem:[%s3032 + $0x28] sm:$0xf]
        %v3044 = vld [vmem:[%s3032 + $0x2c] sm:$0xf]
        %v3045 = vld [vmem:[%s3032 + $0x30] sm:$0xf]
        %v3046 = vld [vmem:[%s3032 + $0x34] sm:$0xf]
        %v3047 = vld [vmem:[%s3032 + $0x38] sm:$0xf]
        %v3048 = vld [vmem:[%s3032 + $0x3c] sm:$0xf]
        %v3050 = vrot.slane %v2869, 1
        %v3068 = vunpack.c.l.b16 %v3033
        %v3069 = vunpack.c.l.b16 %v3034
        %v3070 = vunpack.c.l.b16 %v3035
        %v3071 = vunpack.c.l.b16 %v3036
        %v3072 = vunpack.c.l.b16 %v3037
        %v3073 = vunpack.c.l.b16 %v3038
        %v3074 = vunpack.c.l.b16 %v3039
        %v3075 = vunpack.c.l.b16 %v3040
        %v3076 = vunpack.c.l.b16 %v3041
        %v3077 = vunpack.c.l.b16 %v3042
        %v3078 = vunpack.c.l.b16 %v3043
        %v3079 = vunpack.c.l.b16 %v3044
        %v3080 = vunpack.c.l.b16 %v3045
        %v3081 = vunpack.c.l.b16 %v3046
        %v3082 = vunpack.c.l.b16 %v3047
        %v3083 = vunpack.c.l.b16 %v3048
        %v3084 = vpack.c.b16 %v3069, %v3068
        %v3085 = vpack.c.b16 %v3071, %v3070
        %v3086 = vpack.c.b16 %v3073, %v3072
        %v3087 = vpack.c.b16 %v3075, %v3074
        %v3088 = vpack.c.b16 %v3077, %v3076
        %v3089 = vpack.c.b16 %v3079, %v3078
        %v3090 = vpack.c.b16 %v3081, %v3080
        %v3091 = vpack.c.b16 %v3083, %v3082
        %3100 = vmatpush.bf16.msra.mxu0 %v3091
        %3101 = vmatpush.bf16.msra.mxu0 %v3090
        %3102 = vmatpush.bf16.msra.mxu0 %v3089
        %3103 = vmatpush.bf16.msra.mxu0 %v3088
        %3104 = vmatpush.bf16.msra.mxu0 %v3087
        %3105 = vmatpush.bf16.msra.mxu0 %v3086
        %3106 = vmatpush.bf16.msra.mxu0 %v3085
        %3107 = vmatpush.bf16.msra.mxu0 %v3084
        %3108 = vmatmul.bf16.gmra.mxu0 %v3050
        %v3109 = vpop.f32.mrf.mxu0
        %v3110 = vadd.f32 0.0, %v3109
        %v3111 = vpop.f32.mrf.mxu0
        %3112 = vdwg.mxu0
        %v3113 = vadd.f32 %v3031, %v3110
        %s3114 = scalar_lea.vmem %s3, 1728
        %v3115 = vld [vmem:[%s3114] sm:$0xf]
        %v3116 = vld [vmem:[%s3114 + $0x4] sm:$0xf]
        %v3117 = vld [vmem:[%s3114 + $0x8] sm:$0xf]
        %v3118 = vld [vmem:[%s3114 + $0xc] sm:$0xf]
        %v3119 = vld [vmem:[%s3114 + $0x10] sm:$0xf]
        %v3120 = vld [vmem:[%s3114 + $0x14] sm:$0xf]
        %v3121 = vld [vmem:[%s3114 + $0x18] sm:$0xf]
        %v3122 = vld [vmem:[%s3114 + $0x1c] sm:$0xf]
        %v3123 = vld [vmem:[%s3114 + $0x20] sm:$0xf]
        %v3124 = vld [vmem:[%s3114 + $0x24] sm:$0xf]
        %v3125 = vld [vmem:[%s3114 + $0x28] sm:$0xf]
        %v3126 = vld [vmem:[%s3114 + $0x2c] sm:$0xf]
        %v3127 = vld [vmem:[%s3114 + $0x30] sm:$0xf]
        %v3128 = vld [vmem:[%s3114 + $0x34] sm:$0xf]
        %v3129 = vld [vmem:[%s3114 + $0x38] sm:$0xf]
        %v3130 = vld [vmem:[%s3114 + $0x3c] sm:$0xf]
        %v3131 = vrot.slane %v2967, 1
        %v3149 = vunpack.c.l.b16 %v3115
        %v3150 = vunpack.c.l.b16 %v3116
        %v3151 = vunpack.c.l.b16 %v3117
        %v3152 = vunpack.c.l.b16 %v3118
        %v3153 = vunpack.c.l.b16 %v3119
        %v3154 = vunpack.c.l.b16 %v3120
        %v3155 = vunpack.c.l.b16 %v3121
        %v3156 = vunpack.c.l.b16 %v3122
        %v3157 = vunpack.c.l.b16 %v3123
        %v3158 = vunpack.c.l.b16 %v3124
        %v3159 = vunpack.c.l.b16 %v3125
        %v3160 = vunpack.c.l.b16 %v3126
        %v3161 = vunpack.c.l.b16 %v3127
        %v3162 = vunpack.c.l.b16 %v3128
        %v3163 = vunpack.c.l.b16 %v3129
        %v3164 = vunpack.c.l.b16 %v3130
        %v3165 = vpack.c.b16 %v3150, %v3149
        %v3166 = vpack.c.b16 %v3152, %v3151
        %v3167 = vpack.c.b16 %v3154, %v3153
        %v3168 = vpack.c.b16 %v3156, %v3155
        %v3169 = vpack.c.b16 %v3158, %v3157
        %v3170 = vpack.c.b16 %v3160, %v3159
        %v3171 = vpack.c.b16 %v3162, %v3161
        %v3172 = vpack.c.b16 %v3164, %v3163
        %3181 = vmatpush.bf16.msra.mxu0 %v3172
        %3182 = vmatpush.bf16.msra.mxu0 %v3171
        %3183 = vmatpush.bf16.msra.mxu0 %v3170
        %3184 = vmatpush.bf16.msra.mxu0 %v3169
        %3185 = vmatpush.bf16.msra.mxu0 %v3168
        %3186 = vmatpush.bf16.msra.mxu0 %v3167
        %3187 = vmatpush.bf16.msra.mxu0 %v3166
        %3188 = vmatpush.bf16.msra.mxu0 %v3165
        %3189 = vmatmul.bf16.gmra.mxu0 %v3131
        %v3190 = vpop.f32.mrf.mxu0
        %v3191 = vadd.f32 0.0, %v3190
        %v3192 = vpop.f32.mrf.mxu0
        %3193 = vdwg.mxu0
        %v3194 = vadd.f32 %v3113, %v3191
        %s3195 = scalar_lea.vmem %s3, 1792
        %v3196 = vld [vmem:[%s3195] sm:$0xf]
        %v3197 = vld [vmem:[%s3195 + $0x4] sm:$0xf]
        %v3198 = vld [vmem:[%s3195 + $0x8] sm:$0xf]
        %v3199 = vld [vmem:[%s3195 + $0xc] sm:$0xf]
        %v3200 = vld [vmem:[%s3195 + $0x10] sm:$0xf]
        %v3201 = vld [vmem:[%s3195 + $0x14] sm:$0xf]
        %v3202 = vld [vmem:[%s3195 + $0x18] sm:$0xf]
        %v3203 = vld [vmem:[%s3195 + $0x1c] sm:$0xf]
        %v3204 = vld [vmem:[%s3195 + $0x20] sm:$0xf]
        %v3205 = vld [vmem:[%s3195 + $0x24] sm:$0xf]
        %v3206 = vld [vmem:[%s3195 + $0x28] sm:$0xf]
        %v3207 = vld [vmem:[%s3195 + $0x2c] sm:$0xf]
        %v3208 = vld [vmem:[%s3195 + $0x30] sm:$0xf]
        %v3209 = vld [vmem:[%s3195 + $0x34] sm:$0xf]
        %v3210 = vld [vmem:[%s3195 + $0x38] sm:$0xf]
        %v3211 = vld [vmem:[%s3195 + $0x3c] sm:$0xf]
        %v3212 = vrot.slane %v2869, 2
        %v3230 = vunpack.c.l.b16 %v3196
        %v3231 = vunpack.c.l.b16 %v3197
        %v3232 = vunpack.c.l.b16 %v3198
        %v3233 = vunpack.c.l.b16 %v3199
        %v3234 = vunpack.c.l.b16 %v3200
        %v3235 = vunpack.c.l.b16 %v3201
        %v3236 = vunpack.c.l.b16 %v3202
        %v3237 = vunpack.c.l.b16 %v3203
        %v3238 = vunpack.c.l.b16 %v3204
        %v3239 = vunpack.c.l.b16 %v3205
        %v3240 = vunpack.c.l.b16 %v3206
        %v3241 = vunpack.c.l.b16 %v3207
        %v3242 = vunpack.c.l.b16 %v3208
        %v3243 = vunpack.c.l.b16 %v3209
        %v3244 = vunpack.c.l.b16 %v3210
        %v3245 = vunpack.c.l.b16 %v3211
        %v3246 = vpack.c.b16 %v3231, %v3230
        %v3247 = vpack.c.b16 %v3233, %v3232
        %v3248 = vpack.c.b16 %v3235, %v3234
        %v3249 = vpack.c.b16 %v3237, %v3236
        %v3250 = vpack.c.b16 %v3239, %v3238
        %v3251 = vpack.c.b16 %v3241, %v3240
        %v3252 = vpack.c.b16 %v3243, %v3242
        %v3253 = vpack.c.b16 %v3245, %v3244
        %3262 = vmatpush.bf16.msra.mxu0 %v3253
        %3263 = vmatpush.bf16.msra.mxu0 %v3252
        %3264 = vmatpush.bf16.msra.mxu0 %v3251
        %3265 = vmatpush.bf16.msra.mxu0 %v3250
        %3266 = vmatpush.bf16.msra.mxu0 %v3249
        %3267 = vmatpush.bf16.msra.mxu0 %v3248
        %3268 = vmatpush.bf16.msra.mxu0 %v3247
        %3269 = vmatpush.bf16.msra.mxu0 %v3246
        %3270 = vmatmul.bf16.gmra.mxu0 %v3212
        %v3271 = vpop.f32.mrf.mxu0
        %v3272 = vadd.f32 0.0, %v3271
        %v3273 = vpop.f32.mrf.mxu0
        %3274 = vdwg.mxu0
        %v3275 = vadd.f32 %v3194, %v3272
        %s3276 = scalar_lea.vmem %s3, 1856
        %v3277 = vld [vmem:[%s3276] sm:$0xf]
        %v3278 = vld [vmem:[%s3276 + $0x4] sm:$0xf]
        %v3279 = vld [vmem:[%s3276 + $0x8] sm:$0xf]
        %v3280 = vld [vmem:[%s3276 + $0xc] sm:$0xf]
        %v3281 = vld [vmem:[%s3276 + $0x10] sm:$0xf]
        %v3282 = vld [vmem:[%s3276 + $0x14] sm:$0xf]
        %v3283 = vld [vmem:[%s3276 + $0x18] sm:$0xf]
        %v3284 = vld [vmem:[%s3276 + $0x1c] sm:$0xf]
        %v3285 = vld [vmem:[%s3276 + $0x20] sm:$0xf]
        %v3286 = vld [vmem:[%s3276 + $0x24] sm:$0xf]
        %v3287 = vld [vmem:[%s3276 + $0x28] sm:$0xf]
        %v3288 = vld [vmem:[%s3276 + $0x2c] sm:$0xf]
        %v3289 = vld [vmem:[%s3276 + $0x30] sm:$0xf]
        %v3290 = vld [vmem:[%s3276 + $0x34] sm:$0xf]
        %v3291 = vld [vmem:[%s3276 + $0x38] sm:$0xf]
        %v3292 = vld [vmem:[%s3276 + $0x3c] sm:$0xf]
        %v3293 = vrot.slane %v2967, 2
        %v3311 = vunpack.c.l.b16 %v3277
        %v3312 = vunpack.c.l.b16 %v3278
        %v3313 = vunpack.c.l.b16 %v3279
        %v3314 = vunpack.c.l.b16 %v3280
        %v3315 = vunpack.c.l.b16 %v3281
        %v3316 = vunpack.c.l.b16 %v3282
        %v3317 = vunpack.c.l.b16 %v3283
        %v3318 = vunpack.c.l.b16 %v3284
        %v3319 = vunpack.c.l.b16 %v3285
        %v3320 = vunpack.c.l.b16 %v3286
        %v3321 = vunpack.c.l.b16 %v3287
        %v3322 = vunpack.c.l.b16 %v3288
        %v3323 = vunpack.c.l.b16 %v3289
        %v3324 = vunpack.c.l.b16 %v3290
        %v3325 = vunpack.c.l.b16 %v3291
        %v3326 = vunpack.c.l.b16 %v3292
        %v3327 = vpack.c.b16 %v3312, %v3311
        %v3328 = vpack.c.b16 %v3314, %v3313
        %v3329 = vpack.c.b16 %v3316, %v3315
        %v3330 = vpack.c.b16 %v3318, %v3317
        %v3331 = vpack.c.b16 %v3320, %v3319
        %v3332 = vpack.c.b16 %v3322, %v3321
        %v3333 = vpack.c.b16 %v3324, %v3323
        %v3334 = vpack.c.b16 %v3326, %v3325
        %3343 = vmatpush.bf16.msra.mxu0 %v3334
        %3344 = vmatpush.bf16.msra.mxu0 %v3333
        %3345 = vmatpush.bf16.msra.mxu0 %v3332
        %3346 = vmatpush.bf16.msra.mxu0 %v3331
        %3347 = vmatpush.bf16.msra.mxu0 %v3330
        %3348 = vmatpush.bf16.msra.mxu0 %v3329
        %3349 = vmatpush.bf16.msra.mxu0 %v3328
        %3350 = vmatpush.bf16.msra.mxu0 %v3327
        %3351 = vmatmul.bf16.gmra.mxu0 %v3293
        %v3352 = vpop.f32.mrf.mxu0
        %v3353 = vadd.f32 0.0, %v3352
        %v3354 = vpop.f32.mrf.mxu0
        %3355 = vdwg.mxu0
        %v3356 = vadd.f32 %v3275, %v3353
        %s3357 = scalar_lea.vmem %s3, 1920
        %v3358 = vld [vmem:[%s3357] sm:$0xf]
        %v3359 = vld [vmem:[%s3357 + $0x4] sm:$0xf]
        %v3360 = vld [vmem:[%s3357 + $0x8] sm:$0xf]
        %v3361 = vld [vmem:[%s3357 + $0xc] sm:$0xf]
        %v3362 = vld [vmem:[%s3357 + $0x10] sm:$0xf]
        %v3363 = vld [vmem:[%s3357 + $0x14] sm:$0xf]
        %v3364 = vld [vmem:[%s3357 + $0x18] sm:$0xf]
        %v3365 = vld [vmem:[%s3357 + $0x1c] sm:$0xf]
        %v3366 = vld [vmem:[%s3357 + $0x20] sm:$0xf]
        %v3367 = vld [vmem:[%s3357 + $0x24] sm:$0xf]
        %v3368 = vld [vmem:[%s3357 + $0x28] sm:$0xf]
        %v3369 = vld [vmem:[%s3357 + $0x2c] sm:$0xf]
        %v3370 = vld [vmem:[%s3357 + $0x30] sm:$0xf]
        %v3371 = vld [vmem:[%s3357 + $0x34] sm:$0xf]
        %v3372 = vld [vmem:[%s3357 + $0x38] sm:$0xf]
        %v3373 = vld [vmem:[%s3357 + $0x3c] sm:$0xf]
        %v3374 = vrot.slane %v2869, 3
        %v3392 = vunpack.c.l.b16 %v3358
        %v3393 = vunpack.c.l.b16 %v3359
        %v3394 = vunpack.c.l.b16 %v3360
        %v3395 = vunpack.c.l.b16 %v3361
        %v3396 = vunpack.c.l.b16 %v3362
        %v3397 = vunpack.c.l.b16 %v3363
        %v3398 = vunpack.c.l.b16 %v3364
        %v3399 = vunpack.c.l.b16 %v3365
        %v3400 = vunpack.c.l.b16 %v3366
        %v3401 = vunpack.c.l.b16 %v3367
        %v3402 = vunpack.c.l.b16 %v3368
        %v3403 = vunpack.c.l.b16 %v3369
        %v3404 = vunpack.c.l.b16 %v3370
        %v3405 = vunpack.c.l.b16 %v3371
        %v3406 = vunpack.c.l.b16 %v3372
        %v3407 = vunpack.c.l.b16 %v3373
        %v3408 = vpack.c.b16 %v3393, %v3392
        %v3409 = vpack.c.b16 %v3395, %v3394
        %v3410 = vpack.c.b16 %v3397, %v3396
        %v3411 = vpack.c.b16 %v3399, %v3398
        %v3412 = vpack.c.b16 %v3401, %v3400
        %v3413 = vpack.c.b16 %v3403, %v3402
        %v3414 = vpack.c.b16 %v3405, %v3404
        %v3415 = vpack.c.b16 %v3407, %v3406
        %3424 = vmatpush.bf16.msra.mxu0 %v3415
        %3425 = vmatpush.bf16.msra.mxu0 %v3414
        %3426 = vmatpush.bf16.msra.mxu0 %v3413
        %3427 = vmatpush.bf16.msra.mxu0 %v3412
        %3428 = vmatpush.bf16.msra.mxu0 %v3411
        %3429 = vmatpush.bf16.msra.mxu0 %v3410
        %3430 = vmatpush.bf16.msra.mxu0 %v3409
        %3431 = vmatpush.bf16.msra.mxu0 %v3408
        %3432 = vmatmul.bf16.gmra.mxu0 %v3374
        %v3433 = vpop.f32.mrf.mxu0
        %v3434 = vadd.f32 0.0, %v3433
        %v3435 = vpop.f32.mrf.mxu0
        %3436 = vdwg.mxu0
        %v3437 = vadd.f32 %v3356, %v3434
        %s3438 = scalar_lea.vmem %s3, 1984
        %v3439 = vld [vmem:[%s3438] sm:$0xf]
        %v3440 = vld [vmem:[%s3438 + $0x4] sm:$0xf]
        %v3441 = vld [vmem:[%s3438 + $0x8] sm:$0xf]
        %v3442 = vld [vmem:[%s3438 + $0xc] sm:$0xf]
        %v3443 = vld [vmem:[%s3438 + $0x10] sm:$0xf]
        %v3444 = vld [vmem:[%s3438 + $0x14] sm:$0xf]
        %v3445 = vld [vmem:[%s3438 + $0x18] sm:$0xf]
        %v3446 = vld [vmem:[%s3438 + $0x1c] sm:$0xf]
        %v3447 = vld [vmem:[%s3438 + $0x20] sm:$0xf]
        %v3448 = vld [vmem:[%s3438 + $0x24] sm:$0xf]
        %v3449 = vld [vmem:[%s3438 + $0x28] sm:$0xf]
        %v3450 = vld [vmem:[%s3438 + $0x2c] sm:$0xf]
        %v3451 = vld [vmem:[%s3438 + $0x30] sm:$0xf]
        %v3452 = vld [vmem:[%s3438 + $0x34] sm:$0xf]
        %v3453 = vld [vmem:[%s3438 + $0x38] sm:$0xf]
        %v3454 = vld [vmem:[%s3438 + $0x3c] sm:$0xf]
        %v3455 = vrot.slane %v2967, 3
        %v3473 = vunpack.c.l.b16 %v3439
        %v3474 = vunpack.c.l.b16 %v3440
        %v3475 = vunpack.c.l.b16 %v3441
        %v3476 = vunpack.c.l.b16 %v3442
        %v3477 = vunpack.c.l.b16 %v3443
        %v3478 = vunpack.c.l.b16 %v3444
        %v3479 = vunpack.c.l.b16 %v3445
        %v3480 = vunpack.c.l.b16 %v3446
        %v3481 = vunpack.c.l.b16 %v3447
        %v3482 = vunpack.c.l.b16 %v3448
        %v3483 = vunpack.c.l.b16 %v3449
        %v3484 = vunpack.c.l.b16 %v3450
        %v3485 = vunpack.c.l.b16 %v3451
        %v3486 = vunpack.c.l.b16 %v3452
        %v3487 = vunpack.c.l.b16 %v3453
        %v3488 = vunpack.c.l.b16 %v3454
        %v3489 = vpack.c.b16 %v3474, %v3473
        %v3490 = vpack.c.b16 %v3476, %v3475
        %v3491 = vpack.c.b16 %v3478, %v3477
        %v3492 = vpack.c.b16 %v3480, %v3479
        %v3493 = vpack.c.b16 %v3482, %v3481
        %v3494 = vpack.c.b16 %v3484, %v3483
        %v3495 = vpack.c.b16 %v3486, %v3485
        %v3496 = vpack.c.b16 %v3488, %v3487
        %3505 = vmatpush.bf16.msra.mxu0 %v3496
        %3506 = vmatpush.bf16.msra.mxu0 %v3495
        %3507 = vmatpush.bf16.msra.mxu0 %v3494
        %3508 = vmatpush.bf16.msra.mxu0 %v3493
        %3509 = vmatpush.bf16.msra.mxu0 %v3492
        %3510 = vmatpush.bf16.msra.mxu0 %v3491
        %3511 = vmatpush.bf16.msra.mxu0 %v3490
        %3512 = vmatpush.bf16.msra.mxu0 %v3489
        %3513 = vmatmul.bf16.gmra.mxu0 %v3455
        %v3514 = vpop.f32.mrf.mxu0
        %v3515 = vadd.f32 0.0, %v3514
        %v3516 = vpop.f32.mrf.mxu0
        %3517 = vdwg.mxu0
        %v3518 = vadd.f32 %v3437, %v3515
        %v3519 = vpack.c.bf16 %v921, %v921
        %s3520 = scalar_lea.vmem %s3, 2048
        %v3521 = vld [vmem:[%s3520] sm:$0xf]
        %v3522 = vld [vmem:[%s3520 + $0x4] sm:$0xf]
        %v3523 = vld [vmem:[%s3520 + $0x8] sm:$0xf]
        %v3524 = vld [vmem:[%s3520 + $0xc] sm:$0xf]
        %v3525 = vld [vmem:[%s3520 + $0x10] sm:$0xf]
        %v3526 = vld [vmem:[%s3520 + $0x14] sm:$0xf]
        %v3527 = vld [vmem:[%s3520 + $0x18] sm:$0xf]
        %v3528 = vld [vmem:[%s3520 + $0x1c] sm:$0xf]
        %v3529 = vld [vmem:[%s3520 + $0x20] sm:$0xf]
        %v3530 = vld [vmem:[%s3520 + $0x24] sm:$0xf]
        %v3531 = vld [vmem:[%s3520 + $0x28] sm:$0xf]
        %v3532 = vld [vmem:[%s3520 + $0x2c] sm:$0xf]
        %v3533 = vld [vmem:[%s3520 + $0x30] sm:$0xf]
        %v3534 = vld [vmem:[%s3520 + $0x34] sm:$0xf]
        %v3535 = vld [vmem:[%s3520 + $0x38] sm:$0xf]
        %v3536 = vld [vmem:[%s3520 + $0x3c] sm:$0xf]
        %v3553 = vunpack.c.l.b16 %v3521
        %v3554 = vunpack.c.l.b16 %v3522
        %v3555 = vunpack.c.l.b16 %v3523
        %v3556 = vunpack.c.l.b16 %v3524
        %v3557 = vunpack.c.l.b16 %v3525
        %v3558 = vunpack.c.l.b16 %v3526
        %v3559 = vunpack.c.l.b16 %v3527
        %v3560 = vunpack.c.l.b16 %v3528
        %v3561 = vunpack.c.l.b16 %v3529
        %v3562 = vunpack.c.l.b16 %v3530
        %v3563 = vunpack.c.l.b16 %v3531
        %v3564 = vunpack.c.l.b16 %v3532
        %v3565 = vunpack.c.l.b16 %v3533
        %v3566 = vunpack.c.l.b16 %v3534
        %v3567 = vunpack.c.l.b16 %v3535
        %v3568 = vunpack.c.l.b16 %v3536
        %v3569 = vpack.c.b16 %v3554, %v3553
        %v3570 = vpack.c.b16 %v3556, %v3555
        %v3571 = vpack.c.b16 %v3558, %v3557
        %v3572 = vpack.c.b16 %v3560, %v3559
        %v3573 = vpack.c.b16 %v3562, %v3561
        %v3574 = vpack.c.b16 %v3564, %v3563
        %v3575 = vpack.c.b16 %v3566, %v3565
        %v3576 = vpack.c.b16 %v3568, %v3567
        %3585 = vmatpush.bf16.msra.mxu0 %v3576
        %3586 = vmatpush.bf16.msra.mxu0 %v3575
        %3587 = vmatpush.bf16.msra.mxu0 %v3574
        %3588 = vmatpush.bf16.msra.mxu0 %v3573
        %3589 = vmatpush.bf16.msra.mxu0 %v3572
        %3590 = vmatpush.bf16.msra.mxu0 %v3571
        %3591 = vmatpush.bf16.msra.mxu0 %v3570
        %3592 = vmatpush.bf16.msra.mxu0 %v3569
        %3593 = vmatmul.bf16.gmra.mxu0 %v3519
        %v3594 = vpop.f32.mrf.mxu0
        %v3595 = vadd.f32 0.0, %v3594
        %v3596 = vpop.f32.mrf.mxu0
        %3597 = vdwg.mxu0
        %v3598 = vadd.f32 %v3518, %v3595
        %s3599 = scalar_lea.vmem %s3, 2112
        %v3600 = vld [vmem:[%s3599] sm:$0xf]
        %v3601 = vld [vmem:[%s3599 + $0x4] sm:$0xf]
        %v3602 = vld [vmem:[%s3599 + $0x8] sm:$0xf]
        %v3603 = vld [vmem:[%s3599 + $0xc] sm:$0xf]
        %v3604 = vld [vmem:[%s3599 + $0x10] sm:$0xf]
        %v3605 = vld [vmem:[%s3599 + $0x14] sm:$0xf]
        %v3606 = vld [vmem:[%s3599 + $0x18] sm:$0xf]
        %v3607 = vld [vmem:[%s3599 + $0x1c] sm:$0xf]
        %v3608 = vld [vmem:[%s3599 + $0x20] sm:$0xf]
        %v3609 = vld [vmem:[%s3599 + $0x24] sm:$0xf]
        %v3610 = vld [vmem:[%s3599 + $0x28] sm:$0xf]
        %v3611 = vld [vmem:[%s3599 + $0x2c] sm:$0xf]
        %v3612 = vld [vmem:[%s3599 + $0x30] sm:$0xf]
        %v3613 = vld [vmem:[%s3599 + $0x34] sm:$0xf]
        %v3614 = vld [vmem:[%s3599 + $0x38] sm:$0xf]
        %v3615 = vld [vmem:[%s3599 + $0x3c] sm:$0xf]
        %v3617 = vshrl.u32 %v3519, 16
        %v3636 = vunpack.c.l.b16 %v3600
        %v3637 = vunpack.c.l.b16 %v3601
        %v3638 = vunpack.c.l.b16 %v3602
        %v3639 = vunpack.c.l.b16 %v3603
        %v3640 = vunpack.c.l.b16 %v3604
        %v3641 = vunpack.c.l.b16 %v3605
        %v3642 = vunpack.c.l.b16 %v3606
        %v3643 = vunpack.c.l.b16 %v3607
        %v3644 = vunpack.c.l.b16 %v3608
        %v3645 = vunpack.c.l.b16 %v3609
        %v3646 = vunpack.c.l.b16 %v3610
        %v3647 = vunpack.c.l.b16 %v3611
        %v3648 = vunpack.c.l.b16 %v3612
        %v3649 = vunpack.c.l.b16 %v3613
        %v3650 = vunpack.c.l.b16 %v3614
        %v3651 = vunpack.c.l.b16 %v3615
        %v3652 = vpack.c.b16 %v3637, %v3636
        %v3653 = vpack.c.b16 %v3639, %v3638
        %v3654 = vpack.c.b16 %v3641, %v3640
        %v3655 = vpack.c.b16 %v3643, %v3642
        %v3656 = vpack.c.b16 %v3645, %v3644
        %v3657 = vpack.c.b16 %v3647, %v3646
        %v3658 = vpack.c.b16 %v3649, %v3648
        %v3659 = vpack.c.b16 %v3651, %v3650
        %3668 = vmatpush.bf16.msra.mxu0 %v3659
        %3669 = vmatpush.bf16.msra.mxu0 %v3658
        %3670 = vmatpush.bf16.msra.mxu0 %v3657
        %3671 = vmatpush.bf16.msra.mxu0 %v3656
        %3672 = vmatpush.bf16.msra.mxu0 %v3655
        %3673 = vmatpush.bf16.msra.mxu0 %v3654
        %3674 = vmatpush.bf16.msra.mxu0 %v3653
        %3675 = vmatpush.bf16.msra.mxu0 %v3652
        %3676 = vmatmul.bf16.gmra.mxu0 %v3617
        %v3677 = vpop.f32.mrf.mxu0
        %v3678 = vadd.f32 0.0, %v3677
        %v3679 = vpop.f32.mrf.mxu0
        %3680 = vdwg.mxu0
        %v3681 = vadd.f32 %v3598, %v3678
        %s3682 = scalar_lea.vmem %s3, 2176
        %v3683 = vld [vmem:[%s3682] sm:$0xf]
        %v3684 = vld [vmem:[%s3682 + $0x4] sm:$0xf]
        %v3685 = vld [vmem:[%s3682 + $0x8] sm:$0xf]
        %v3686 = vld [vmem:[%s3682 + $0xc] sm:$0xf]
        %v3687 = vld [vmem:[%s3682 + $0x10] sm:$0xf]
        %v3688 = vld [vmem:[%s3682 + $0x14] sm:$0xf]
        %v3689 = vld [vmem:[%s3682 + $0x18] sm:$0xf]
        %v3690 = vld [vmem:[%s3682 + $0x1c] sm:$0xf]
        %v3691 = vld [vmem:[%s3682 + $0x20] sm:$0xf]
        %v3692 = vld [vmem:[%s3682 + $0x24] sm:$0xf]
        %v3693 = vld [vmem:[%s3682 + $0x28] sm:$0xf]
        %v3694 = vld [vmem:[%s3682 + $0x2c] sm:$0xf]
        %v3695 = vld [vmem:[%s3682 + $0x30] sm:$0xf]
        %v3696 = vld [vmem:[%s3682 + $0x34] sm:$0xf]
        %v3697 = vld [vmem:[%s3682 + $0x38] sm:$0xf]
        %v3698 = vld [vmem:[%s3682 + $0x3c] sm:$0xf]
        %v3700 = vrot.slane %v3519, 1
        %v3718 = vunpack.c.l.b16 %v3683
        %v3719 = vunpack.c.l.b16 %v3684
        %v3720 = vunpack.c.l.b16 %v3685
        %v3721 = vunpack.c.l.b16 %v3686
        %v3722 = vunpack.c.l.b16 %v3687
        %v3723 = vunpack.c.l.b16 %v3688
        %v3724 = vunpack.c.l.b16 %v3689
        %v3725 = vunpack.c.l.b16 %v3690
        %v3726 = vunpack.c.l.b16 %v3691
        %v3727 = vunpack.c.l.b16 %v3692
        %v3728 = vunpack.c.l.b16 %v3693
        %v3729 = vunpack.c.l.b16 %v3694
        %v3730 = vunpack.c.l.b16 %v3695
        %v3731 = vunpack.c.l.b16 %v3696
        %v3732 = vunpack.c.l.b16 %v3697
        %v3733 = vunpack.c.l.b16 %v3698
        %v3734 = vpack.c.b16 %v3719, %v3718
        %v3735 = vpack.c.b16 %v3721, %v3720
        %v3736 = vpack.c.b16 %v3723, %v3722
        %v3737 = vpack.c.b16 %v3725, %v3724
        %v3738 = vpack.c.b16 %v3727, %v3726
        %v3739 = vpack.c.b16 %v3729, %v3728
        %v3740 = vpack.c.b16 %v3731, %v3730
        %v3741 = vpack.c.b16 %v3733, %v3732
        %3750 = vmatpush.bf16.msra.mxu0 %v3741
        %3751 = vmatpush.bf16.msra.mxu0 %v3740
        %3752 = vmatpush.bf16.msra.mxu0 %v3739
        %3753 = vmatpush.bf16.msra.mxu0 %v3738
        %3754 = vmatpush.bf16.msra.mxu0 %v3737
        %3755 = vmatpush.bf16.msra.mxu0 %v3736
        %3756 = vmatpush.bf16.msra.mxu0 %v3735
        %3757 = vmatpush.bf16.msra.mxu0 %v3734
        %3758 = vmatmul.bf16.gmra.mxu0 %v3700
        %v3759 = vpop.f32.mrf.mxu0
        %v3760 = vadd.f32 0.0, %v3759
        %v3761 = vpop.f32.mrf.mxu0
        %3762 = vdwg.mxu0
        %v3763 = vadd.f32 %v3681, %v3760
        %s3764 = scalar_lea.vmem %s3, 2240
        %v3765 = vld [vmem:[%s3764] sm:$0xf]
        %v3766 = vld [vmem:[%s3764 + $0x4] sm:$0xf]
        %v3767 = vld [vmem:[%s3764 + $0x8] sm:$0xf]
        %v3768 = vld [vmem:[%s3764 + $0xc] sm:$0xf]
        %v3769 = vld [vmem:[%s3764 + $0x10] sm:$0xf]
        %v3770 = vld [vmem:[%s3764 + $0x14] sm:$0xf]
        %v3771 = vld [vmem:[%s3764 + $0x18] sm:$0xf]
        %v3772 = vld [vmem:[%s3764 + $0x1c] sm:$0xf]
        %v3773 = vld [vmem:[%s3764 + $0x20] sm:$0xf]
        %v3774 = vld [vmem:[%s3764 + $0x24] sm:$0xf]
        %v3775 = vld [vmem:[%s3764 + $0x28] sm:$0xf]
        %v3776 = vld [vmem:[%s3764 + $0x2c] sm:$0xf]
        %v3777 = vld [vmem:[%s3764 + $0x30] sm:$0xf]
        %v3778 = vld [vmem:[%s3764 + $0x34] sm:$0xf]
        %v3779 = vld [vmem:[%s3764 + $0x38] sm:$0xf]
        %v3780 = vld [vmem:[%s3764 + $0x3c] sm:$0xf]
        %v3781 = vrot.slane %v3617, 1
        %v3799 = vunpack.c.l.b16 %v3765
        %v3800 = vunpack.c.l.b16 %v3766
        %v3801 = vunpack.c.l.b16 %v3767
        %v3802 = vunpack.c.l.b16 %v3768
        %v3803 = vunpack.c.l.b16 %v3769
        %v3804 = vunpack.c.l.b16 %v3770
        %v3805 = vunpack.c.l.b16 %v3771
        %v3806 = vunpack.c.l.b16 %v3772
        %v3807 = vunpack.c.l.b16 %v3773
        %v3808 = vunpack.c.l.b16 %v3774
        %v3809 = vunpack.c.l.b16 %v3775
        %v3810 = vunpack.c.l.b16 %v3776
        %v3811 = vunpack.c.l.b16 %v3777
        %v3812 = vunpack.c.l.b16 %v3778
        %v3813 = vunpack.c.l.b16 %v3779
        %v3814 = vunpack.c.l.b16 %v3780
        %v3815 = vpack.c.b16 %v3800, %v3799
        %v3816 = vpack.c.b16 %v3802, %v3801
        %v3817 = vpack.c.b16 %v3804, %v3803
        %v3818 = vpack.c.b16 %v3806, %v3805
        %v3819 = vpack.c.b16 %v3808, %v3807
        %v3820 = vpack.c.b16 %v3810, %v3809
        %v3821 = vpack.c.b16 %v3812, %v3811
        %v3822 = vpack.c.b16 %v3814, %v3813
        %3831 = vmatpush.bf16.msra.mxu0 %v3822
        %3832 = vmatpush.bf16.msra.mxu0 %v3821
        %3833 = vmatpush.bf16.msra.mxu0 %v3820
        %3834 = vmatpush.bf16.msra.mxu0 %v3819
        %3835 = vmatpush.bf16.msra.mxu0 %v3818
        %3836 = vmatpush.bf16.msra.mxu0 %v3817
        %3837 = vmatpush.bf16.msra.mxu0 %v3816
        %3838 = vmatpush.bf16.msra.mxu0 %v3815
        %3839 = vmatmul.bf16.gmra.mxu0 %v3781
        %v3840 = vpop.f32.mrf.mxu0
        %v3841 = vadd.f32 0.0, %v3840
        %v3842 = vpop.f32.mrf.mxu0
        %3843 = vdwg.mxu0
        %v3844 = vadd.f32 %v3763, %v3841
        %v3845 = vld [vmem:[%s4] sm:$0x1]
        %v3846 = vadd.f32 %v3844, %v3845
        %3847 = vst [vmem:[%s216] sm:$0x1] %v3846
        %s3848 = sand.u32 %s137, 1
        %s3849 = scalar_lea.sflag [#allocation3], %s3848
        %s3850 = sand.u32 %s137, 1
        %s3851 = scalar_lea.vmem [#allocation2], %s3850
        // Predicated region
        $region41: #{mlleaks_cnn_forward.1} parent=39 // pred_check
          %p3852 = pneg %p147
        $region42: #{mlleaks_cnn_forward.1} parent=39 // pred_check_branch
          %3854 = sbr.rel (%p3852) target = $region44
        $region43: #{mlleaks_cnn_forward.1} parent=39 // pred_region
          %3856 = vsyncadd %s3849, 0
          %s3857 = scalar_lea.hbm %s5, %s19
          %s3859 = sshll.u32 %s3851, 4
          %s3860 = int_to_ptr.vmem [resolvable:$true] %s3859
          %s3861 = sshll.u32 %s3857, 4
          %s3862 = int_to_ptr.hbm [resolvable:$true] %s3861
          %3864 = dma.vmem_to_hbm [thread:$0]  %s3860, 16, %s3862, %s3849
        $region44: #{mlleaks_cnn_forward.1} parent=39 // pred_fallthru
          _
      $region40: #{mlleaks_cnn_forward.1} parent=5 // pred_fallthru
        _
      %p3865 = scmp.le.s32.totalorder 2, %s14
      // Predicated region
      $region45: #{mlleaks_cnn_forward.1} parent=5 // pred_check
        %p3866 = pneg %p3865
      $region46: #{mlleaks_cnn_forward.1} parent=5 // pred_check_branch
        %3868 = sbr.rel (%p3866) target = $region48
      $region47: #{mlleaks_cnn_forward.1} parent=5 // pred_region
        %s3869 = ssub.s32 %s14, 2
        // Predicated region
        $region49: #{mlleaks_cnn_forward.1} parent=47 // pred_check
          %p3870 = pneg %p153
        $region50: #{mlleaks_cnn_forward.1} parent=47 // pred_check_branch
          %3872 = sbr.rel (%p3870) target = $region52
        $region51: #{mlleaks_cnn_forward.1} parent=47 // pred_region
          %s3873 = sand.u32 %s138, 1
          %s3874 = scalar_lea.sflag [#allocation3], %s3873
          %s3875 = sand.u32 %s138, 1
          %s3876 = scalar_lea.vmem [#allocation2], %s3875
          %3878 = dma.done %s3874, 16
        $region52: #{mlleaks_cnn_forward.1} parent=47 // pred_fallthru
          _
      $region48: #{mlleaks_cnn_forward.1} parent=5 // pred_fallthru
        _
    $region6: #{mlleaks_cnn_forward.1} parent=1 // loop_footer
      %s18 = sadd.s32 1, %s14
    $region7: #{mlleaks_cnn_forward.1} parent=1 // loop_footer_branch
      %13 = sbr.rel target = $region3
    $region8: #{mlleaks_cnn_forward.1} parent=1 // loop_exit
      _
    %3879 = vsyncpa [#allocation3], 1
    %s3880 = scalar_lea.sflag [#allocation3], 1
    %3881 = vsyncpa %s3880, 1

</llo_original>
